<compile_context>
chip_gen: v5e
topology: v5e:2x2
jax: 0.10.0
libtpu: 0.0.40
codegen_flags: <defaults>
</compile_context>

<pallas_src>
import math
from functools import partial

import jax
import jax.numpy as jnp
from jax import lax
from jax.experimental import pallas as pl
from jax.experimental.pallas import tpu as pltpu


# ------------------------------ fused kernel --------------------------------

def _transformer_kernel(
    # inputs ------------------------------------------------------------------
    src_ref,      # (N, Din)       f32   N = B*S, batch-major rows (b*S + s)
    pe_ref,       # (N, D)         f32   positional encoding, pre-tiled
    emb_w_ref,    # (Din, D)       f32
    emb_b_ref,    # (1, D)         f32
    wq_ref,       # (L*H, Dh, D)   f32   q_h = x @ wq[lh].T
    bq_ref,       # (L*H, 1, Dh)   f32
    wk_ref,       # (L*H, Dh, D)   f32
    bk_ref,       # (L*H, 1, Dh)   f32
    wv_ref,       # (L*H, Dh, D)   f32
    bv_ref,       # (L*H, 1, Dh)   f32
    wo_ref,       # (L*H, Dh, D)   f32   attn += o_h @ wo[lh]
    bo_ref,       # (L, 1, D)      f32
    ln1_g_ref,    # (L, 1, D)      f32
    ln1_b_ref,    # (L, 1, D)      f32
    w1_ref,       # (L, D, F)      bf16  h1 = x1 @ w1[l]
    b1_ref,       # (L, 1, F)      f32
    w2_ref,       # (L, D, F)      bf16  h2 = h1 @ w2[l].T
    b2_ref,       # (L, 1, D)      f32
    ln2_g_ref,    # (L, 1, D)      f32
    ln2_b_ref,    # (L, 1, D)      f32
    dec_w_ref,    # (Din, D)       f32   out = x @ dec_w.T
    dec_b_ref,    # (1, Din)       f32
    # outputs -----------------------------------------------------------------
    out_ref,      # (N, Din)       f32
    # scratch -----------------------------------------------------------------
    attn_ref,     # (N, D)         f32   attention-output accumulator
    *, num_layers, num_heads, batch, seq, eps,
):
    f32 = jnp.float32
    n = batch * seq
    d_model = pe_ref.shape[1]
    d_head = d_model // num_heads
    scale = 1.0 / math.sqrt(d_head)

    # contract the last dim of both operands: a @ b.T on the MXU (no transposes)
    dot_t = (((1,), (1,)), ((), ()))

    def layer_norm(y, g, b):
        mu = jnp.mean(y, axis=-1, keepdims=True)
        var = jnp.mean((y - mu) ** 2, axis=-1, keepdims=True)
        return (y - mu) * lax.rsqrt(var + eps) * g + b

    # ---- embedding + positional encoding (fused epilogue) ----
    x = jnp.dot(src_ref[...], emb_w_ref[...], preferred_element_type=f32)
    x = x + emb_b_ref[...] + pe_ref[...]

    for l in range(num_layers):
        # ---------------- multi-head self-attention ----------------
        attn_ref[...] = jnp.zeros((n, d_model), dtype=f32)
        for h in range(num_heads):
            lh = l * num_heads + h
            q = lax.dot_general(x, wq_ref[lh], dot_t,
                                preferred_element_type=f32) + bq_ref[lh]
            k = lax.dot_general(x, wk_ref[lh], dot_t,
                                preferred_element_type=f32) + bk_ref[lh]
            v = lax.dot_general(x, wv_ref[lh], dot_t,
                                preferred_element_type=f32) + bv_ref[lh]
            wo_h = wo_ref[lh]                                       # (Dh, D)
            for b in range(batch):                                   # static
                r0 = b * seq
                qb = q[r0:r0 + seq, :]                               # (S, Dh)
                kb = k[r0:r0 + seq, :]
                vb = v[r0:r0 + seq, :]
                s = lax.dot_general(qb, kb, dot_t,
                                    preferred_element_type=f32) * scale
                s = s - jnp.max(s, axis=-1, keepdims=True)
                p = jnp.exp(s)
                denom = jnp.sum(p, axis=-1, keepdims=True)
                p = p * pl.reciprocal(denom, approx=True)            # EUP
                o_h = jnp.dot(p, vb, preferred_element_type=f32)     # (S, Dh)
                attn_ref[r0:r0 + seq, :] = (
                    attn_ref[r0:r0 + seq, :]
                    + jnp.dot(o_h, wo_h, preferred_element_type=f32))
        attn = attn_ref[...] + bo_ref[l]

        # residual + LayerNorm 1 (dropout == identity in eval mode)
        x1 = layer_norm(x + attn, ln1_g_ref[l], ln1_b_ref[l])

        # ---------------- feed-forward (bf16 MXU inputs, f32 accumulate) -----
        h1 = jnp.dot(x1.astype(w1_ref.dtype), w1_ref[l],
                     preferred_element_type=f32) + b1_ref[l]          # (N, F)
        h1 = jnp.maximum(h1, 0.0)
        h2 = lax.dot_general(h1.astype(w2_ref.dtype), w2_ref[l], dot_t,
                             preferred_element_type=f32) + b2_ref[l]  # (N, D)

        # residual + LayerNorm 2
        x = layer_norm(x1 + h2, ln2_g_ref[l], ln2_b_ref[l])

    # ---- decoder ----
    out_ref[...] = lax.dot_general(x, dec_w_ref[...], dot_t,
                                   preferred_element_type=f32) + dec_b_ref[...]


# ---------------------------- params & packing ------------------------------

def make_positional_encoding(d_model, max_len=64):
    position = jnp.arange(max_len, dtype=jnp.float32)[:, None]
    div_term = jnp.exp(jnp.arange(0, d_model, 2, dtype=jnp.float32)
                       * -(jnp.log(10000.0) / d_model))
    pe = jnp.zeros((max_len, d_model), dtype=jnp.float32)
    pe = pe.at[:, 0::2].set(jnp.sin(position * div_term))
    pe = pe.at[:, 1::2].set(jnp.cos(position * div_term))
    return pe  # (max_len, d_model)


def init_params(key, input_dim, model_dim, num_heads, num_layers, ffn_dim):
    """Parameters in PyTorch layout (as nn.TransformerEncoderLayer stores them)."""
    def w(k, shape, scale=0.05):
        return scale * jax.random.normal(k, shape, dtype=jnp.float32)

    keys = jax.random.split(key, 2 + 8 * num_layers)
    ki = iter(keys)
    params = {
        'emb_w': w(next(ki), (model_dim, input_dim)),
        'emb_b': jnp.zeros((model_dim,), jnp.float32),
        'dec_w': w(next(ki), (input_dim, model_dim)),
        'dec_b': jnp.zeros((input_dim,), jnp.float32),
        'pe': make_positional_encoding(model_dim),
        'layers': [],
    }
    for _ in range(num_layers):
        params['layers'].append({
            'in_proj_w': w(next(ki), (3 * model_dim, model_dim)),
            'in_proj_b': w(next(ki), (3 * model_dim,), 0.01),
            'out_proj_w': w(next(ki), (model_dim, model_dim)),
            'out_proj_b': jnp.zeros((model_dim,), jnp.float32),
            'lin1_w': w(next(ki), (ffn_dim, model_dim)),
            'lin1_b': w(next(ki), (ffn_dim,), 0.01),
            'lin2_w': w(next(ki), (model_dim, ffn_dim)),
            'lin2_b': w(next(ki), (model_dim,), 0.01),
            'ln1_g': jnp.ones((model_dim,), jnp.float32),
            'ln1_b': jnp.zeros((model_dim,), jnp.float32),
            'ln2_g': jnp.ones((model_dim,), jnp.float32),
            'ln2_b': jnp.zeros((model_dim,), jnp.float32),
        })
    return params


def pack_params(params, num_heads):
    """One-time repack of PyTorch-layout params into the kernel layout."""
    f32, bf16 = jnp.float32, jnp.bfloat16
    d = params['emb_w'].shape[0]
    h = num_heads
    dh = d // h
    layers = params['layers']

    def stack(fn, dtype=f32):                      # (L, ...) stacked per layer
        return jnp.stack([fn(p) for p in layers]).astype(dtype)

    def stack_heads(fn, dtype=f32):                # (L*H, ...) heads flattened
        return jnp.concatenate([fn(p) for p in layers], axis=0).astype(dtype)

    return {
        'pe': params['pe'].astype(f32),
        'emb_w': params['emb_w'].T.astype(f32),                       # (Din, D)
        'emb_b': params['emb_b'].reshape(1, -1).astype(f32),
        'dec_w': params['dec_w'].astype(f32),                         # (Din, D)
        'dec_b': params['dec_b'].reshape(1, -1).astype(f32),
        # per-head q/k/v projections: PyTorch row slices -> (L*H, Dh, D)
        'wq': stack_heads(lambda p: p['in_proj_w'][0:d].reshape(h, dh, d)),
        'wk': stack_heads(lambda p: p['in_proj_w'][d:2 * d].reshape(h, dh, d)),
        'wv': stack_heads(lambda p: p['in_proj_w'][2 * d:].reshape(h, dh, d)),
        'bq': stack_heads(lambda p: p['in_proj_b'][0:d].reshape(h, 1, dh)),
        'bk': stack_heads(lambda p: p['in_proj_b'][d:2 * d].reshape(h, 1, dh)),
        'bv': stack_heads(lambda p: p['in_proj_b'][2 * d:].reshape(h, 1, dh)),
        # out-proj split along its concat-head input dim -> (L*H, Dh, D)
        'wo': stack_heads(lambda p: p['out_proj_w'].T.reshape(h, dh, d)),
        'bo': stack(lambda p: p['out_proj_b'].reshape(1, d)),
        'ln1_g': stack(lambda p: p['ln1_g'].reshape(1, d)),
        'ln1_b': stack(lambda p: p['ln1_b'].reshape(1, d)),
        'ln2_g': stack(lambda p: p['ln2_g'].reshape(1, d)),
        'ln2_b': stack(lambda p: p['ln2_b'].reshape(1, d)),
        # FFN weights, lane-dense (2048 on the lane dim), bf16 for the MXU.
        'w1': stack(lambda p: p['lin1_w'].T, bf16),                   # (L, D, F)
        'b1': stack(lambda p: p['lin1_b'].reshape(1, -1)),            # (L, 1, F)
        'w2': stack(lambda p: p['lin2_w'], bf16),                     # (L, D, F)
        'b2': stack(lambda p: p['lin2_b'].reshape(1, -1)),            # (L, 1, D)
    }


# ------------------------------- forward pass -------------------------------

@jax.jit
def transformer_ais_forward(packed, src):
    """src: (S, B, input_dim), seq-first (batch_first=False)."""
    s_len, b_sz, d_in = src.shape
    n = b_sz * s_len
    num_heads = packed['bq'].shape[2] and packed['wq'].shape[0] // packed['bo'].shape[0]
    num_layers = packed['bo'].shape[0]
    d_model = packed['emb_w'].shape[1]

    # batch-major 2-D view for the kernel (rows = b*S + s): two tiny XLA
    # transposes per forward instead of per-layer host reshuffles.
    src_bm = jnp.transpose(src, (1, 0, 2)).reshape(n, d_in).astype(jnp.float32)
    # positional encoding added along the *batch* dim, exactly like the
    # reference code (pe[:, :x.size(1)] with x in (S, B, D) layout).
    pe_bm = jnp.repeat(packed['pe'][:b_sz], s_len, axis=0)            # (N, D)

    kernel = partial(_transformer_kernel, num_layers=num_layers,
                     num_heads=num_heads, batch=b_sz, seq=s_len, eps=1e-5)
    out_bm = pl.pallas_call(
        kernel,
        out_shape=jax.ShapeDtypeStruct((n, d_in), jnp.float32),
        scratch_shapes=[pltpu.VMEM((n, d_model), jnp.float32)],
    )(src_bm, pe_bm, packed['emb_w'], packed['emb_b'],
      packed['wq'], packed['bq'], packed['wk'], packed['bk'],
      packed['wv'], packed['bv'], packed['wo'], packed['bo'],
      packed['ln1_g'], packed['ln1_b'],
      packed['w1'], packed['b1'], packed['w2'], packed['b2'],
      packed['ln2_g'], packed['ln2_b'],
      packed['dec_w'], packed['dec_b'])

    return out_bm.reshape(b_sz, s_len, d_in).transpose(1, 0, 2)


# -------------------------- pure-JAX reference ------------------------------

def _layer_norm_ref(x, g, b, eps=1e-5):
    mu = x.mean(-1, keepdims=True)
    var = ((x - mu) ** 2).mean(-1, keepdims=True)
    return (x - mu) / jnp.sqrt(var + eps) * g + b


def reference_forward(params, src, num_heads):
    s_len, b_sz, _ = src.shape
    d = params['emb_w'].shape[0]
    h, dh = num_heads, d // num_heads

    x = src @ params['emb_w'].T + params['emb_b']
    x = x + params['pe'][:b_sz][None, :, :]
    for p in params['layers']:
        qkv = x @ p['in_proj_w'].T + p['in_proj_b']
        q, k, v = jnp.split(qkv, 3, axis=-1)
        heads = lambda t: t.reshape(s_len, b_sz, h, dh).transpose(1, 2, 0, 3)
        qh, kh, vh = heads(q), heads(k), heads(v)
        sc = jnp.einsum('bhqd,bhkd->bhqk', qh, kh) / math.sqrt(dh)
        pr = jax.nn.softmax(sc, axis=-1)
        o = jnp.einsum('bhqk,bhkd->bhqd', pr, vh)
        o = o.transpose(2, 0, 1, 3).reshape(s_len, b_sz, d)
        attn = o @ p['out_proj_w'].T + p['out_proj_b']
        x1 = _layer_norm_ref(x + attn, p['ln1_g'], p['ln1_b'])
        ff = jax.nn.relu(x1 @ p['lin1_w'].T + p['lin1_b'])
        ff = ff @ p['lin2_w'].T + p['lin2_b']
        x = _layer_norm_ref(x1 + ff, p['ln2_g'], p['ln2_b'])
    return x @ params['dec_w'].T + params['dec_b']


# ---------------------------------- main -------------------------------------

if __name__ == "__main__":
    INPUT_DIM = 4          # AIS feature dim
    MODEL_DIM = 32
    NUM_HEADS = 4
    NUM_LAYERS = 2
    FFN_DIM = 2048         # nn.TransformerEncoderLayer default dim_feedforward
    S, B = 8, 2

    key = jax.random.PRNGKey(0)
    k_param, k_data = jax.random.split(key)
    params = init_params(k_param, INPUT_DIM, MODEL_DIM, NUM_HEADS,
                         NUM_LAYERS, FFN_DIM)
    packed = pack_params(params, NUM_HEADS)
    src = jax.random.normal(k_data, (S, B, INPUT_DIM), dtype=jnp.float32)

    out = transformer_ais_forward(packed, src)
    out = jax.block_until_ready(out)

    assert out.shape == (S, B, INPUT_DIM)
    assert bool(jnp.all(jnp.isfinite(out)))

    # sanity-check against a pure-JAX reference (generous tol: bf16 FFN weights
    # + approximate softmax reciprocal).
    ref = reference_forward(params, src, NUM_HEADS)
    max_err = float(jnp.max(jnp.abs(out - ref)))
    assert max_err < 5e-2, f"max abs err vs reference: {max_err}"

    print("KERNEL_OK")
</pallas_src>

<mosaic_0001>
module attributes {stable_mosaic.version = 11 : i64} {
  func.func @_transformer_kernel(%arg0: memref<16x4xf32, #tpu.memory_space<vmem>>, %arg1: memref<16x32xf32, #tpu.memory_space<vmem>>, %arg2: memref<4x32xf32, #tpu.memory_space<vmem>>, %arg3: memref<1x32xf32, #tpu.memory_space<vmem>>, %arg4: memref<8x8x32xf32, #tpu.memory_space<vmem>>, %arg5: memref<8x1x8xf32, #tpu.memory_space<vmem>>, %arg6: memref<8x8x32xf32, #tpu.memory_space<vmem>>, %arg7: memref<8x1x8xf32, #tpu.memory_space<vmem>>, %arg8: memref<8x8x32xf32, #tpu.memory_space<vmem>>, %arg9: memref<8x1x8xf32, #tpu.memory_space<vmem>>, %arg10: memref<8x8x32xf32, #tpu.memory_space<vmem>>, %arg11: memref<2x1x32xf32, #tpu.memory_space<vmem>>, %arg12: memref<2x1x32xf32, #tpu.memory_space<vmem>>, %arg13: memref<2x1x32xf32, #tpu.memory_space<vmem>>, %arg14: memref<2x32x2048xbf16, #tpu.memory_space<vmem>>, %arg15: memref<2x1x2048xf32, #tpu.memory_space<vmem>>, %arg16: memref<2x32x2048xbf16, #tpu.memory_space<vmem>>, %arg17: memref<2x1x32xf32, #tpu.memory_space<vmem>>, %arg18: memref<2x1x32xf32, #tpu.memory_space<vmem>>, %arg19: memref<2x1x32xf32, #tpu.memory_space<vmem>>, %arg20: memref<4x32xf32, #tpu.memory_space<vmem>>, %arg21: memref<1x4xf32, #tpu.memory_space<vmem>>, %arg22: memref<16x4xf32, #tpu.memory_space<vmem>>, %arg23: memref<16x32xf32, #tpu.memory_space<vmem>>) attributes {dimension_semantics = [], scalar_prefetch = 0 : i64, scratch_operands = 1 : i64, tpu.core_type = #tpu.core_type<tc>} {
    %c0 = arith.constant 0 : index
    %c0_0 = arith.constant 0 : index
    %0 = vector.load %arg0[%c0, %c0_0] : memref<16x4xf32, #tpu.memory_space<vmem>>, vector<16x4xf32>
    %c0_1 = arith.constant 0 : index
    %c0_2 = arith.constant 0 : index
    %1 = vector.load %arg2[%c0_1, %c0_2] : memref<4x32xf32, #tpu.memory_space<vmem>>, vector<4x32xf32>
    %cst = arith.constant dense<0.000000e+00> : vector<16x32xf32>
    %2 = tpu.matmul %0, %1, %cst {dimension_numbers = #tpu.dot_dimension_numbers<[1], [0], [0], [1], [0, 0, 1, 1], [], []>} : vector<16x4xf32>, vector<4x32xf32>, vector<16x32xf32> -> vector<16x32xf32>
    %c0_3 = arith.constant 0 : index
    %c0_4 = arith.constant 0 : index
    %3 = vector.load %arg3[%c0_3, %c0_4] : memref<1x32xf32, #tpu.memory_space<vmem>>, vector<1x32xf32>
    %4 = vector.broadcast %3 : vector<1x32xf32> to vector<16x32xf32>
    %5 = arith.addf %2, %4 : vector<16x32xf32>
    %c0_5 = arith.constant 0 : index
    %c0_6 = arith.constant 0 : index
    %6 = vector.load %arg1[%c0_5, %c0_6] : memref<16x32xf32, #tpu.memory_space<vmem>>, vector<16x32xf32>
    %7 = arith.addf %5, %6 : vector<16x32xf32>
    %cst_7 = arith.constant 0.000000e+00 : f32
    %8 = vector.broadcast %cst_7 : f32 to vector<16x32xf32>
    %c0_8 = arith.constant 0 : index
    %c0_9 = arith.constant 0 : index
    %9 = vector.load %arg23[%c0_8, %c0_9] : memref<16x32xf32, #tpu.memory_space<vmem>>, vector<16x32xf32>
    tpu.vector_store %arg23[%c0_8, %c0_9], %8 {strides = array<i32>} : memref<16x32xf32, #tpu.memory_space<vmem>>, vector<16x32xf32>,
    %c0_10 = arith.constant 0 : index
    %c0_11 = arith.constant 0 : index
    %c0_12 = arith.constant 0 : index
    %10 = vector.load %arg4[%c0_10, %c0_11, %c0_12] : memref<8x8x32xf32, #tpu.memory_space<vmem>>, vector<1x8x32xf32>
    %11 = vector.shape_cast %10 : vector<1x8x32xf32> to vector<8x32xf32>
    %cst_13 = arith.constant dense<0.000000e+00> : vector<16x8xf32>
    %12 = tpu.matmul %7, %11, %cst_13 {dimension_numbers = #tpu.dot_dimension_numbers<[1], [1], [0], [0], [0, 0, 1, 0], [], []>} : vector<16x32xf32>, vector<8x32xf32>, vector<16x8xf32> -> vector<16x8xf32>
    %c0_14 = arith.constant 0 : index
    %c0_15 = arith.constant 0 : index
    %c0_16 = arith.constant 0 : index
    %13 = vector.load %arg5[%c0_14, %c0_15, %c0_16] : memref<8x1x8xf32, #tpu.memory_space<vmem>>, vector<1x1x8xf32>
    %14 = vector.shape_cast %13 : vector<1x1x8xf32> to vector<1x8xf32>
    %15 = vector.broadcast %14 : vector<1x8xf32> to vector<16x8xf32>
    %16 = arith.addf %12, %15 : vector<16x8xf32>
    %c0_17 = arith.constant 0 : index
    %c0_18 = arith.constant 0 : index
    %c0_19 = arith.constant 0 : index
    %17 = vector.load %arg6[%c0_17, %c0_18, %c0_19] : memref<8x8x32xf32, #tpu.memory_space<vmem>>, vector<1x8x32xf32>
    %18 = vector.shape_cast %17 : vector<1x8x32xf32> to vector<8x32xf32>
    %cst_20 = arith.constant dense<0.000000e+00> : vector<16x8xf32>
    %19 = tpu.matmul %7, %18, %cst_20 {dimension_numbers = #tpu.dot_dimension_numbers<[1], [1], [0], [0], [0, 0, 1, 0], [], []>} : vector<16x32xf32>, vector<8x32xf32>, vector<16x8xf32> -> vector<16x8xf32>
    %c0_21 = arith.constant 0 : index
    %c0_22 = arith.constant 0 : index
    %c0_23 = arith.constant 0 : index
    %20 = vector.load %arg7[%c0_21, %c0_22, %c0_23] : memref<8x1x8xf32, #tpu.memory_space<vmem>>, vector<1x1x8xf32>
    %21 = vector.shape_cast %20 : vector<1x1x8xf32> to vector<1x8xf32>
    %22 = vector.broadcast %21 : vector<1x8xf32> to vector<16x8xf32>
    %23 = arith.addf %19, %22 : vector<16x8xf32>
    %c0_24 = arith.constant 0 : index
    %c0_25 = arith.constant 0 : index
    %c0_26 = arith.constant 0 : index
    %24 = vector.load %arg8[%c0_24, %c0_25, %c0_26] : memref<8x8x32xf32, #tpu.memory_space<vmem>>, vector<1x8x32xf32>
    %25 = vector.shape_cast %24 : vector<1x8x32xf32> to vector<8x32xf32>
    %cst_27 = arith.constant dense<0.000000e+00> : vector<16x8xf32>
    %26 = tpu.matmul %7, %25, %cst_27 {dimension_numbers = #tpu.dot_dimension_numbers<[1], [1], [0], [0], [0, 0, 1, 0], [], []>} : vector<16x32xf32>, vector<8x32xf32>, vector<16x8xf32> -> vector<16x8xf32>
    %c0_28 = arith.constant 0 : index
    %c0_29 = arith.constant 0 : index
    %c0_30 = arith.constant 0 : index
    %27 = vector.load %arg9[%c0_28, %c0_29, %c0_30] : memref<8x1x8xf32, #tpu.memory_space<vmem>>, vector<1x1x8xf32>
    %28 = vector.shape_cast %27 : vector<1x1x8xf32> to vector<1x8xf32>
    %29 = vector.broadcast %28 : vector<1x8xf32> to vector<16x8xf32>
    %30 = arith.addf %26, %29 : vector<16x8xf32>
    %c0_31 = arith.constant 0 : index
    %c0_32 = arith.constant 0 : index
    %c0_33 = arith.constant 0 : index
    %31 = vector.load %arg10[%c0_31, %c0_32, %c0_33] : memref<8x8x32xf32, #tpu.memory_space<vmem>>, vector<1x8x32xf32>
    %32 = vector.shape_cast %31 : vector<1x8x32xf32> to vector<8x32xf32>
    %33 = vector.extract_strided_slice %16 {offsets = [0, 0], sizes = [8, 8], strides = [1, 1]} : vector<16x8xf32> to vector<8x8xf32>
    %34 = vector.extract_strided_slice %23 {offsets = [0, 0], sizes = [8, 8], strides = [1, 1]} : vector<16x8xf32> to vector<8x8xf32>
    %35 = vector.extract_strided_slice %30 {offsets = [0, 0], sizes = [8, 8], strides = [1, 1]} : vector<16x8xf32> to vector<8x8xf32>
    %cst_34 = arith.constant dense<0.000000e+00> : vector<8x8xf32>
    %36 = tpu.matmul %33, %34, %cst_34 {dimension_numbers = #tpu.dot_dimension_numbers<[1], [1], [0], [0], [0, 0, 1, 0], [], []>} : vector<8x8xf32>, vector<8x8xf32>, vector<8x8xf32> -> vector<8x8xf32>
    %cst_35 = arith.constant 0.353553385 : f32
    %37 = vector.broadcast %cst_35 : f32 to vector<8x8xf32>
    %38 = arith.mulf %36, %37 : vector<8x8xf32>
    %cst_36 = arith.constant dense<0xFF800000> : vector<8xf32>
    %39 = vector.multi_reduction <maximumf>, %38, %cst_36 [1] : vector<8x8xf32> to vector<8xf32>
    %40 = vector.shape_cast %39 : vector<8xf32> to vector<8x1xf32>
    %41 = vector.broadcast %40 : vector<8x1xf32> to vector<8x8xf32>
    %42 = arith.subf %38, %41 : vector<8x8xf32>
    %43 = math.exp %42 : vector<8x8xf32>
    %cst_37 = arith.constant dense<0.000000e+00> : vector<8xf32>
    %44 = vector.multi_reduction <add>, %43, %cst_37 [1] : vector<8x8xf32> to vector<8xf32>
    %45 = vector.shape_cast %44 : vector<8xf32> to vector<8x1xf32>
    %46 = tpu.reciprocal %45 {approx = true} : vector<8x1xf32> -> vector<8x1xf32>
    %47 = vector.broadcast %46 : vector<8x1xf32> to vector<8x8xf32>
    %48 = arith.mulf %43, %47 : vector<8x8xf32>
    %cst_38 = arith.constant dense<0.000000e+00> : vector<8x8xf32>
    %49 = tpu.matmul %48, %35, %cst_38 {dimension_numbers = #tpu.dot_dimension_numbers<[1], [0], [0], [1], [0, 0, 1, 1], [], []>} : vector<8x8xf32>, vector<8x8xf32>, vector<8x8xf32> -> vector<8x8xf32>
    %c0_39 = arith.constant 0 : index
    %c0_40 = arith.constant 0 : index
    %50 = vector.load %arg23[%c0_39, %c0_40] : memref<16x32xf32, #tpu.memory_space<vmem>>, vector<8x32xf32>
    %cst_41 = arith.constant dense<0.000000e+00> : vector<8x32xf32>
    %51 = tpu.matmul %49, %32, %cst_41 {dimension_numbers = #tpu.dot_dimension_numbers<[1], [0], [0], [1], [0, 0, 1, 1], [], []>} : vector<8x8xf32>, vector<8x32xf32>, vector<8x32xf32> -> vector<8x32xf32>
    %52 = arith.addf %50, %51 : vector<8x32xf32>
    %c0_42 = arith.constant 0 : index
    %c0_43 = arith.constant 0 : index
    %53 = vector.load %arg23[%c0_42, %c0_43] : memref<16x32xf32, #tpu.memory_space<vmem>>, vector<8x32xf32>
    tpu.vector_store %arg23[%c0_42, %c0_43], %52 {strides = array<i32>} : memref<16x32xf32, #tpu.memory_space<vmem>>, vector<8x32xf32>,
    %54 = vector.extract_strided_slice %16 {offsets = [8, 0], sizes = [8, 8], strides = [1, 1]} : vector<16x8xf32> to vector<8x8xf32>
    %55 = vector.extract_strided_slice %23 {offsets = [8, 0], sizes = [8, 8], strides = [1, 1]} : vector<16x8xf32> to vector<8x8xf32>
    %56 = vector.extract_strided_slice %30 {offsets = [8, 0], sizes = [8, 8], strides = [1, 1]} : vector<16x8xf32> to vector<8x8xf32>
    %cst_44 = arith.constant dense<0.000000e+00> : vector<8x8xf32>
    %57 = tpu.matmul %54, %55, %cst_44 {dimension_numbers = #tpu.dot_dimension_numbers<[1], [1], [0], [0], [0, 0, 1, 0], [], []>} : vector<8x8xf32>, vector<8x8xf32>, vector<8x8xf32> -> vector<8x8xf32>
    %cst_45 = arith.constant 0.353553385 : f32
    %58 = vector.broadcast %cst_45 : f32 to vector<8x8xf32>
    %59 = arith.mulf %57, %58 : vector<8x8xf32>
    %cst_46 = arith.constant dense<0xFF800000> : vector<8xf32>
    %60 = vector.multi_reduction <maximumf>, %59, %cst_46 [1] : vector<8x8xf32> to vector<8xf32>
    %61 = vector.shape_cast %60 : vector<8xf32> to vector<8x1xf32>
    %62 = vector.broadcast %61 : vector<8x1xf32> to vector<8x8xf32>
    %63 = arith.subf %59, %62 : vector<8x8xf32>
    %64 = math.exp %63 : vector<8x8xf32>
    %cst_47 = arith.constant dense<0.000000e+00> : vector<8xf32>
    %65 = vector.multi_reduction <add>, %64, %cst_47 [1] : vector<8x8xf32> to vector<8xf32>
    %66 = vector.shape_cast %65 : vector<8xf32> to vector<8x1xf32>
    %67 = tpu.reciprocal %66 {approx = true} : vector<8x1xf32> -> vector<8x1xf32>
    %68 = vector.broadcast %67 : vector<8x1xf32> to vector<8x8xf32>
    %69 = arith.mulf %64, %68 : vector<8x8xf32>
    %cst_48 = arith.constant dense<0.000000e+00> : vector<8x8xf32>
    %70 = tpu.matmul %69, %56, %cst_48 {dimension_numbers = #tpu.dot_dimension_numbers<[1], [0], [0], [1], [0, 0, 1, 1], [], []>} : vector<8x8xf32>, vector<8x8xf32>, vector<8x8xf32> -> vector<8x8xf32>
    %c8 = arith.constant 8 : index
    %c0_49 = arith.constant 0 : index
    %71 = vector.load %arg23[%c8, %c0_49] : memref<16x32xf32, #tpu.memory_space<vmem>>, vector<8x32xf32>
    %cst_50 = arith.constant dense<0.000000e+00> : vector<8x32xf32>
    %72 = tpu.matmul %70, %32, %cst_50 {dimension_numbers = #tpu.dot_dimension_numbers<[1], [0], [0], [1], [0, 0, 1, 1], [], []>} : vector<8x8xf32>, vector<8x32xf32>, vector<8x32xf32> -> vector<8x32xf32>
    %73 = arith.addf %71, %72 : vector<8x32xf32>
    %c8_51 = arith.constant 8 : index
    %c0_52 = arith.constant 0 : index
    %74 = vector.load %arg23[%c8_51, %c0_52] : memref<16x32xf32, #tpu.memory_space<vmem>>, vector<8x32xf32>
    tpu.vector_store %arg23[%c8_51, %c0_52], %73 {strides = array<i32>} : memref<16x32xf32, #tpu.memory_space<vmem>>, vector<8x32xf32>,
    %c1 = arith.constant 1 : index
    %c0_53 = arith.constant 0 : index
    %c0_54 = arith.constant 0 : index
    %75 = vector.load %arg4[%c1, %c0_53, %c0_54] : memref<8x8x32xf32, #tpu.memory_space<vmem>>, vector<1x8x32xf32>
    %76 = vector.shape_cast %75 : vector<1x8x32xf32> to vector<8x32xf32>
    %cst_55 = arith.constant dense<0.000000e+00> : vector<16x8xf32>
    %77 = tpu.matmul %7, %76, %cst_55 {dimension_numbers = #tpu.dot_dimension_numbers<[1], [1], [0], [0], [0, 0, 1, 0], [], []>} : vector<16x32xf32>, vector<8x32xf32>, vector<16x8xf32> -> vector<16x8xf32>
    %c1_56 = arith.constant 1 : index
    %c0_57 = arith.constant 0 : index
    %c0_58 = arith.constant 0 : index
    %78 = vector.load %arg5[%c1_56, %c0_57, %c0_58] : memref<8x1x8xf32, #tpu.memory_space<vmem>>, vector<1x1x8xf32>
    %79 = vector.shape_cast %78 : vector<1x1x8xf32> to vector<1x8xf32>
    %80 = vector.broadcast %79 : vector<1x8xf32> to vector<16x8xf32>
    %81 = arith.addf %77, %80 : vector<16x8xf32>
    %c1_59 = arith.constant 1 : index
    %c0_60 = arith.constant 0 : index
    %c0_61 = arith.constant 0 : index
    %82 = vector.load %arg6[%c1_59, %c0_60, %c0_61] : memref<8x8x32xf32, #tpu.memory_space<vmem>>, vector<1x8x32xf32>
    %83 = vector.shape_cast %82 : vector<1x8x32xf32> to vector<8x32xf32>
    %cst_62 = arith.constant dense<0.000000e+00> : vector<16x8xf32>
    %84 = tpu.matmul %7, %83, %cst_62 {dimension_numbers = #tpu.dot_dimension_numbers<[1], [1], [0], [0], [0, 0, 1, 0], [], []>} : vector<16x32xf32>, vector<8x32xf32>, vector<16x8xf32> -> vector<16x8xf32>
    %c1_63 = arith.constant 1 : index
    %c0_64 = arith.constant 0 : index
    %c0_65 = arith.constant 0 : index
    %85 = vector.load %arg7[%c1_63, %c0_64, %c0_65] : memref<8x1x8xf32, #tpu.memory_space<vmem>>, vector<1x1x8xf32>
    %86 = vector.shape_cast %85 : vector<1x1x8xf32> to vector<1x8xf32>
    %87 = vector.broadcast %86 : vector<1x8xf32> to vector<16x8xf32>
    %88 = arith.addf %84, %87 : vector<16x8xf32>
    %c1_66 = arith.constant 1 : index
    %c0_67 = arith.constant 0 : index
    %c0_68 = arith.constant 0 : index
    %89 = vector.load %arg8[%c1_66, %c0_67, %c0_68] : memref<8x8x32xf32, #tpu.memory_space<vmem>>, vector<1x8x32xf32>
    %90 = vector.shape_cast %89 : vector<1x8x32xf32> to vector<8x32xf32>
    %cst_69 = arith.constant dense<0.000000e+00> : vector<16x8xf32>
    %91 = tpu.matmul %7, %90, %cst_69 {dimension_numbers = #tpu.dot_dimension_numbers<[1], [1], [0], [0], [0, 0, 1, 0], [], []>} : vector<16x32xf32>, vector<8x32xf32>, vector<16x8xf32> -> vector<16x8xf32>
    %c1_70 = arith.constant 1 : index
    %c0_71 = arith.constant 0 : index
    %c0_72 = arith.constant 0 : index
    %92 = vector.load %arg9[%c1_70, %c0_71, %c0_72] : memref<8x1x8xf32, #tpu.memory_space<vmem>>, vector<1x1x8xf32>
    %93 = vector.shape_cast %92 : vector<1x1x8xf32> to vector<1x8xf32>
    %94 = vector.broadcast %93 : vector<1x8xf32> to vector<16x8xf32>
    %95 = arith.addf %91, %94 : vector<16x8xf32>
    %c1_73 = arith.constant 1 : index
    %c0_74 = arith.constant 0 : index
    %c0_75 = arith.constant 0 : index
    %96 = vector.load %arg10[%c1_73, %c0_74, %c0_75] : memref<8x8x32xf32, #tpu.memory_space<vmem>>, vector<1x8x32xf32>
    %97 = vector.shape_cast %96 : vector<1x8x32xf32> to vector<8x32xf32>
    %98 = vector.extract_strided_slice %81 {offsets = [0, 0], sizes = [8, 8], strides = [1, 1]} : vector<16x8xf32> to vector<8x8xf32>
    %99 = vector.extract_strided_slice %88 {offsets = [0, 0], sizes = [8, 8], strides = [1, 1]} : vector<16x8xf32> to vector<8x8xf32>
    %100 = vector.extract_strided_slice %95 {offsets = [0, 0], sizes = [8, 8], strides = [1, 1]} : vector<16x8xf32> to vector<8x8xf32>
    %cst_76 = arith.constant dense<0.000000e+00> : vector<8x8xf32>
    %101 = tpu.matmul %98, %99, %cst_76 {dimension_numbers = #tpu.dot_dimension_numbers<[1], [1], [0], [0], [0, 0, 1, 0], [], []>} : vector<8x8xf32>, vector<8x8xf32>, vector<8x8xf32> -> vector<8x8xf32>
    %cst_77 = arith.constant 0.353553385 : f32
    %102 = vector.broadcast %cst_77 : f32 to vector<8x8xf32>
    %103 = arith.mulf %101, %102 : vector<8x8xf32>
    %cst_78 = arith.constant dense<0xFF800000> : vector<8xf32>
    %104 = vector.multi_reduction <maximumf>, %103, %cst_78 [1] : vector<8x8xf32> to vector<8xf32>
    %105 = vector.shape_cast %104 : vector<8xf32> to vector<8x1xf32>
    %106 = vector.broadcast %105 : vector<8x1xf32> to vector<8x8xf32>
    %107 = arith.subf %103, %106 : vector<8x8xf32>
    %108 = math.exp %107 : vector<8x8xf32>
    %cst_79 = arith.constant dense<0.000000e+00> : vector<8xf32>
    %109 = vector.multi_reduction <add>, %108, %cst_79 [1] : vector<8x8xf32> to vector<8xf32>
    %110 = vector.shape_cast %109 : vector<8xf32> to vector<8x1xf32>
    %111 = tpu.reciprocal %110 {approx = true} : vector<8x1xf32> -> vector<8x1xf32>
    %112 = vector.broadcast %111 : vector<8x1xf32> to vector<8x8xf32>
    %113 = arith.mulf %108, %112 : vector<8x8xf32>
    %cst_80 = arith.constant dense<0.000000e+00> : vector<8x8xf32>
    %114 = tpu.matmul %113, %100, %cst_80 {dimension_numbers = #tpu.dot_dimension_numbers<[1], [0], [0], [1], [0, 0, 1, 1], [], []>} : vector<8x8xf32>, vector<8x8xf32>, vector<8x8xf32> -> vector<8x8xf32>
    %c0_81 = arith.constant 0 : index
    %c0_82 = arith.constant 0 : index
    %115 = vector.load %arg23[%c0_81, %c0_82] : memref<16x32xf32, #tpu.memory_space<vmem>>, vector<8x32xf32>
    %cst_83 = arith.constant dense<0.000000e+00> : vector<8x32xf32>
    %116 = tpu.matmul %114, %97, %cst_83 {dimension_numbers = #tpu.dot_dimension_numbers<[1], [0], [0], [1], [0, 0, 1, 1], [], []>} : vector<8x8xf32>, vector<8x32xf32>, vector<8x32xf32> -> vector<8x32xf32>
    %117 = arith.addf %115, %116 : vector<8x32xf32>
    %c0_84 = arith.constant 0 : index
    %c0_85 = arith.constant 0 : index
    %118 = vector.load %arg23[%c0_84, %c0_85] : memref<16x32xf32, #tpu.memory_space<vmem>>, vector<8x32xf32>
    tpu.vector_store %arg23[%c0_84, %c0_85], %117 {strides = array<i32>} : memref<16x32xf32, #tpu.memory_space<vmem>>, vector<8x32xf32>,
    %119 = vector.extract_strided_slice %81 {offsets = [8, 0], sizes = [8, 8], strides = [1, 1]} : vector<16x8xf32> to vector<8x8xf32>
    %120 = vector.extract_strided_slice %88 {offsets = [8, 0], sizes = [8, 8], strides = [1, 1]} : vector<16x8xf32> to vector<8x8xf32>
    %121 = vector.extract_strided_slice %95 {offsets = [8, 0], sizes = [8, 8], strides = [1, 1]} : vector<16x8xf32> to vector<8x8xf32>
    %cst_86 = arith.constant dense<0.000000e+00> : vector<8x8xf32>
    %122 = tpu.matmul %119, %120, %cst_86 {dimension_numbers = #tpu.dot_dimension_numbers<[1], [1], [0], [0], [0, 0, 1, 0], [], []>} : vector<8x8xf32>, vector<8x8xf32>, vector<8x8xf32> -> vector<8x8xf32>
    %cst_87 = arith.constant 0.353553385 : f32
    %123 = vector.broadcast %cst_87 : f32 to vector<8x8xf32>
    %124 = arith.mulf %122, %123 : vector<8x8xf32>
    %cst_88 = arith.constant dense<0xFF800000> : vector<8xf32>
    %125 = vector.multi_reduction <maximumf>, %124, %cst_88 [1] : vector<8x8xf32> to vector<8xf32>
    %126 = vector.shape_cast %125 : vector<8xf32> to vector<8x1xf32>
    %127 = vector.broadcast %126 : vector<8x1xf32> to vector<8x8xf32>
    %128 = arith.subf %124, %127 : vector<8x8xf32>
    %129 = math.exp %128 : vector<8x8xf32>
    %cst_89 = arith.constant dense<0.000000e+00> : vector<8xf32>
    %130 = vector.multi_reduction <add>, %129, %cst_89 [1] : vector<8x8xf32> to vector<8xf32>
    %131 = vector.shape_cast %130 : vector<8xf32> to vector<8x1xf32>
    %132 = tpu.reciprocal %131 {approx = true} : vector<8x1xf32> -> vector<8x1xf32>
    %133 = vector.broadcast %132 : vector<8x1xf32> to vector<8x8xf32>
    %134 = arith.mulf %129, %133 : vector<8x8xf32>
    %cst_90 = arith.constant dense<0.000000e+00> : vector<8x8xf32>
    %135 = tpu.matmul %134, %121, %cst_90 {dimension_numbers = #tpu.dot_dimension_numbers<[1], [0], [0], [1], [0, 0, 1, 1], [], []>} : vector<8x8xf32>, vector<8x8xf32>, vector<8x8xf32> -> vector<8x8xf32>
    %c8_91 = arith.constant 8 : index
    %c0_92 = arith.constant 0 : index
    %136 = vector.load %arg23[%c8_91, %c0_92] : memref<16x32xf32, #tpu.memory_space<vmem>>, vector<8x32xf32>
    %cst_93 = arith.constant dense<0.000000e+00> : vector<8x32xf32>
    %137 = tpu.matmul %135, %97, %cst_93 {dimension_numbers = #tpu.dot_dimension_numbers<[1], [0], [0], [1], [0, 0, 1, 1], [], []>} : vector<8x8xf32>, vector<8x32xf32>, vector<8x32xf32> -> vector<8x32xf32>
    %138 = arith.addf %136, %137 : vector<8x32xf32>
    %c8_94 = arith.constant 8 : index
    %c0_95 = arith.constant 0 : index
    %139 = vector.load %arg23[%c8_94, %c0_95] : memref<16x32xf32, #tpu.memory_space<vmem>>, vector<8x32xf32>
    tpu.vector_store %arg23[%c8_94, %c0_95], %138 {strides = array<i32>} : memref<16x32xf32, #tpu.memory_space<vmem>>, vector<8x32xf32>,
    %c2 = arith.constant 2 : index
    %c0_96 = arith.constant 0 : index
    %c0_97 = arith.constant 0 : index
    %140 = vector.load %arg4[%c2, %c0_96, %c0_97] : memref<8x8x32xf32, #tpu.memory_space<vmem>>, vector<1x8x32xf32>
    %141 = vector.shape_cast %140 : vector<1x8x32xf32> to vector<8x32xf32>
    %cst_98 = arith.constant dense<0.000000e+00> : vector<16x8xf32>
    %142 = tpu.matmul %7, %141, %cst_98 {dimension_numbers = #tpu.dot_dimension_numbers<[1], [1], [0], [0], [0, 0, 1, 0], [], []>} : vector<16x32xf32>, vector<8x32xf32>, vector<16x8xf32> -> vector<16x8xf32>
    %c2_99 = arith.constant 2 : index
    %c0_100 = arith.constant 0 : index
    %c0_101 = arith.constant 0 : index
    %143 = vector.load %arg5[%c2_99, %c0_100, %c0_101] : memref<8x1x8xf32, #tpu.memory_space<vmem>>, vector<1x1x8xf32>
    %144 = vector.shape_cast %143 : vector<1x1x8xf32> to vector<1x8xf32>
    %145 = vector.broadcast %144 : vector<1x8xf32> to vector<16x8xf32>
    %146 = arith.addf %142, %145 : vector<16x8xf32>
    %c2_102 = arith.constant 2 : index
    %c0_103 = arith.constant 0 : index
    %c0_104 = arith.constant 0 : index
    %147 = vector.load %arg6[%c2_102, %c0_103, %c0_104] : memref<8x8x32xf32, #tpu.memory_space<vmem>>, vector<1x8x32xf32>
    %148 = vector.shape_cast %147 : vector<1x8x32xf32> to vector<8x32xf32>
    %cst_105 = arith.constant dense<0.000000e+00> : vector<16x8xf32>
    %149 = tpu.matmul %7, %148, %cst_105 {dimension_numbers = #tpu.dot_dimension_numbers<[1], [1], [0], [0], [0, 0, 1, 0], [], []>} : vector<16x32xf32>, vector<8x32xf32>, vector<16x8xf32> -> vector<16x8xf32>
    %c2_106 = arith.constant 2 : index
    %c0_107 = arith.constant 0 : index
    %c0_108 = arith.constant 0 : index
    %150 = vector.load %arg7[%c2_106, %c0_107, %c0_108] : memref<8x1x8xf32, #tpu.memory_space<vmem>>, vector<1x1x8xf32>
    %151 = vector.shape_cast %150 : vector<1x1x8xf32> to vector<1x8xf32>
    %152 = vector.broadcast %151 : vector<1x8xf32> to vector<16x8xf32>
    %153 = arith.addf %149, %152 : vector<16x8xf32>
    %c2_109 = arith.constant 2 : index
    %c0_110 = arith.constant 0 : index
    %c0_111 = arith.constant 0 : index
    %154 = vector.load %arg8[%c2_109, %c0_110, %c0_111] : memref<8x8x32xf32, #tpu.memory_space<vmem>>, vector<1x8x32xf32>
    %155 = vector.shape_cast %154 : vector<1x8x32xf32> to vector<8x32xf32>
    %cst_112 = arith.constant dense<0.000000e+00> : vector<16x8xf32>
    %156 = tpu.matmul %7, %155, %cst_112 {dimension_numbers = #tpu.dot_dimension_numbers<[1], [1], [0], [0], [0, 0, 1, 0], [], []>} : vector<16x32xf32>, vector<8x32xf32>, vector<16x8xf32> -> vector<16x8xf32>
    %c2_113 = arith.constant 2 : index
    %c0_114 = arith.constant 0 : index
    %c0_115 = arith.constant 0 : index
    %157 = vector.load %arg9[%c2_113, %c0_114, %c0_115] : memref<8x1x8xf32, #tpu.memory_space<vmem>>, vector<1x1x8xf32>
    %158 = vector.shape_cast %157 : vector<1x1x8xf32> to vector<1x8xf32>
    %159 = vector.broadcast %158 : vector<1x8xf32> to vector<16x8xf32>
    %160 = arith.addf %156, %159 : vector<16x8xf32>
    %c2_116 = arith.constant 2 : index
    %c0_117 = arith.constant 0 : index
    %c0_118 = arith.constant 0 : index
    %161 = vector.load %arg10[%c2_116, %c0_117, %c0_118] : memref<8x8x32xf32, #tpu.memory_space<vmem>>, vector<1x8x32xf32>
    %162 = vector.shape_cast %161 : vector<1x8x32xf32> to vector<8x32xf32>
    %163 = vector.extract_strided_slice %146 {offsets = [0, 0], sizes = [8, 8], strides = [1, 1]} : vector<16x8xf32> to vector<8x8xf32>
    %164 = vector.extract_strided_slice %153 {offsets = [0, 0], sizes = [8, 8], strides = [1, 1]} : vector<16x8xf32> to vector<8x8xf32>
    %165 = vector.extract_strided_slice %160 {offsets = [0, 0], sizes = [8, 8], strides = [1, 1]} : vector<16x8xf32> to vector<8x8xf32>
    %cst_119 = arith.constant dense<0.000000e+00> : vector<8x8xf32>
    %166 = tpu.matmul %163, %164, %cst_119 {dimension_numbers = #tpu.dot_dimension_numbers<[1], [1], [0], [0], [0, 0, 1, 0], [], []>} : vector<8x8xf32>, vector<8x8xf32>, vector<8x8xf32> -> vector<8x8xf32>
    %cst_120 = arith.constant 0.353553385 : f32
    %167 = vector.broadcast %cst_120 : f32 to vector<8x8xf32>
    %168 = arith.mulf %166, %167 : vector<8x8xf32>
    %cst_121 = arith.constant dense<0xFF800000> : vector<8xf32>
    %169 = vector.multi_reduction <maximumf>, %168, %cst_121 [1] : vector<8x8xf32> to vector<8xf32>
    %170 = vector.shape_cast %169 : vector<8xf32> to vector<8x1xf32>
    %171 = vector.broadcast %170 : vector<8x1xf32> to vector<8x8xf32>
    %172 = arith.subf %168, %171 : vector<8x8xf32>
    %173 = math.exp %172 : vector<8x8xf32>
    %cst_122 = arith.constant dense<0.000000e+00> : vector<8xf32>
    %174 = vector.multi_reduction <add>, %173, %cst_122 [1] : vector<8x8xf32> to vector<8xf32>
    %175 = vector.shape_cast %174 : vector<8xf32> to vector<8x1xf32>
    %176 = tpu.reciprocal %175 {approx = true} : vector<8x1xf32> -> vector<8x1xf32>
    %177 = vector.broadcast %176 : vector<8x1xf32> to vector<8x8xf32>
    %178 = arith.mulf %173, %177 : vector<8x8xf32>
    %cst_123 = arith.constant dense<0.000000e+00> : vector<8x8xf32>
    %179 = tpu.matmul %178, %165, %cst_123 {dimension_numbers = #tpu.dot_dimension_numbers<[1], [0], [0], [1], [0, 0, 1, 1], [], []>} : vector<8x8xf32>, vector<8x8xf32>, vector<8x8xf32> -> vector<8x8xf32>
    %c0_124 = arith.constant 0 : index
    %c0_125 = arith.constant 0 : index
    %180 = vector.load %arg23[%c0_124, %c0_125] : memref<16x32xf32, #tpu.memory_space<vmem>>, vector<8x32xf32>
    %cst_126 = arith.constant dense<0.000000e+00> : vector<8x32xf32>
    %181 = tpu.matmul %179, %162, %cst_126 {dimension_numbers = #tpu.dot_dimension_numbers<[1], [0], [0], [1], [0, 0, 1, 1], [], []>} : vector<8x8xf32>, vector<8x32xf32>, vector<8x32xf32> -> vector<8x32xf32>
    %182 = arith.addf %180, %181 : vector<8x32xf32>
    %c0_127 = arith.constant 0 : index
    %c0_128 = arith.constant 0 : index
    %183 = vector.load %arg23[%c0_127, %c0_128] : memref<16x32xf32, #tpu.memory_space<vmem>>, vector<8x32xf32>
    tpu.vector_store %arg23[%c0_127, %c0_128], %182 {strides = array<i32>} : memref<16x32xf32, #tpu.memory_space<vmem>>, vector<8x32xf32>,
    %184 = vector.extract_strided_slice %146 {offsets = [8, 0], sizes = [8, 8], strides = [1, 1]} : vector<16x8xf32> to vector<8x8xf32>
    %185 = vector.extract_strided_slice %153 {offsets = [8, 0], sizes = [8, 8], strides = [1, 1]} : vector<16x8xf32> to vector<8x8xf32>
    %186 = vector.extract_strided_slice %160 {offsets = [8, 0], sizes = [8, 8], strides = [1, 1]} : vector<16x8xf32> to vector<8x8xf32>
    %cst_129 = arith.constant dense<0.000000e+00> : vector<8x8xf32>
    %187 = tpu.matmul %184, %185, %cst_129 {dimension_numbers = #tpu.dot_dimension_numbers<[1], [1], [0], [0], [0, 0, 1, 0], [], []>} : vector<8x8xf32>, vector<8x8xf32>, vector<8x8xf32> -> vector<8x8xf32>
    %cst_130 = arith.constant 0.353553385 : f32
    %188 = vector.broadcast %cst_130 : f32 to vector<8x8xf32>
    %189 = arith.mulf %187, %188 : vector<8x8xf32>
    %cst_131 = arith.constant dense<0xFF800000> : vector<8xf32>
    %190 = vector.multi_reduction <maximumf>, %189, %cst_131 [1] : vector<8x8xf32> to vector<8xf32>
    %191 = vector.shape_cast %190 : vector<8xf32> to vector<8x1xf32>
    %192 = vector.broadcast %191 : vector<8x1xf32> to vector<8x8xf32>
    %193 = arith.subf %189, %192 : vector<8x8xf32>
    %194 = math.exp %193 : vector<8x8xf32>
    %cst_132 = arith.constant dense<0.000000e+00> : vector<8xf32>
    %195 = vector.multi_reduction <add>, %194, %cst_132 [1] : vector<8x8xf32> to vector<8xf32>
    %196 = vector.shape_cast %195 : vector<8xf32> to vector<8x1xf32>
    %197 = tpu.reciprocal %196 {approx = true} : vector<8x1xf32> -> vector<8x1xf32>
    %198 = vector.broadcast %197 : vector<8x1xf32> to vector<8x8xf32>
    %199 = arith.mulf %194, %198 : vector<8x8xf32>
    %cst_133 = arith.constant dense<0.000000e+00> : vector<8x8xf32>
    %200 = tpu.matmul %199, %186, %cst_133 {dimension_numbers = #tpu.dot_dimension_numbers<[1], [0], [0], [1], [0, 0, 1, 1], [], []>} : vector<8x8xf32>, vector<8x8xf32>, vector<8x8xf32> -> vector<8x8xf32>
    %c8_134 = arith.constant 8 : index
    %c0_135 = arith.constant 0 : index
    %201 = vector.load %arg23[%c8_134, %c0_135] : memref<16x32xf32, #tpu.memory_space<vmem>>, vector<8x32xf32>
    %cst_136 = arith.constant dense<0.000000e+00> : vector<8x32xf32>
    %202 = tpu.matmul %200, %162, %cst_136 {dimension_numbers = #tpu.dot_dimension_numbers<[1], [0], [0], [1], [0, 0, 1, 1], [], []>} : vector<8x8xf32>, vector<8x32xf32>, vector<8x32xf32> -> vector<8x32xf32>
    %203 = arith.addf %201, %202 : vector<8x32xf32>
    %c8_137 = arith.constant 8 : index
    %c0_138 = arith.constant 0 : index
    %204 = vector.load %arg23[%c8_137, %c0_138] : memref<16x32xf32, #tpu.memory_space<vmem>>, vector<8x32xf32>
    tpu.vector_store %arg23[%c8_137, %c0_138], %203 {strides = array<i32>} : memref<16x32xf32, #tpu.memory_space<vmem>>, vector<8x32xf32>,
    %c3 = arith.constant 3 : index
    %c0_139 = arith.constant 0 : index
    %c0_140 = arith.constant 0 : index
    %205 = vector.load %arg4[%c3, %c0_139, %c0_140] : memref<8x8x32xf32, #tpu.memory_space<vmem>>, vector<1x8x32xf32>
    %206 = vector.shape_cast %205 : vector<1x8x32xf32> to vector<8x32xf32>
    %cst_141 = arith.constant dense<0.000000e+00> : vector<16x8xf32>
    %207 = tpu.matmul %7, %206, %cst_141 {dimension_numbers = #tpu.dot_dimension_numbers<[1], [1], [0], [0], [0, 0, 1, 0], [], []>} : vector<16x32xf32>, vector<8x32xf32>, vector<16x8xf32> -> vector<16x8xf32>
    %c3_142 = arith.constant 3 : index
    %c0_143 = arith.constant 0 : index
    %c0_144 = arith.constant 0 : index
    %208 = vector.load %arg5[%c3_142, %c0_143, %c0_144] : memref<8x1x8xf32, #tpu.memory_space<vmem>>, vector<1x1x8xf32>
    %209 = vector.shape_cast %208 : vector<1x1x8xf32> to vector<1x8xf32>
    %210 = vector.broadcast %209 : vector<1x8xf32> to vector<16x8xf32>
    %211 = arith.addf %207, %210 : vector<16x8xf32>
    %c3_145 = arith.constant 3 : index
    %c0_146 = arith.constant 0 : index
    %c0_147 = arith.constant 0 : index
    %212 = vector.load %arg6[%c3_145, %c0_146, %c0_147] : memref<8x8x32xf32, #tpu.memory_space<vmem>>, vector<1x8x32xf32>
    %213 = vector.shape_cast %212 : vector<1x8x32xf32> to vector<8x32xf32>
    %cst_148 = arith.constant dense<0.000000e+00> : vector<16x8xf32>
    %214 = tpu.matmul %7, %213, %cst_148 {dimension_numbers = #tpu.dot_dimension_numbers<[1], [1], [0], [0], [0, 0, 1, 0], [], []>} : vector<16x32xf32>, vector<8x32xf32>, vector<16x8xf32> -> vector<16x8xf32>
    %c3_149 = arith.constant 3 : index
    %c0_150 = arith.constant 0 : index
    %c0_151 = arith.constant 0 : index
    %215 = vector.load %arg7[%c3_149, %c0_150, %c0_151] : memref<8x1x8xf32, #tpu.memory_space<vmem>>, vector<1x1x8xf32>
    %216 = vector.shape_cast %215 : vector<1x1x8xf32> to vector<1x8xf32>
    %217 = vector.broadcast %216 : vector<1x8xf32> to vector<16x8xf32>
    %218 = arith.addf %214, %217 : vector<16x8xf32>
    %c3_152 = arith.constant 3 : index
    %c0_153 = arith.constant 0 : index
    %c0_154 = arith.constant 0 : index
    %219 = vector.load %arg8[%c3_152, %c0_153, %c0_154] : memref<8x8x32xf32, #tpu.memory_space<vmem>>, vector<1x8x32xf32>
    %220 = vector.shape_cast %219 : vector<1x8x32xf32> to vector<8x32xf32>
    %cst_155 = arith.constant dense<0.000000e+00> : vector<16x8xf32>
    %221 = tpu.matmul %7, %220, %cst_155 {dimension_numbers = #tpu.dot_dimension_numbers<[1], [1], [0], [0], [0, 0, 1, 0], [], []>} : vector<16x32xf32>, vector<8x32xf32>, vector<16x8xf32> -> vector<16x8xf32>
    %c3_156 = arith.constant 3 : index
    %c0_157 = arith.constant 0 : index
    %c0_158 = arith.constant 0 : index
    %222 = vector.load %arg9[%c3_156, %c0_157, %c0_158] : memref<8x1x8xf32, #tpu.memory_space<vmem>>, vector<1x1x8xf32>
    %223 = vector.shape_cast %222 : vector<1x1x8xf32> to vector<1x8xf32>
    %224 = vector.broadcast %223 : vector<1x8xf32> to vector<16x8xf32>
    %225 = arith.addf %221, %224 : vector<16x8xf32>
    %c3_159 = arith.constant 3 : index
    %c0_160 = arith.constant 0 : index
    %c0_161 = arith.constant 0 : index
    %226 = vector.load %arg10[%c3_159, %c0_160, %c0_161] : memref<8x8x32xf32, #tpu.memory_space<vmem>>, vector<1x8x32xf32>
    %227 = vector.shape_cast %226 : vector<1x8x32xf32> to vector<8x32xf32>
    %228 = vector.extract_strided_slice %211 {offsets = [0, 0], sizes = [8, 8], strides = [1, 1]} : vector<16x8xf32> to vector<8x8xf32>
    %229 = vector.extract_strided_slice %218 {offsets = [0, 0], sizes = [8, 8], strides = [1, 1]} : vector<16x8xf32> to vector<8x8xf32>
    %230 = vector.extract_strided_slice %225 {offsets = [0, 0], sizes = [8, 8], strides = [1, 1]} : vector<16x8xf32> to vector<8x8xf32>
    %cst_162 = arith.constant dense<0.000000e+00> : vector<8x8xf32>
    %231 = tpu.matmul %228, %229, %cst_162 {dimension_numbers = #tpu.dot_dimension_numbers<[1], [1], [0], [0], [0, 0, 1, 0], [], []>} : vector<8x8xf32>, vector<8x8xf32>, vector<8x8xf32> -> vector<8x8xf32>
    %cst_163 = arith.constant 0.353553385 : f32
    %232 = vector.broadcast %cst_163 : f32 to vector<8x8xf32>
    %233 = arith.mulf %231, %232 : vector<8x8xf32>
    %cst_164 = arith.constant dense<0xFF800000> : vector<8xf32>
    %234 = vector.multi_reduction <maximumf>, %233, %cst_164 [1] : vector<8x8xf32> to vector<8xf32>
    %235 = vector.shape_cast %234 : vector<8xf32> to vector<8x1xf32>
    %236 = vector.broadcast %235 : vector<8x1xf32> to vector<8x8xf32>
    %237 = arith.subf %233, %236 : vector<8x8xf32>
    %238 = math.exp %237 : vector<8x8xf32>
    %cst_165 = arith.constant dense<0.000000e+00> : vector<8xf32>
    %239 = vector.multi_reduction <add>, %238, %cst_165 [1] : vector<8x8xf32> to vector<8xf32>
    %240 = vector.shape_cast %239 : vector<8xf32> to vector<8x1xf32>
    %241 = tpu.reciprocal %240 {approx = true} : vector<8x1xf32> -> vector<8x1xf32>
    %242 = vector.broadcast %241 : vector<8x1xf32> to vector<8x8xf32>
    %243 = arith.mulf %238, %242 : vector<8x8xf32>
    %cst_166 = arith.constant dense<0.000000e+00> : vector<8x8xf32>
    %244 = tpu.matmul %243, %230, %cst_166 {dimension_numbers = #tpu.dot_dimension_numbers<[1], [0], [0], [1], [0, 0, 1, 1], [], []>} : vector<8x8xf32>, vector<8x8xf32>, vector<8x8xf32> -> vector<8x8xf32>
    %c0_167 = arith.constant 0 : index
    %c0_168 = arith.constant 0 : index
    %245 = vector.load %arg23[%c0_167, %c0_168] : memref<16x32xf32, #tpu.memory_space<vmem>>, vector<8x32xf32>
    %cst_169 = arith.constant dense<0.000000e+00> : vector<8x32xf32>
    %246 = tpu.matmul %244, %227, %cst_169 {dimension_numbers = #tpu.dot_dimension_numbers<[1], [0], [0], [1], [0, 0, 1, 1], [], []>} : vector<8x8xf32>, vector<8x32xf32>, vector<8x32xf32> -> vector<8x32xf32>
    %247 = arith.addf %245, %246 : vector<8x32xf32>
    %c0_170 = arith.constant 0 : index
    %c0_171 = arith.constant 0 : index
    %248 = vector.load %arg23[%c0_170, %c0_171] : memref<16x32xf32, #tpu.memory_space<vmem>>, vector<8x32xf32>
    tpu.vector_store %arg23[%c0_170, %c0_171], %247 {strides = array<i32>} : memref<16x32xf32, #tpu.memory_space<vmem>>, vector<8x32xf32>,
    %249 = vector.extract_strided_slice %211 {offsets = [8, 0], sizes = [8, 8], strides = [1, 1]} : vector<16x8xf32> to vector<8x8xf32>
    %250 = vector.extract_strided_slice %218 {offsets = [8, 0], sizes = [8, 8], strides = [1, 1]} : vector<16x8xf32> to vector<8x8xf32>
    %251 = vector.extract_strided_slice %225 {offsets = [8, 0], sizes = [8, 8], strides = [1, 1]} : vector<16x8xf32> to vector<8x8xf32>
    %cst_172 = arith.constant dense<0.000000e+00> : vector<8x8xf32>
    %252 = tpu.matmul %249, %250, %cst_172 {dimension_numbers = #tpu.dot_dimension_numbers<[1], [1], [0], [0], [0, 0, 1, 0], [], []>} : vector<8x8xf32>, vector<8x8xf32>, vector<8x8xf32> -> vector<8x8xf32>
    %cst_173 = arith.constant 0.353553385 : f32
    %253 = vector.broadcast %cst_173 : f32 to vector<8x8xf32>
    %254 = arith.mulf %252, %253 : vector<8x8xf32>
    %cst_174 = arith.constant dense<0xFF800000> : vector<8xf32>
    %255 = vector.multi_reduction <maximumf>, %254, %cst_174 [1] : vector<8x8xf32> to vector<8xf32>
    %256 = vector.shape_cast %255 : vector<8xf32> to vector<8x1xf32>
    %257 = vector.broadcast %256 : vector<8x1xf32> to vector<8x8xf32>
    %258 = arith.subf %254, %257 : vector<8x8xf32>
    %259 = math.exp %258 : vector<8x8xf32>
    %cst_175 = arith.constant dense<0.000000e+00> : vector<8xf32>
    %260 = vector.multi_reduction <add>, %259, %cst_175 [1] : vector<8x8xf32> to vector<8xf32>
    %261 = vector.shape_cast %260 : vector<8xf32> to vector<8x1xf32>
    %262 = tpu.reciprocal %261 {approx = true} : vector<8x1xf32> -> vector<8x1xf32>
    %263 = vector.broadcast %262 : vector<8x1xf32> to vector<8x8xf32>
    %264 = arith.mulf %259, %263 : vector<8x8xf32>
    %cst_176 = arith.constant dense<0.000000e+00> : vector<8x8xf32>
    %265 = tpu.matmul %264, %251, %cst_176 {dimension_numbers = #tpu.dot_dimension_numbers<[1], [0], [0], [1], [0, 0, 1, 1], [], []>} : vector<8x8xf32>, vector<8x8xf32>, vector<8x8xf32> -> vector<8x8xf32>
    %c8_177 = arith.constant 8 : index
    %c0_178 = arith.constant 0 : index
    %266 = vector.load %arg23[%c8_177, %c0_178] : memref<16x32xf32, #tpu.memory_space<vmem>>, vector<8x32xf32>
    %cst_179 = arith.constant dense<0.000000e+00> : vector<8x32xf32>
    %267 = tpu.matmul %265, %227, %cst_179 {dimension_numbers = #tpu.dot_dimension_numbers<[1], [0], [0], [1], [0, 0, 1, 1], [], []>} : vector<8x8xf32>, vector<8x32xf32>, vector<8x32xf32> -> vector<8x32xf32>
    %268 = arith.addf %266, %267 : vector<8x32xf32>
    %c8_180 = arith.constant 8 : index
    %c0_181 = arith.constant 0 : index
    %269 = vector.load %arg23[%c8_180, %c0_181] : memref<16x32xf32, #tpu.memory_space<vmem>>, vector<8x32xf32>
    tpu.vector_store %arg23[%c8_180, %c0_181], %268 {strides = array<i32>} : memref<16x32xf32, #tpu.memory_space<vmem>>, vector<8x32xf32>,
    %c0_182 = arith.constant 0 : index
    %c0_183 = arith.constant 0 : index
    %270 = vector.load %arg23[%c0_182, %c0_183] : memref<16x32xf32, #tpu.memory_space<vmem>>, vector<16x32xf32>
    %c0_184 = arith.constant 0 : index
    %c0_185 = arith.constant 0 : index
    %c0_186 = arith.constant 0 : index
    %271 = vector.load %arg11[%c0_184, %c0_185, %c0_186] : memref<2x1x32xf32, #tpu.memory_space<vmem>>, vector<1x1x32xf32>
    %272 = vector.shape_cast %271 : vector<1x1x32xf32> to vector<1x32xf32>
    %273 = vector.broadcast %272 : vector<1x32xf32> to vector<16x32xf32>
    %274 = arith.addf %270, %273 : vector<16x32xf32>
    %275 = arith.addf %7, %274 : vector<16x32xf32>
    %c0_187 = arith.constant 0 : index
    %c0_188 = arith.constant 0 : index
    %c0_189 = arith.constant 0 : index
    %276 = vector.load %arg12[%c0_187, %c0_188, %c0_189] : memref<2x1x32xf32, #tpu.memory_space<vmem>>, vector<1x1x32xf32>
    %277 = vector.shape_cast %276 : vector<1x1x32xf32> to vector<1x32xf32>
    %c0_190 = arith.constant 0 : index
    %c0_191 = arith.constant 0 : index
    %c0_192 = arith.constant 0 : index
    %278 = vector.load %arg13[%c0_190, %c0_191, %c0_192] : memref<2x1x32xf32, #tpu.memory_space<vmem>>, vector<1x1x32xf32>
    %279 = vector.shape_cast %278 : vector<1x1x32xf32> to vector<1x32xf32>
    %cst_193 = arith.constant dense<0.000000e+00> : vector<16xf32>
    %280 = vector.multi_reduction <add>, %275, %cst_193 [1] : vector<16x32xf32> to vector<16xf32>
    %281 = vector.shape_cast %280 : vector<16xf32> to vector<16x1xf32>
    %cst_194 = arith.constant 3.200000e+01 : f32
    %282 = vector.broadcast %cst_194 : f32 to vector<16x1xf32>
    %283 = arith.divf %281, %282 : vector<16x1xf32>
    %284 = vector.broadcast %283 : vector<16x1xf32> to vector<16x32xf32>
    %285 = arith.subf %275, %284 : vector<16x32xf32>
    %286 = arith.mulf %285, %285 : vector<16x32xf32>
    %cst_195 = arith.constant dense<0.000000e+00> : vector<16xf32>
    %287 = vector.multi_reduction <add>, %286, %cst_195 [1] : vector<16x32xf32> to vector<16xf32>
    %288 = vector.shape_cast %287 : vector<16xf32> to vector<16x1xf32>
    %cst_196 = arith.constant 3.200000e+01 : f32
    %289 = vector.broadcast %cst_196 : f32 to vector<16x1xf32>
    %290 = arith.divf %288, %289 : vector<16x1xf32>
    %291 = vector.broadcast %283 : vector<16x1xf32> to vector<16x32xf32>
    %292 = arith.subf %275, %291 : vector<16x32xf32>
    %cst_197 = arith.constant 9.99999974E-6 : f32
    %293 = vector.broadcast %cst_197 : f32 to vector<16x1xf32>
    %294 = arith.addf %290, %293 : vector<16x1xf32>
    %295 = math.rsqrt %294 : vector<16x1xf32>
    %296 = vector.broadcast %295 : vector<16x1xf32> to vector<16x32xf32>
    %297 = arith.mulf %292, %296 : vector<16x32xf32>
    %298 = vector.broadcast %277 : vector<1x32xf32> to vector<16x32xf32>
    %299 = arith.mulf %297, %298 : vector<16x32xf32>
    %300 = vector.broadcast %279 : vector<1x32xf32> to vector<16x32xf32>
    %301 = arith.addf %299, %300 : vector<16x32xf32>
    %302 = arith.truncf %301 : vector<16x32xf32> to vector<16x32xbf16>
    %c0_198 = arith.constant 0 : index
    %c0_199 = arith.constant 0 : index
    %c0_200 = arith.constant 0 : index
    %303 = vector.load %arg14[%c0_198, %c0_199, %c0_200] : memref<2x32x2048xbf16, #tpu.memory_space<vmem>>, vector<1x32x2048xbf16>
    %304 = vector.shape_cast %303 : vector<1x32x2048xbf16> to vector<32x2048xbf16>
    %cst_201 = arith.constant dense<0.000000e+00> : vector<16x2048xf32>
    %305 = tpu.matmul %302, %304, %cst_201 {dimension_numbers = #tpu.dot_dimension_numbers<[1], [0], [0], [1], [0, 0, 1, 1], [], []>} : vector<16x32xbf16>, vector<32x2048xbf16>, vector<16x2048xf32> -> vector<16x2048xf32>
    %c0_202 = arith.constant 0 : index
    %c0_203 = arith.constant 0 : index
    %c0_204 = arith.constant 0 : index
    %306 = vector.load %arg15[%c0_202, %c0_203, %c0_204] : memref<2x1x2048xf32, #tpu.memory_space<vmem>>, vector<1x1x2048xf32>
    %307 = vector.shape_cast %306 : vector<1x1x2048xf32> to vector<1x2048xf32>
    %308 = vector.broadcast %307 : vector<1x2048xf32> to vector<16x2048xf32>
    %309 = arith.addf %305, %308 : vector<16x2048xf32>
    %cst_205 = arith.constant 0.000000e+00 : f32
    %310 = vector.broadcast %cst_205 : f32 to vector<16x2048xf32>
    %311 = arith.maximumf %309, %310 : vector<16x2048xf32>
    %312 = arith.truncf %311 : vector<16x2048xf32> to vector<16x2048xbf16>
    %c0_206 = arith.constant 0 : index
    %c0_207 = arith.constant 0 : index
    %c0_208 = arith.constant 0 : index
    %313 = vector.load %arg16[%c0_206, %c0_207, %c0_208] : memref<2x32x2048xbf16, #tpu.memory_space<vmem>>, vector<1x32x2048xbf16>
    %314 = vector.shape_cast %313 : vector<1x32x2048xbf16> to vector<32x2048xbf16>
    %cst_209 = arith.constant dense<0.000000e+00> : vector<16x32xf32>
    %315 = tpu.matmul %312, %314, %cst_209 {dimension_numbers = #tpu.dot_dimension_numbers<[1], [1], [0], [0], [0, 0, 1, 0], [], []>} : vector<16x2048xbf16>, vector<32x2048xbf16>, vector<16x32xf32> -> vector<16x32xf32>
    %c0_210 = arith.constant 0 : index
    %c0_211 = arith.constant 0 : index
    %c0_212 = arith.constant 0 : index
    %316 = vector.load %arg17[%c0_210, %c0_211, %c0_212] : memref<2x1x32xf32, #tpu.memory_space<vmem>>, vector<1x1x32xf32>
    %317 = vector.shape_cast %316 : vector<1x1x32xf32> to vector<1x32xf32>
    %318 = vector.broadcast %317 : vector<1x32xf32> to vector<16x32xf32>
    %319 = arith.addf %315, %318 : vector<16x32xf32>
    %320 = arith.addf %301, %319 : vector<16x32xf32>
    %c0_213 = arith.constant 0 : index
    %c0_214 = arith.constant 0 : index
    %c0_215 = arith.constant 0 : index
    %321 = vector.load %arg18[%c0_213, %c0_214, %c0_215] : memref<2x1x32xf32, #tpu.memory_space<vmem>>, vector<1x1x32xf32>
    %322 = vector.shape_cast %321 : vector<1x1x32xf32> to vector<1x32xf32>
    %c0_216 = arith.constant 0 : index
    %c0_217 = arith.constant 0 : index
    %c0_218 = arith.constant 0 : index
    %323 = vector.load %arg19[%c0_216, %c0_217, %c0_218] : memref<2x1x32xf32, #tpu.memory_space<vmem>>, vector<1x1x32xf32>
    %324 = vector.shape_cast %323 : vector<1x1x32xf32> to vector<1x32xf32>
    %cst_219 = arith.constant dense<0.000000e+00> : vector<16xf32>
    %325 = vector.multi_reduction <add>, %320, %cst_219 [1] : vector<16x32xf32> to vector<16xf32>
    %326 = vector.shape_cast %325 : vector<16xf32> to vector<16x1xf32>
    %cst_220 = arith.constant 3.200000e+01 : f32
    %327 = vector.broadcast %cst_220 : f32 to vector<16x1xf32>
    %328 = arith.divf %326, %327 : vector<16x1xf32>
    %329 = vector.broadcast %328 : vector<16x1xf32> to vector<16x32xf32>
    %330 = arith.subf %320, %329 : vector<16x32xf32>
    %331 = arith.mulf %330, %330 : vector<16x32xf32>
    %cst_221 = arith.constant dense<0.000000e+00> : vector<16xf32>
    %332 = vector.multi_reduction <add>, %331, %cst_221 [1] : vector<16x32xf32> to vector<16xf32>
    %333 = vector.shape_cast %332 : vector<16xf32> to vector<16x1xf32>
    %cst_222 = arith.constant 3.200000e+01 : f32
    %334 = vector.broadcast %cst_222 : f32 to vector<16x1xf32>
    %335 = arith.divf %333, %334 : vector<16x1xf32>
    %336 = vector.broadcast %328 : vector<16x1xf32> to vector<16x32xf32>
    %337 = arith.subf %320, %336 : vector<16x32xf32>
    %cst_223 = arith.constant 9.99999974E-6 : f32
    %338 = vector.broadcast %cst_223 : f32 to vector<16x1xf32>
    %339 = arith.addf %335, %338 : vector<16x1xf32>
    %340 = math.rsqrt %339 : vector<16x1xf32>
    %341 = vector.broadcast %340 : vector<16x1xf32> to vector<16x32xf32>
    %342 = arith.mulf %337, %341 : vector<16x32xf32>
    %343 = vector.broadcast %322 : vector<1x32xf32> to vector<16x32xf32>
    %344 = arith.mulf %342, %343 : vector<16x32xf32>
    %345 = vector.broadcast %324 : vector<1x32xf32> to vector<16x32xf32>
    %346 = arith.addf %344, %345 : vector<16x32xf32>
    %cst_224 = arith.constant 0.000000e+00 : f32
    %347 = vector.broadcast %cst_224 : f32 to vector<16x32xf32>
    %c0_225 = arith.constant 0 : index
    %c0_226 = arith.constant 0 : index
    %348 = vector.load %arg23[%c0_225, %c0_226] : memref<16x32xf32, #tpu.memory_space<vmem>>, vector<16x32xf32>
    tpu.vector_store %arg23[%c0_225, %c0_226], %347 {strides = array<i32>} : memref<16x32xf32, #tpu.memory_space<vmem>>, vector<16x32xf32>,
    %c4 = arith.constant 4 : index
    %c0_227 = arith.constant 0 : index
    %c0_228 = arith.constant 0 : index
    %349 = vector.load %arg4[%c4, %c0_227, %c0_228] : memref<8x8x32xf32, #tpu.memory_space<vmem>>, vector<1x8x32xf32>
    %350 = vector.shape_cast %349 : vector<1x8x32xf32> to vector<8x32xf32>
    %cst_229 = arith.constant dense<0.000000e+00> : vector<16x8xf32>
    %351 = tpu.matmul %346, %350, %cst_229 {dimension_numbers = #tpu.dot_dimension_numbers<[1], [1], [0], [0], [0, 0, 1, 0], [], []>} : vector<16x32xf32>, vector<8x32xf32>, vector<16x8xf32> -> vector<16x8xf32>
    %c4_230 = arith.constant 4 : index
    %c0_231 = arith.constant 0 : index
    %c0_232 = arith.constant 0 : index
    %352 = vector.load %arg5[%c4_230, %c0_231, %c0_232] : memref<8x1x8xf32, #tpu.memory_space<vmem>>, vector<1x1x8xf32>
    %353 = vector.shape_cast %352 : vector<1x1x8xf32> to vector<1x8xf32>
    %354 = vector.broadcast %353 : vector<1x8xf32> to vector<16x8xf32>
    %355 = arith.addf %351, %354 : vector<16x8xf32>
    %c4_233 = arith.constant 4 : index
    %c0_234 = arith.constant 0 : index
    %c0_235 = arith.constant 0 : index
    %356 = vector.load %arg6[%c4_233, %c0_234, %c0_235] : memref<8x8x32xf32, #tpu.memory_space<vmem>>, vector<1x8x32xf32>
    %357 = vector.shape_cast %356 : vector<1x8x32xf32> to vector<8x32xf32>
    %cst_236 = arith.constant dense<0.000000e+00> : vector<16x8xf32>
    %358 = tpu.matmul %346, %357, %cst_236 {dimension_numbers = #tpu.dot_dimension_numbers<[1], [1], [0], [0], [0, 0, 1, 0], [], []>} : vector<16x32xf32>, vector<8x32xf32>, vector<16x8xf32> -> vector<16x8xf32>
    %c4_237 = arith.constant 4 : index
    %c0_238 = arith.constant 0 : index
    %c0_239 = arith.constant 0 : index
    %359 = vector.load %arg7[%c4_237, %c0_238, %c0_239] : memref<8x1x8xf32, #tpu.memory_space<vmem>>, vector<1x1x8xf32>
    %360 = vector.shape_cast %359 : vector<1x1x8xf32> to vector<1x8xf32>
    %361 = vector.broadcast %360 : vector<1x8xf32> to vector<16x8xf32>
    %362 = arith.addf %358, %361 : vector<16x8xf32>
    %c4_240 = arith.constant 4 : index
    %c0_241 = arith.constant 0 : index
    %c0_242 = arith.constant 0 : index
    %363 = vector.load %arg8[%c4_240, %c0_241, %c0_242] : memref<8x8x32xf32, #tpu.memory_space<vmem>>, vector<1x8x32xf32>
    %364 = vector.shape_cast %363 : vector<1x8x32xf32> to vector<8x32xf32>
    %cst_243 = arith.constant dense<0.000000e+00> : vector<16x8xf32>
    %365 = tpu.matmul %346, %364, %cst_243 {dimension_numbers = #tpu.dot_dimension_numbers<[1], [1], [0], [0], [0, 0, 1, 0], [], []>} : vector<16x32xf32>, vector<8x32xf32>, vector<16x8xf32> -> vector<16x8xf32>
    %c4_244 = arith.constant 4 : index
    %c0_245 = arith.constant 0 : index
    %c0_246 = arith.constant 0 : index
    %366 = vector.load %arg9[%c4_244, %c0_245, %c0_246] : memref<8x1x8xf32, #tpu.memory_space<vmem>>, vector<1x1x8xf32>
    %367 = vector.shape_cast %366 : vector<1x1x8xf32> to vector<1x8xf32>
    %368 = vector.broadcast %367 : vector<1x8xf32> to vector<16x8xf32>
    %369 = arith.addf %365, %368 : vector<16x8xf32>
    %c4_247 = arith.constant 4 : index
    %c0_248 = arith.constant 0 : index
    %c0_249 = arith.constant 0 : index
    %370 = vector.load %arg10[%c4_247, %c0_248, %c0_249] : memref<8x8x32xf32, #tpu.memory_space<vmem>>, vector<1x8x32xf32>
    %371 = vector.shape_cast %370 : vector<1x8x32xf32> to vector<8x32xf32>
    %372 = vector.extract_strided_slice %355 {offsets = [0, 0], sizes = [8, 8], strides = [1, 1]} : vector<16x8xf32> to vector<8x8xf32>
    %373 = vector.extract_strided_slice %362 {offsets = [0, 0], sizes = [8, 8], strides = [1, 1]} : vector<16x8xf32> to vector<8x8xf32>
    %374 = vector.extract_strided_slice %369 {offsets = [0, 0], sizes = [8, 8], strides = [1, 1]} : vector<16x8xf32> to vector<8x8xf32>
    %cst_250 = arith.constant dense<0.000000e+00> : vector<8x8xf32>
    %375 = tpu.matmul %372, %373, %cst_250 {dimension_numbers = #tpu.dot_dimension_numbers<[1], [1], [0], [0], [0, 0, 1, 0], [], []>} : vector<8x8xf32>, vector<8x8xf32>, vector<8x8xf32> -> vector<8x8xf32>
    %cst_251 = arith.constant 0.353553385 : f32
    %376 = vector.broadcast %cst_251 : f32 to vector<8x8xf32>
    %377 = arith.mulf %375, %376 : vector<8x8xf32>
    %cst_252 = arith.constant dense<0xFF800000> : vector<8xf32>
    %378 = vector.multi_reduction <maximumf>, %377, %cst_252 [1] : vector<8x8xf32> to vector<8xf32>
    %379 = vector.shape_cast %378 : vector<8xf32> to vector<8x1xf32>
    %380 = vector.broadcast %379 : vector<8x1xf32> to vector<8x8xf32>
    %381 = arith.subf %377, %380 : vector<8x8xf32>
    %382 = math.exp %381 : vector<8x8xf32>
    %cst_253 = arith.constant dense<0.000000e+00> : vector<8xf32>
    %383 = vector.multi_reduction <add>, %382, %cst_253 [1] : vector<8x8xf32> to vector<8xf32>
    %384 = vector.shape_cast %383 : vector<8xf32> to vector<8x1xf32>
    %385 = tpu.reciprocal %384 {approx = true} : vector<8x1xf32> -> vector<8x1xf32>
    %386 = vector.broadcast %385 : vector<8x1xf32> to vector<8x8xf32>
    %387 = arith.mulf %382, %386 : vector<8x8xf32>
    %cst_254 = arith.constant dense<0.000000e+00> : vector<8x8xf32>
    %388 = tpu.matmul %387, %374, %cst_254 {dimension_numbers = #tpu.dot_dimension_numbers<[1], [0], [0], [1], [0, 0, 1, 1], [], []>} : vector<8x8xf32>, vector<8x8xf32>, vector<8x8xf32> -> vector<8x8xf32>
    %c0_255 = arith.constant 0 : index
    %c0_256 = arith.constant 0 : index
    %389 = vector.load %arg23[%c0_255, %c0_256] : memref<16x32xf32, #tpu.memory_space<vmem>>, vector<8x32xf32>
    %cst_257 = arith.constant dense<0.000000e+00> : vector<8x32xf32>
    %390 = tpu.matmul %388, %371, %cst_257 {dimension_numbers = #tpu.dot_dimension_numbers<[1], [0], [0], [1], [0, 0, 1, 1], [], []>} : vector<8x8xf32>, vector<8x32xf32>, vector<8x32xf32> -> vector<8x32xf32>
    %391 = arith.addf %389, %390 : vector<8x32xf32>
    %c0_258 = arith.constant 0 : index
    %c0_259 = arith.constant 0 : index
    %392 = vector.load %arg23[%c0_258, %c0_259] : memref<16x32xf32, #tpu.memory_space<vmem>>, vector<8x32xf32>
    tpu.vector_store %arg23[%c0_258, %c0_259], %391 {strides = array<i32>} : memref<16x32xf32, #tpu.memory_space<vmem>>, vector<8x32xf32>,
    %393 = vector.extract_strided_slice %355 {offsets = [8, 0], sizes = [8, 8], strides = [1, 1]} : vector<16x8xf32> to vector<8x8xf32>
    %394 = vector.extract_strided_slice %362 {offsets = [8, 0], sizes = [8, 8], strides = [1, 1]} : vector<16x8xf32> to vector<8x8xf32>
    %395 = vector.extract_strided_slice %369 {offsets = [8, 0], sizes = [8, 8], strides = [1, 1]} : vector<16x8xf32> to vector<8x8xf32>
    %cst_260 = arith.constant dense<0.000000e+00> : vector<8x8xf32>
    %396 = tpu.matmul %393, %394, %cst_260 {dimension_numbers = #tpu.dot_dimension_numbers<[1], [1], [0], [0], [0, 0, 1, 0], [], []>} : vector<8x8xf32>, vector<8x8xf32>, vector<8x8xf32> -> vector<8x8xf32>
    %cst_261 = arith.constant 0.353553385 : f32
    %397 = vector.broadcast %cst_261 : f32 to vector<8x8xf32>
    %398 = arith.mulf %396, %397 : vector<8x8xf32>
    %cst_262 = arith.constant dense<0xFF800000> : vector<8xf32>
    %399 = vector.multi_reduction <maximumf>, %398, %cst_262 [1] : vector<8x8xf32> to vector<8xf32>
    %400 = vector.shape_cast %399 : vector<8xf32> to vector<8x1xf32>
    %401 = vector.broadcast %400 : vector<8x1xf32> to vector<8x8xf32>
    %402 = arith.subf %398, %401 : vector<8x8xf32>
    %403 = math.exp %402 : vector<8x8xf32>
    %cst_263 = arith.constant dense<0.000000e+00> : vector<8xf32>
    %404 = vector.multi_reduction <add>, %403, %cst_263 [1] : vector<8x8xf32> to vector<8xf32>
    %405 = vector.shape_cast %404 : vector<8xf32> to vector<8x1xf32>
    %406 = tpu.reciprocal %405 {approx = true} : vector<8x1xf32> -> vector<8x1xf32>
    %407 = vector.broadcast %406 : vector<8x1xf32> to vector<8x8xf32>
    %408 = arith.mulf %403, %407 : vector<8x8xf32>
    %cst_264 = arith.constant dense<0.000000e+00> : vector<8x8xf32>
    %409 = tpu.matmul %408, %395, %cst_264 {dimension_numbers = #tpu.dot_dimension_numbers<[1], [0], [0], [1], [0, 0, 1, 1], [], []>} : vector<8x8xf32>, vector<8x8xf32>, vector<8x8xf32> -> vector<8x8xf32>
    %c8_265 = arith.constant 8 : index
    %c0_266 = arith.constant 0 : index
    %410 = vector.load %arg23[%c8_265, %c0_266] : memref<16x32xf32, #tpu.memory_space<vmem>>, vector<8x32xf32>
    %cst_267 = arith.constant dense<0.000000e+00> : vector<8x32xf32>
    %411 = tpu.matmul %409, %371, %cst_267 {dimension_numbers = #tpu.dot_dimension_numbers<[1], [0], [0], [1], [0, 0, 1, 1], [], []>} : vector<8x8xf32>, vector<8x32xf32>, vector<8x32xf32> -> vector<8x32xf32>
    %412 = arith.addf %410, %411 : vector<8x32xf32>
    %c8_268 = arith.constant 8 : index
    %c0_269 = arith.constant 0 : index
    %413 = vector.load %arg23[%c8_268, %c0_269] : memref<16x32xf32, #tpu.memory_space<vmem>>, vector<8x32xf32>
    tpu.vector_store %arg23[%c8_268, %c0_269], %412 {strides = array<i32>} : memref<16x32xf32, #tpu.memory_space<vmem>>, vector<8x32xf32>,
    %c5 = arith.constant 5 : index
    %c0_270 = arith.constant 0 : index
    %c0_271 = arith.constant 0 : index
    %414 = vector.load %arg4[%c5, %c0_270, %c0_271] : memref<8x8x32xf32, #tpu.memory_space<vmem>>, vector<1x8x32xf32>
    %415 = vector.shape_cast %414 : vector<1x8x32xf32> to vector<8x32xf32>
    %cst_272 = arith.constant dense<0.000000e+00> : vector<16x8xf32>
    %416 = tpu.matmul %346, %415, %cst_272 {dimension_numbers = #tpu.dot_dimension_numbers<[1], [1], [0], [0], [0, 0, 1, 0], [], []>} : vector<16x32xf32>, vector<8x32xf32>, vector<16x8xf32> -> vector<16x8xf32>
    %c5_273 = arith.constant 5 : index
    %c0_274 = arith.constant 0 : index
    %c0_275 = arith.constant 0 : index
    %417 = vector.load %arg5[%c5_273, %c0_274, %c0_275] : memref<8x1x8xf32, #tpu.memory_space<vmem>>, vector<1x1x8xf32>
    %418 = vector.shape_cast %417 : vector<1x1x8xf32> to vector<1x8xf32>
    %419 = vector.broadcast %418 : vector<1x8xf32> to vector<16x8xf32>
    %420 = arith.addf %416, %419 : vector<16x8xf32>
    %c5_276 = arith.constant 5 : index
    %c0_277 = arith.constant 0 : index
    %c0_278 = arith.constant 0 : index
    %421 = vector.load %arg6[%c5_276, %c0_277, %c0_278] : memref<8x8x32xf32, #tpu.memory_space<vmem>>, vector<1x8x32xf32>
    %422 = vector.shape_cast %421 : vector<1x8x32xf32> to vector<8x32xf32>
    %cst_279 = arith.constant dense<0.000000e+00> : vector<16x8xf32>
    %423 = tpu.matmul %346, %422, %cst_279 {dimension_numbers = #tpu.dot_dimension_numbers<[1], [1], [0], [0], [0, 0, 1, 0], [], []>} : vector<16x32xf32>, vector<8x32xf32>, vector<16x8xf32> -> vector<16x8xf32>
    %c5_280 = arith.constant 5 : index
    %c0_281 = arith.constant 0 : index
    %c0_282 = arith.constant 0 : index
    %424 = vector.load %arg7[%c5_280, %c0_281, %c0_282] : memref<8x1x8xf32, #tpu.memory_space<vmem>>, vector<1x1x8xf32>
    %425 = vector.shape_cast %424 : vector<1x1x8xf32> to vector<1x8xf32>
    %426 = vector.broadcast %425 : vector<1x8xf32> to vector<16x8xf32>
    %427 = arith.addf %423, %426 : vector<16x8xf32>
    %c5_283 = arith.constant 5 : index
    %c0_284 = arith.constant 0 : index
    %c0_285 = arith.constant 0 : index
    %428 = vector.load %arg8[%c5_283, %c0_284, %c0_285] : memref<8x8x32xf32, #tpu.memory_space<vmem>>, vector<1x8x32xf32>
    %429 = vector.shape_cast %428 : vector<1x8x32xf32> to vector<8x32xf32>
    %cst_286 = arith.constant dense<0.000000e+00> : vector<16x8xf32>
    %430 = tpu.matmul %346, %429, %cst_286 {dimension_numbers = #tpu.dot_dimension_numbers<[1], [1], [0], [0], [0, 0, 1, 0], [], []>} : vector<16x32xf32>, vector<8x32xf32>, vector<16x8xf32> -> vector<16x8xf32>
    %c5_287 = arith.constant 5 : index
    %c0_288 = arith.constant 0 : index
    %c0_289 = arith.constant 0 : index
    %431 = vector.load %arg9[%c5_287, %c0_288, %c0_289] : memref<8x1x8xf32, #tpu.memory_space<vmem>>, vector<1x1x8xf32>
    %432 = vector.shape_cast %431 : vector<1x1x8xf32> to vector<1x8xf32>
    %433 = vector.broadcast %432 : vector<1x8xf32> to vector<16x8xf32>
    %434 = arith.addf %430, %433 : vector<16x8xf32>
    %c5_290 = arith.constant 5 : index
    %c0_291 = arith.constant 0 : index
    %c0_292 = arith.constant 0 : index
    %435 = vector.load %arg10[%c5_290, %c0_291, %c0_292] : memref<8x8x32xf32, #tpu.memory_space<vmem>>, vector<1x8x32xf32>
    %436 = vector.shape_cast %435 : vector<1x8x32xf32> to vector<8x32xf32>
    %437 = vector.extract_strided_slice %420 {offsets = [0, 0], sizes = [8, 8], strides = [1, 1]} : vector<16x8xf32> to vector<8x8xf32>
    %438 = vector.extract_strided_slice %427 {offsets = [0, 0], sizes = [8, 8], strides = [1, 1]} : vector<16x8xf32> to vector<8x8xf32>
    %439 = vector.extract_strided_slice %434 {offsets = [0, 0], sizes = [8, 8], strides = [1, 1]} : vector<16x8xf32> to vector<8x8xf32>
    %cst_293 = arith.constant dense<0.000000e+00> : vector<8x8xf32>
    %440 = tpu.matmul %437, %438, %cst_293 {dimension_numbers = #tpu.dot_dimension_numbers<[1], [1], [0], [0], [0, 0, 1, 0], [], []>} : vector<8x8xf32>, vector<8x8xf32>, vector<8x8xf32> -> vector<8x8xf32>
    %cst_294 = arith.constant 0.353553385 : f32
    %441 = vector.broadcast %cst_294 : f32 to vector<8x8xf32>
    %442 = arith.mulf %440, %441 : vector<8x8xf32>
    %cst_295 = arith.constant dense<0xFF800000> : vector<8xf32>
    %443 = vector.multi_reduction <maximumf>, %442, %cst_295 [1] : vector<8x8xf32> to vector<8xf32>
    %444 = vector.shape_cast %443 : vector<8xf32> to vector<8x1xf32>
    %445 = vector.broadcast %444 : vector<8x1xf32> to vector<8x8xf32>
    %446 = arith.subf %442, %445 : vector<8x8xf32>
    %447 = math.exp %446 : vector<8x8xf32>
    %cst_296 = arith.constant dense<0.000000e+00> : vector<8xf32>
    %448 = vector.multi_reduction <add>, %447, %cst_296 [1] : vector<8x8xf32> to vector<8xf32>
    %449 = vector.shape_cast %448 : vector<8xf32> to vector<8x1xf32>
    %450 = tpu.reciprocal %449 {approx = true} : vector<8x1xf32> -> vector<8x1xf32>
    %451 = vector.broadcast %450 : vector<8x1xf32> to vector<8x8xf32>
    %452 = arith.mulf %447, %451 : vector<8x8xf32>
    %cst_297 = arith.constant dense<0.000000e+00> : vector<8x8xf32>
    %453 = tpu.matmul %452, %439, %cst_297 {dimension_numbers = #tpu.dot_dimension_numbers<[1], [0], [0], [1], [0, 0, 1, 1], [], []>} : vector<8x8xf32>, vector<8x8xf32>, vector<8x8xf32> -> vector<8x8xf32>
    %c0_298 = arith.constant 0 : index
    %c0_299 = arith.constant 0 : index
    %454 = vector.load %arg23[%c0_298, %c0_299] : memref<16x32xf32, #tpu.memory_space<vmem>>, vector<8x32xf32>
    %cst_300 = arith.constant dense<0.000000e+00> : vector<8x32xf32>
    %455 = tpu.matmul %453, %436, %cst_300 {dimension_numbers = #tpu.dot_dimension_numbers<[1], [0], [0], [1], [0, 0, 1, 1], [], []>} : vector<8x8xf32>, vector<8x32xf32>, vector<8x32xf32> -> vector<8x32xf32>
    %456 = arith.addf %454, %455 : vector<8x32xf32>
    %c0_301 = arith.constant 0 : index
    %c0_302 = arith.constant 0 : index
    %457 = vector.load %arg23[%c0_301, %c0_302] : memref<16x32xf32, #tpu.memory_space<vmem>>, vector<8x32xf32>
    tpu.vector_store %arg23[%c0_301, %c0_302], %456 {strides = array<i32>} : memref<16x32xf32, #tpu.memory_space<vmem>>, vector<8x32xf32>,
    %458 = vector.extract_strided_slice %420 {offsets = [8, 0], sizes = [8, 8], strides = [1, 1]} : vector<16x8xf32> to vector<8x8xf32>
    %459 = vector.extract_strided_slice %427 {offsets = [8, 0], sizes = [8, 8], strides = [1, 1]} : vector<16x8xf32> to vector<8x8xf32>
    %460 = vector.extract_strided_slice %434 {offsets = [8, 0], sizes = [8, 8], strides = [1, 1]} : vector<16x8xf32> to vector<8x8xf32>
    %cst_303 = arith.constant dense<0.000000e+00> : vector<8x8xf32>
    %461 = tpu.matmul %458, %459, %cst_303 {dimension_numbers = #tpu.dot_dimension_numbers<[1], [1], [0], [0], [0, 0, 1, 0], [], []>} : vector<8x8xf32>, vector<8x8xf32>, vector<8x8xf32> -> vector<8x8xf32>
    %cst_304 = arith.constant 0.353553385 : f32
    %462 = vector.broadcast %cst_304 : f32 to vector<8x8xf32>
    %463 = arith.mulf %461, %462 : vector<8x8xf32>
    %cst_305 = arith.constant dense<0xFF800000> : vector<8xf32>
    %464 = vector.multi_reduction <maximumf>, %463, %cst_305 [1] : vector<8x8xf32> to vector<8xf32>
    %465 = vector.shape_cast %464 : vector<8xf32> to vector<8x1xf32>
    %466 = vector.broadcast %465 : vector<8x1xf32> to vector<8x8xf32>
    %467 = arith.subf %463, %466 : vector<8x8xf32>
    %468 = math.exp %467 : vector<8x8xf32>
    %cst_306 = arith.constant dense<0.000000e+00> : vector<8xf32>
    %469 = vector.multi_reduction <add>, %468, %cst_306 [1] : vector<8x8xf32> to vector<8xf32>
    %470 = vector.shape_cast %469 : vector<8xf32> to vector<8x1xf32>
    %471 = tpu.reciprocal %470 {approx = true} : vector<8x1xf32> -> vector<8x1xf32>
    %472 = vector.broadcast %471 : vector<8x1xf32> to vector<8x8xf32>
    %473 = arith.mulf %468, %472 : vector<8x8xf32>
    %cst_307 = arith.constant dense<0.000000e+00> : vector<8x8xf32>
    %474 = tpu.matmul %473, %460, %cst_307 {dimension_numbers = #tpu.dot_dimension_numbers<[1], [0], [0], [1], [0, 0, 1, 1], [], []>} : vector<8x8xf32>, vector<8x8xf32>, vector<8x8xf32> -> vector<8x8xf32>
    %c8_308 = arith.constant 8 : index
    %c0_309 = arith.constant 0 : index
    %475 = vector.load %arg23[%c8_308, %c0_309] : memref<16x32xf32, #tpu.memory_space<vmem>>, vector<8x32xf32>
    %cst_310 = arith.constant dense<0.000000e+00> : vector<8x32xf32>
    %476 = tpu.matmul %474, %436, %cst_310 {dimension_numbers = #tpu.dot_dimension_numbers<[1], [0], [0], [1], [0, 0, 1, 1], [], []>} : vector<8x8xf32>, vector<8x32xf32>, vector<8x32xf32> -> vector<8x32xf32>
    %477 = arith.addf %475, %476 : vector<8x32xf32>
    %c8_311 = arith.constant 8 : index
    %c0_312 = arith.constant 0 : index
    %478 = vector.load %arg23[%c8_311, %c0_312] : memref<16x32xf32, #tpu.memory_space<vmem>>, vector<8x32xf32>
    tpu.vector_store %arg23[%c8_311, %c0_312], %477 {strides = array<i32>} : memref<16x32xf32, #tpu.memory_space<vmem>>, vector<8x32xf32>,
    %c6 = arith.constant 6 : index
    %c0_313 = arith.constant 0 : index
    %c0_314 = arith.constant 0 : index
    %479 = vector.load %arg4[%c6, %c0_313, %c0_314] : memref<8x8x32xf32, #tpu.memory_space<vmem>>, vector<1x8x32xf32>
    %480 = vector.shape_cast %479 : vector<1x8x32xf32> to vector<8x32xf32>
    %cst_315 = arith.constant dense<0.000000e+00> : vector<16x8xf32>
    %481 = tpu.matmul %346, %480, %cst_315 {dimension_numbers = #tpu.dot_dimension_numbers<[1], [1], [0], [0], [0, 0, 1, 0], [], []>} : vector<16x32xf32>, vector<8x32xf32>, vector<16x8xf32> -> vector<16x8xf32>
    %c6_316 = arith.constant 6 : index
    %c0_317 = arith.constant 0 : index
    %c0_318 = arith.constant 0 : index
    %482 = vector.load %arg5[%c6_316, %c0_317, %c0_318] : memref<8x1x8xf32, #tpu.memory_space<vmem>>, vector<1x1x8xf32>
    %483 = vector.shape_cast %482 : vector<1x1x8xf32> to vector<1x8xf32>
    %484 = vector.broadcast %483 : vector<1x8xf32> to vector<16x8xf32>
    %485 = arith.addf %481, %484 : vector<16x8xf32>
    %c6_319 = arith.constant 6 : index
    %c0_320 = arith.constant 0 : index
    %c0_321 = arith.constant 0 : index
    %486 = vector.load %arg6[%c6_319, %c0_320, %c0_321] : memref<8x8x32xf32, #tpu.memory_space<vmem>>, vector<1x8x32xf32>
    %487 = vector.shape_cast %486 : vector<1x8x32xf32> to vector<8x32xf32>
    %cst_322 = arith.constant dense<0.000000e+00> : vector<16x8xf32>
    %488 = tpu.matmul %346, %487, %cst_322 {dimension_numbers = #tpu.dot_dimension_numbers<[1], [1], [0], [0], [0, 0, 1, 0], [], []>} : vector<16x32xf32>, vector<8x32xf32>, vector<16x8xf32> -> vector<16x8xf32>
    %c6_323 = arith.constant 6 : index
    %c0_324 = arith.constant 0 : index
    %c0_325 = arith.constant 0 : index
    %489 = vector.load %arg7[%c6_323, %c0_324, %c0_325] : memref<8x1x8xf32, #tpu.memory_space<vmem>>, vector<1x1x8xf32>
    %490 = vector.shape_cast %489 : vector<1x1x8xf32> to vector<1x8xf32>
    %491 = vector.broadcast %490 : vector<1x8xf32> to vector<16x8xf32>
    %492 = arith.addf %488, %491 : vector<16x8xf32>
    %c6_326 = arith.constant 6 : index
    %c0_327 = arith.constant 0 : index
    %c0_328 = arith.constant 0 : index
    %493 = vector.load %arg8[%c6_326, %c0_327, %c0_328] : memref<8x8x32xf32, #tpu.memory_space<vmem>>, vector<1x8x32xf32>
    %494 = vector.shape_cast %493 : vector<1x8x32xf32> to vector<8x32xf32>
    %cst_329 = arith.constant dense<0.000000e+00> : vector<16x8xf32>
    %495 = tpu.matmul %346, %494, %cst_329 {dimension_numbers = #tpu.dot_dimension_numbers<[1], [1], [0], [0], [0, 0, 1, 0], [], []>} : vector<16x32xf32>, vector<8x32xf32>, vector<16x8xf32> -> vector<16x8xf32>
    %c6_330 = arith.constant 6 : index
    %c0_331 = arith.constant 0 : index
    %c0_332 = arith.constant 0 : index
    %496 = vector.load %arg9[%c6_330, %c0_331, %c0_332] : memref<8x1x8xf32, #tpu.memory_space<vmem>>, vector<1x1x8xf32>
    %497 = vector.shape_cast %496 : vector<1x1x8xf32> to vector<1x8xf32>
    %498 = vector.broadcast %497 : vector<1x8xf32> to vector<16x8xf32>
    %499 = arith.addf %495, %498 : vector<16x8xf32>
    %c6_333 = arith.constant 6 : index
    %c0_334 = arith.constant 0 : index
    %c0_335 = arith.constant 0 : index
    %500 = vector.load %arg10[%c6_333, %c0_334, %c0_335] : memref<8x8x32xf32, #tpu.memory_space<vmem>>, vector<1x8x32xf32>
    %501 = vector.shape_cast %500 : vector<1x8x32xf32> to vector<8x32xf32>
    %502 = vector.extract_strided_slice %485 {offsets = [0, 0], sizes = [8, 8], strides = [1, 1]} : vector<16x8xf32> to vector<8x8xf32>
    %503 = vector.extract_strided_slice %492 {offsets = [0, 0], sizes = [8, 8], strides = [1, 1]} : vector<16x8xf32> to vector<8x8xf32>
    %504 = vector.extract_strided_slice %499 {offsets = [0, 0], sizes = [8, 8], strides = [1, 1]} : vector<16x8xf32> to vector<8x8xf32>
    %cst_336 = arith.constant dense<0.000000e+00> : vector<8x8xf32>
    %505 = tpu.matmul %502, %503, %cst_336 {dimension_numbers = #tpu.dot_dimension_numbers<[1], [1], [0], [0], [0, 0, 1, 0], [], []>} : vector<8x8xf32>, vector<8x8xf32>, vector<8x8xf32> -> vector<8x8xf32>
    %cst_337 = arith.constant 0.353553385 : f32
    %506 = vector.broadcast %cst_337 : f32 to vector<8x8xf32>
    %507 = arith.mulf %505, %506 : vector<8x8xf32>
    %cst_338 = arith.constant dense<0xFF800000> : vector<8xf32>
    %508 = vector.multi_reduction <maximumf>, %507, %cst_338 [1] : vector<8x8xf32> to vector<8xf32>
    %509 = vector.shape_cast %508 : vector<8xf32> to vector<8x1xf32>
    %510 = vector.broadcast %509 : vector<8x1xf32> to vector<8x8xf32>
    %511 = arith.subf %507, %510 : vector<8x8xf32>
    %512 = math.exp %511 : vector<8x8xf32>
    %cst_339 = arith.constant dense<0.000000e+00> : vector<8xf32>
    %513 = vector.multi_reduction <add>, %512, %cst_339 [1] : vector<8x8xf32> to vector<8xf32>
    %514 = vector.shape_cast %513 : vector<8xf32> to vector<8x1xf32>
    %515 = tpu.reciprocal %514 {approx = true} : vector<8x1xf32> -> vector<8x1xf32>
    %516 = vector.broadcast %515 : vector<8x1xf32> to vector<8x8xf32>
    %517 = arith.mulf %512, %516 : vector<8x8xf32>
    %cst_340 = arith.constant dense<0.000000e+00> : vector<8x8xf32>
    %518 = tpu.matmul %517, %504, %cst_340 {dimension_numbers = #tpu.dot_dimension_numbers<[1], [0], [0], [1], [0, 0, 1, 1], [], []>} : vector<8x8xf32>, vector<8x8xf32>, vector<8x8xf32> -> vector<8x8xf32>
    %c0_341 = arith.constant 0 : index
    %c0_342 = arith.constant 0 : index
    %519 = vector.load %arg23[%c0_341, %c0_342] : memref<16x32xf32, #tpu.memory_space<vmem>>, vector<8x32xf32>
    %cst_343 = arith.constant dense<0.000000e+00> : vector<8x32xf32>
    %520 = tpu.matmul %518, %501, %cst_343 {dimension_numbers = #tpu.dot_dimension_numbers<[1], [0], [0], [1], [0, 0, 1, 1], [], []>} : vector<8x8xf32>, vector<8x32xf32>, vector<8x32xf32> -> vector<8x32xf32>
    %521 = arith.addf %519, %520 : vector<8x32xf32>
    %c0_344 = arith.constant 0 : index
    %c0_345 = arith.constant 0 : index
    %522 = vector.load %arg23[%c0_344, %c0_345] : memref<16x32xf32, #tpu.memory_space<vmem>>, vector<8x32xf32>
    tpu.vector_store %arg23[%c0_344, %c0_345], %521 {strides = array<i32>} : memref<16x32xf32, #tpu.memory_space<vmem>>, vector<8x32xf32>,
    %523 = vector.extract_strided_slice %485 {offsets = [8, 0], sizes = [8, 8], strides = [1, 1]} : vector<16x8xf32> to vector<8x8xf32>
    %524 = vector.extract_strided_slice %492 {offsets = [8, 0], sizes = [8, 8], strides = [1, 1]} : vector<16x8xf32> to vector<8x8xf32>
    %525 = vector.extract_strided_slice %499 {offsets = [8, 0], sizes = [8, 8], strides = [1, 1]} : vector<16x8xf32> to vector<8x8xf32>
    %cst_346 = arith.constant dense<0.000000e+00> : vector<8x8xf32>
    %526 = tpu.matmul %523, %524, %cst_346 {dimension_numbers = #tpu.dot_dimension_numbers<[1], [1], [0], [0], [0, 0, 1, 0], [], []>} : vector<8x8xf32>, vector<8x8xf32>, vector<8x8xf32> -> vector<8x8xf32>
    %cst_347 = arith.constant 0.353553385 : f32
    %527 = vector.broadcast %cst_347 : f32 to vector<8x8xf32>
    %528 = arith.mulf %526, %527 : vector<8x8xf32>
    %cst_348 = arith.constant dense<0xFF800000> : vector<8xf32>
    %529 = vector.multi_reduction <maximumf>, %528, %cst_348 [1] : vector<8x8xf32> to vector<8xf32>
    %530 = vector.shape_cast %529 : vector<8xf32> to vector<8x1xf32>
    %531 = vector.broadcast %530 : vector<8x1xf32> to vector<8x8xf32>
    %532 = arith.subf %528, %531 : vector<8x8xf32>
    %533 = math.exp %532 : vector<8x8xf32>
    %cst_349 = arith.constant dense<0.000000e+00> : vector<8xf32>
    %534 = vector.multi_reduction <add>, %533, %cst_349 [1] : vector<8x8xf32> to vector<8xf32>
    %535 = vector.shape_cast %534 : vector<8xf32> to vector<8x1xf32>
    %536 = tpu.reciprocal %535 {approx = true} : vector<8x1xf32> -> vector<8x1xf32>
    %537 = vector.broadcast %536 : vector<8x1xf32> to vector<8x8xf32>
    %538 = arith.mulf %533, %537 : vector<8x8xf32>
    %cst_350 = arith.constant dense<0.000000e+00> : vector<8x8xf32>
    %539 = tpu.matmul %538, %525, %cst_350 {dimension_numbers = #tpu.dot_dimension_numbers<[1], [0], [0], [1], [0, 0, 1, 1], [], []>} : vector<8x8xf32>, vector<8x8xf32>, vector<8x8xf32> -> vector<8x8xf32>
    %c8_351 = arith.constant 8 : index
    %c0_352 = arith.constant 0 : index
    %540 = vector.load %arg23[%c8_351, %c0_352] : memref<16x32xf32, #tpu.memory_space<vmem>>, vector<8x32xf32>
    %cst_353 = arith.constant dense<0.000000e+00> : vector<8x32xf32>
    %541 = tpu.matmul %539, %501, %cst_353 {dimension_numbers = #tpu.dot_dimension_numbers<[1], [0], [0], [1], [0, 0, 1, 1], [], []>} : vector<8x8xf32>, vector<8x32xf32>, vector<8x32xf32> -> vector<8x32xf32>
    %542 = arith.addf %540, %541 : vector<8x32xf32>
    %c8_354 = arith.constant 8 : index
    %c0_355 = arith.constant 0 : index
    %543 = vector.load %arg23[%c8_354, %c0_355] : memref<16x32xf32, #tpu.memory_space<vmem>>, vector<8x32xf32>
    tpu.vector_store %arg23[%c8_354, %c0_355], %542 {strides = array<i32>} : memref<16x32xf32, #tpu.memory_space<vmem>>, vector<8x32xf32>,
    %c7 = arith.constant 7 : index
    %c0_356 = arith.constant 0 : index
    %c0_357 = arith.constant 0 : index
    %544 = vector.load %arg4[%c7, %c0_356, %c0_357] : memref<8x8x32xf32, #tpu.memory_space<vmem>>, vector<1x8x32xf32>
    %545 = vector.shape_cast %544 : vector<1x8x32xf32> to vector<8x32xf32>
    %cst_358 = arith.constant dense<0.000000e+00> : vector<16x8xf32>
    %546 = tpu.matmul %346, %545, %cst_358 {dimension_numbers = #tpu.dot_dimension_numbers<[1], [1], [0], [0], [0, 0, 1, 0], [], []>} : vector<16x32xf32>, vector<8x32xf32>, vector<16x8xf32> -> vector<16x8xf32>
    %c7_359 = arith.constant 7 : index
    %c0_360 = arith.constant 0 : index
    %c0_361 = arith.constant 0 : index
    %547 = vector.load %arg5[%c7_359, %c0_360, %c0_361] : memref<8x1x8xf32, #tpu.memory_space<vmem>>, vector<1x1x8xf32>
    %548 = vector.shape_cast %547 : vector<1x1x8xf32> to vector<1x8xf32>
    %549 = vector.broadcast %548 : vector<1x8xf32> to vector<16x8xf32>
    %550 = arith.addf %546, %549 : vector<16x8xf32>
    %c7_362 = arith.constant 7 : index
    %c0_363 = arith.constant 0 : index
    %c0_364 = arith.constant 0 : index
    %551 = vector.load %arg6[%c7_362, %c0_363, %c0_364] : memref<8x8x32xf32, #tpu.memory_space<vmem>>, vector<1x8x32xf32>
    %552 = vector.shape_cast %551 : vector<1x8x32xf32> to vector<8x32xf32>
    %cst_365 = arith.constant dense<0.000000e+00> : vector<16x8xf32>
    %553 = tpu.matmul %346, %552, %cst_365 {dimension_numbers = #tpu.dot_dimension_numbers<[1], [1], [0], [0], [0, 0, 1, 0], [], []>} : vector<16x32xf32>, vector<8x32xf32>, vector<16x8xf32> -> vector<16x8xf32>
    %c7_366 = arith.constant 7 : index
    %c0_367 = arith.constant 0 : index
    %c0_368 = arith.constant 0 : index
    %554 = vector.load %arg7[%c7_366, %c0_367, %c0_368] : memref<8x1x8xf32, #tpu.memory_space<vmem>>, vector<1x1x8xf32>
    %555 = vector.shape_cast %554 : vector<1x1x8xf32> to vector<1x8xf32>
    %556 = vector.broadcast %555 : vector<1x8xf32> to vector<16x8xf32>
    %557 = arith.addf %553, %556 : vector<16x8xf32>
    %c7_369 = arith.constant 7 : index
    %c0_370 = arith.constant 0 : index
    %c0_371 = arith.constant 0 : index
    %558 = vector.load %arg8[%c7_369, %c0_370, %c0_371] : memref<8x8x32xf32, #tpu.memory_space<vmem>>, vector<1x8x32xf32>
    %559 = vector.shape_cast %558 : vector<1x8x32xf32> to vector<8x32xf32>
    %cst_372 = arith.constant dense<0.000000e+00> : vector<16x8xf32>
    %560 = tpu.matmul %346, %559, %cst_372 {dimension_numbers = #tpu.dot_dimension_numbers<[1], [1], [0], [0], [0, 0, 1, 0], [], []>} : vector<16x32xf32>, vector<8x32xf32>, vector<16x8xf32> -> vector<16x8xf32>
    %c7_373 = arith.constant 7 : index
    %c0_374 = arith.constant 0 : index
    %c0_375 = arith.constant 0 : index
    %561 = vector.load %arg9[%c7_373, %c0_374, %c0_375] : memref<8x1x8xf32, #tpu.memory_space<vmem>>, vector<1x1x8xf32>
    %562 = vector.shape_cast %561 : vector<1x1x8xf32> to vector<1x8xf32>
    %563 = vector.broadcast %562 : vector<1x8xf32> to vector<16x8xf32>
    %564 = arith.addf %560, %563 : vector<16x8xf32>
    %c7_376 = arith.constant 7 : index
    %c0_377 = arith.constant 0 : index
    %c0_378 = arith.constant 0 : index
    %565 = vector.load %arg10[%c7_376, %c0_377, %c0_378] : memref<8x8x32xf32, #tpu.memory_space<vmem>>, vector<1x8x32xf32>
    %566 = vector.shape_cast %565 : vector<1x8x32xf32> to vector<8x32xf32>
    %567 = vector.extract_strided_slice %550 {offsets = [0, 0], sizes = [8, 8], strides = [1, 1]} : vector<16x8xf32> to vector<8x8xf32>
    %568 = vector.extract_strided_slice %557 {offsets = [0, 0], sizes = [8, 8], strides = [1, 1]} : vector<16x8xf32> to vector<8x8xf32>
    %569 = vector.extract_strided_slice %564 {offsets = [0, 0], sizes = [8, 8], strides = [1, 1]} : vector<16x8xf32> to vector<8x8xf32>
    %cst_379 = arith.constant dense<0.000000e+00> : vector<8x8xf32>
    %570 = tpu.matmul %567, %568, %cst_379 {dimension_numbers = #tpu.dot_dimension_numbers<[1], [1], [0], [0], [0, 0, 1, 0], [], []>} : vector<8x8xf32>, vector<8x8xf32>, vector<8x8xf32> -> vector<8x8xf32>
    %cst_380 = arith.constant 0.353553385 : f32
    %571 = vector.broadcast %cst_380 : f32 to vector<8x8xf32>
    %572 = arith.mulf %570, %571 : vector<8x8xf32>
    %cst_381 = arith.constant dense<0xFF800000> : vector<8xf32>
    %573 = vector.multi_reduction <maximumf>, %572, %cst_381 [1] : vector<8x8xf32> to vector<8xf32>
    %574 = vector.shape_cast %573 : vector<8xf32> to vector<8x1xf32>
    %575 = vector.broadcast %574 : vector<8x1xf32> to vector<8x8xf32>
    %576 = arith.subf %572, %575 : vector<8x8xf32>
    %577 = math.exp %576 : vector<8x8xf32>
    %cst_382 = arith.constant dense<0.000000e+00> : vector<8xf32>
    %578 = vector.multi_reduction <add>, %577, %cst_382 [1] : vector<8x8xf32> to vector<8xf32>
    %579 = vector.shape_cast %578 : vector<8xf32> to vector<8x1xf32>
    %580 = tpu.reciprocal %579 {approx = true} : vector<8x1xf32> -> vector<8x1xf32>
    %581 = vector.broadcast %580 : vector<8x1xf32> to vector<8x8xf32>
    %582 = arith.mulf %577, %581 : vector<8x8xf32>
    %cst_383 = arith.constant dense<0.000000e+00> : vector<8x8xf32>
    %583 = tpu.matmul %582, %569, %cst_383 {dimension_numbers = #tpu.dot_dimension_numbers<[1], [0], [0], [1], [0, 0, 1, 1], [], []>} : vector<8x8xf32>, vector<8x8xf32>, vector<8x8xf32> -> vector<8x8xf32>
    %c0_384 = arith.constant 0 : index
    %c0_385 = arith.constant 0 : index
    %584 = vector.load %arg23[%c0_384, %c0_385] : memref<16x32xf32, #tpu.memory_space<vmem>>, vector<8x32xf32>
    %cst_386 = arith.constant dense<0.000000e+00> : vector<8x32xf32>
    %585 = tpu.matmul %583, %566, %cst_386 {dimension_numbers = #tpu.dot_dimension_numbers<[1], [0], [0], [1], [0, 0, 1, 1], [], []>} : vector<8x8xf32>, vector<8x32xf32>, vector<8x32xf32> -> vector<8x32xf32>
    %586 = arith.addf %584, %585 : vector<8x32xf32>
    %c0_387 = arith.constant 0 : index
    %c0_388 = arith.constant 0 : index
    %587 = vector.load %arg23[%c0_387, %c0_388] : memref<16x32xf32, #tpu.memory_space<vmem>>, vector<8x32xf32>
    tpu.vector_store %arg23[%c0_387, %c0_388], %586 {strides = array<i32>} : memref<16x32xf32, #tpu.memory_space<vmem>>, vector<8x32xf32>,
    %588 = vector.extract_strided_slice %550 {offsets = [8, 0], sizes = [8, 8], strides = [1, 1]} : vector<16x8xf32> to vector<8x8xf32>
    %589 = vector.extract_strided_slice %557 {offsets = [8, 0], sizes = [8, 8], strides = [1, 1]} : vector<16x8xf32> to vector<8x8xf32>
    %590 = vector.extract_strided_slice %564 {offsets = [8, 0], sizes = [8, 8], strides = [1, 1]} : vector<16x8xf32> to vector<8x8xf32>
    %cst_389 = arith.constant dense<0.000000e+00> : vector<8x8xf32>
    %591 = tpu.matmul %588, %589, %cst_389 {dimension_numbers = #tpu.dot_dimension_numbers<[1], [1], [0], [0], [0, 0, 1, 0], [], []>} : vector<8x8xf32>, vector<8x8xf32>, vector<8x8xf32> -> vector<8x8xf32>
    %cst_390 = arith.constant 0.353553385 : f32
    %592 = vector.broadcast %cst_390 : f32 to vector<8x8xf32>
    %593 = arith.mulf %591, %592 : vector<8x8xf32>
    %cst_391 = arith.constant dense<0xFF800000> : vector<8xf32>
    %594 = vector.multi_reduction <maximumf>, %593, %cst_391 [1] : vector<8x8xf32> to vector<8xf32>
    %595 = vector.shape_cast %594 : vector<8xf32> to vector<8x1xf32>
    %596 = vector.broadcast %595 : vector<8x1xf32> to vector<8x8xf32>
    %597 = arith.subf %593, %596 : vector<8x8xf32>
    %598 = math.exp %597 : vector<8x8xf32>
    %cst_392 = arith.constant dense<0.000000e+00> : vector<8xf32>
    %599 = vector.multi_reduction <add>, %598, %cst_392 [1] : vector<8x8xf32> to vector<8xf32>
    %600 = vector.shape_cast %599 : vector<8xf32> to vector<8x1xf32>
    %601 = tpu.reciprocal %600 {approx = true} : vector<8x1xf32> -> vector<8x1xf32>
    %602 = vector.broadcast %601 : vector<8x1xf32> to vector<8x8xf32>
    %603 = arith.mulf %598, %602 : vector<8x8xf32>
    %cst_393 = arith.constant dense<0.000000e+00> : vector<8x8xf32>
    %604 = tpu.matmul %603, %590, %cst_393 {dimension_numbers = #tpu.dot_dimension_numbers<[1], [0], [0], [1], [0, 0, 1, 1], [], []>} : vector<8x8xf32>, vector<8x8xf32>, vector<8x8xf32> -> vector<8x8xf32>
    %c8_394 = arith.constant 8 : index
    %c0_395 = arith.constant 0 : index
    %605 = vector.load %arg23[%c8_394, %c0_395] : memref<16x32xf32, #tpu.memory_space<vmem>>, vector<8x32xf32>
    %cst_396 = arith.constant dense<0.000000e+00> : vector<8x32xf32>
    %606 = tpu.matmul %604, %566, %cst_396 {dimension_numbers = #tpu.dot_dimension_numbers<[1], [0], [0], [1], [0, 0, 1, 1], [], []>} : vector<8x8xf32>, vector<8x32xf32>, vector<8x32xf32> -> vector<8x32xf32>
    %607 = arith.addf %605, %606 : vector<8x32xf32>
    %c8_397 = arith.constant 8 : index
    %c0_398 = arith.constant 0 : index
    %608 = vector.load %arg23[%c8_397, %c0_398] : memref<16x32xf32, #tpu.memory_space<vmem>>, vector<8x32xf32>
    tpu.vector_store %arg23[%c8_397, %c0_398], %607 {strides = array<i32>} : memref<16x32xf32, #tpu.memory_space<vmem>>, vector<8x32xf32>,
    %c0_399 = arith.constant 0 : index
    %c0_400 = arith.constant 0 : index
    %609 = vector.load %arg23[%c0_399, %c0_400] : memref<16x32xf32, #tpu.memory_space<vmem>>, vector<16x32xf32>
    %c1_401 = arith.constant 1 : index
    %c0_402 = arith.constant 0 : index
    %c0_403 = arith.constant 0 : index
    %610 = vector.load %arg11[%c1_401, %c0_402, %c0_403] : memref<2x1x32xf32, #tpu.memory_space<vmem>>, vector<1x1x32xf32>
    %611 = vector.shape_cast %610 : vector<1x1x32xf32> to vector<1x32xf32>
    %612 = vector.broadcast %611 : vector<1x32xf32> to vector<16x32xf32>
    %613 = arith.addf %609, %612 : vector<16x32xf32>
    %614 = arith.addf %346, %613 : vector<16x32xf32>
    %c1_404 = arith.constant 1 : index
    %c0_405 = arith.constant 0 : index
    %c0_406 = arith.constant 0 : index
    %615 = vector.load %arg12[%c1_404, %c0_405, %c0_406] : memref<2x1x32xf32, #tpu.memory_space<vmem>>, vector<1x1x32xf32>
    %616 = vector.shape_cast %615 : vector<1x1x32xf32> to vector<1x32xf32>
    %c1_407 = arith.constant 1 : index
    %c0_408 = arith.constant 0 : index
    %c0_409 = arith.constant 0 : index
    %617 = vector.load %arg13[%c1_407, %c0_408, %c0_409] : memref<2x1x32xf32, #tpu.memory_space<vmem>>, vector<1x1x32xf32>
    %618 = vector.shape_cast %617 : vector<1x1x32xf32> to vector<1x32xf32>
    %cst_410 = arith.constant dense<0.000000e+00> : vector<16xf32>
    %619 = vector.multi_reduction <add>, %614, %cst_410 [1] : vector<16x32xf32> to vector<16xf32>
    %620 = vector.shape_cast %619 : vector<16xf32> to vector<16x1xf32>
    %cst_411 = arith.constant 3.200000e+01 : f32
    %621 = vector.broadcast %cst_411 : f32 to vector<16x1xf32>
    %622 = arith.divf %620, %621 : vector<16x1xf32>
    %623 = vector.broadcast %622 : vector<16x1xf32> to vector<16x32xf32>
    %624 = arith.subf %614, %623 : vector<16x32xf32>
    %625 = arith.mulf %624, %624 : vector<16x32xf32>
    %cst_412 = arith.constant dense<0.000000e+00> : vector<16xf32>
    %626 = vector.multi_reduction <add>, %625, %cst_412 [1] : vector<16x32xf32> to vector<16xf32>
    %627 = vector.shape_cast %626 : vector<16xf32> to vector<16x1xf32>
    %cst_413 = arith.constant 3.200000e+01 : f32
    %628 = vector.broadcast %cst_413 : f32 to vector<16x1xf32>
    %629 = arith.divf %627, %628 : vector<16x1xf32>
    %630 = vector.broadcast %622 : vector<16x1xf32> to vector<16x32xf32>
    %631 = arith.subf %614, %630 : vector<16x32xf32>
    %cst_414 = arith.constant 9.99999974E-6 : f32
    %632 = vector.broadcast %cst_414 : f32 to vector<16x1xf32>
    %633 = arith.addf %629, %632 : vector<16x1xf32>
    %634 = math.rsqrt %633 : vector<16x1xf32>
    %635 = vector.broadcast %634 : vector<16x1xf32> to vector<16x32xf32>
    %636 = arith.mulf %631, %635 : vector<16x32xf32>
    %637 = vector.broadcast %616 : vector<1x32xf32> to vector<16x32xf32>
    %638 = arith.mulf %636, %637 : vector<16x32xf32>
    %639 = vector.broadcast %618 : vector<1x32xf32> to vector<16x32xf32>
    %640 = arith.addf %638, %639 : vector<16x32xf32>
    %641 = arith.truncf %640 : vector<16x32xf32> to vector<16x32xbf16>
    %c1_415 = arith.constant 1 : index
    %c0_416 = arith.constant 0 : index
    %c0_417 = arith.constant 0 : index
    %642 = vector.load %arg14[%c1_415, %c0_416, %c0_417] : memref<2x32x2048xbf16, #tpu.memory_space<vmem>>, vector<1x32x2048xbf16>
    %643 = vector.shape_cast %642 : vector<1x32x2048xbf16> to vector<32x2048xbf16>
    %cst_418 = arith.constant dense<0.000000e+00> : vector<16x2048xf32>
    %644 = tpu.matmul %641, %643, %cst_418 {dimension_numbers = #tpu.dot_dimension_numbers<[1], [0], [0], [1], [0, 0, 1, 1], [], []>} : vector<16x32xbf16>, vector<32x2048xbf16>, vector<16x2048xf32> -> vector<16x2048xf32>
    %c1_419 = arith.constant 1 : index
    %c0_420 = arith.constant 0 : index
    %c0_421 = arith.constant 0 : index
    %645 = vector.load %arg15[%c1_419, %c0_420, %c0_421] : memref<2x1x2048xf32, #tpu.memory_space<vmem>>, vector<1x1x2048xf32>
    %646 = vector.shape_cast %645 : vector<1x1x2048xf32> to vector<1x2048xf32>
    %647 = vector.broadcast %646 : vector<1x2048xf32> to vector<16x2048xf32>
    %648 = arith.addf %644, %647 : vector<16x2048xf32>
    %cst_422 = arith.constant 0.000000e+00 : f32
    %649 = vector.broadcast %cst_422 : f32 to vector<16x2048xf32>
    %650 = arith.maximumf %648, %649 : vector<16x2048xf32>
    %651 = arith.truncf %650 : vector<16x2048xf32> to vector<16x2048xbf16>
    %c1_423 = arith.constant 1 : index
    %c0_424 = arith.constant 0 : index
    %c0_425 = arith.constant 0 : index
    %652 = vector.load %arg16[%c1_423, %c0_424, %c0_425] : memref<2x32x2048xbf16, #tpu.memory_space<vmem>>, vector<1x32x2048xbf16>
    %653 = vector.shape_cast %652 : vector<1x32x2048xbf16> to vector<32x2048xbf16>
    %cst_426 = arith.constant dense<0.000000e+00> : vector<16x32xf32>
    %654 = tpu.matmul %651, %653, %cst_426 {dimension_numbers = #tpu.dot_dimension_numbers<[1], [1], [0], [0], [0, 0, 1, 0], [], []>} : vector<16x2048xbf16>, vector<32x2048xbf16>, vector<16x32xf32> -> vector<16x32xf32>
    %c1_427 = arith.constant 1 : index
    %c0_428 = arith.constant 0 : index
    %c0_429 = arith.constant 0 : index
    %655 = vector.load %arg17[%c1_427, %c0_428, %c0_429] : memref<2x1x32xf32, #tpu.memory_space<vmem>>, vector<1x1x32xf32>
    %656 = vector.shape_cast %655 : vector<1x1x32xf32> to vector<1x32xf32>
    %657 = vector.broadcast %656 : vector<1x32xf32> to vector<16x32xf32>
    %658 = arith.addf %654, %657 : vector<16x32xf32>
    %659 = arith.addf %640, %658 : vector<16x32xf32>
    %c1_430 = arith.constant 1 : index
    %c0_431 = arith.constant 0 : index
    %c0_432 = arith.constant 0 : index
    %660 = vector.load %arg18[%c1_430, %c0_431, %c0_432] : memref<2x1x32xf32, #tpu.memory_space<vmem>>, vector<1x1x32xf32>
    %661 = vector.shape_cast %660 : vector<1x1x32xf32> to vector<1x32xf32>
    %c1_433 = arith.constant 1 : index
    %c0_434 = arith.constant 0 : index
    %c0_435 = arith.constant 0 : index
    %662 = vector.load %arg19[%c1_433, %c0_434, %c0_435] : memref<2x1x32xf32, #tpu.memory_space<vmem>>, vector<1x1x32xf32>
    %663 = vector.shape_cast %662 : vector<1x1x32xf32> to vector<1x32xf32>
    %cst_436 = arith.constant dense<0.000000e+00> : vector<16xf32>
    %664 = vector.multi_reduction <add>, %659, %cst_436 [1] : vector<16x32xf32> to vector<16xf32>
    %665 = vector.shape_cast %664 : vector<16xf32> to vector<16x1xf32>
    %cst_437 = arith.constant 3.200000e+01 : f32
    %666 = vector.broadcast %cst_437 : f32 to vector<16x1xf32>
    %667 = arith.divf %665, %666 : vector<16x1xf32>
    %668 = vector.broadcast %667 : vector<16x1xf32> to vector<16x32xf32>
    %669 = arith.subf %659, %668 : vector<16x32xf32>
    %670 = arith.mulf %669, %669 : vector<16x32xf32>
    %cst_438 = arith.constant dense<0.000000e+00> : vector<16xf32>
    %671 = vector.multi_reduction <add>, %670, %cst_438 [1] : vector<16x32xf32> to vector<16xf32>
    %672 = vector.shape_cast %671 : vector<16xf32> to vector<16x1xf32>
    %cst_439 = arith.constant 3.200000e+01 : f32
    %673 = vector.broadcast %cst_439 : f32 to vector<16x1xf32>
    %674 = arith.divf %672, %673 : vector<16x1xf32>
    %675 = vector.broadcast %667 : vector<16x1xf32> to vector<16x32xf32>
    %676 = arith.subf %659, %675 : vector<16x32xf32>
    %cst_440 = arith.constant 9.99999974E-6 : f32
    %677 = vector.broadcast %cst_440 : f32 to vector<16x1xf32>
    %678 = arith.addf %674, %677 : vector<16x1xf32>
    %679 = math.rsqrt %678 : vector<16x1xf32>
    %680 = vector.broadcast %679 : vector<16x1xf32> to vector<16x32xf32>
    %681 = arith.mulf %676, %680 : vector<16x32xf32>
    %682 = vector.broadcast %661 : vector<1x32xf32> to vector<16x32xf32>
    %683 = arith.mulf %681, %682 : vector<16x32xf32>
    %684 = vector.broadcast %663 : vector<1x32xf32> to vector<16x32xf32>
    %685 = arith.addf %683, %684 : vector<16x32xf32>
    %c0_441 = arith.constant 0 : index
    %c0_442 = arith.constant 0 : index
    %686 = vector.load %arg20[%c0_441, %c0_442] : memref<4x32xf32, #tpu.memory_space<vmem>>, vector<4x32xf32>
    %cst_443 = arith.constant dense<0.000000e+00> : vector<16x4xf32>
    %687 = tpu.matmul %685, %686, %cst_443 {dimension_numbers = #tpu.dot_dimension_numbers<[1], [1], [0], [0], [0, 0, 1, 0], [], []>} : vector<16x32xf32>, vector<4x32xf32>, vector<16x4xf32> -> vector<16x4xf32>
    %c0_444 = arith.constant 0 : index
    %c0_445 = arith.constant 0 : index
    %688 = vector.load %arg21[%c0_444, %c0_445] : memref<1x4xf32, #tpu.memory_space<vmem>>, vector<1x4xf32>
    %689 = vector.broadcast %688 : vector<1x4xf32> to vector<16x4xf32>
    %690 = arith.addf %687, %689 : vector<16x4xf32>
    %c0_446 = arith.constant 0 : index
    %c0_447 = arith.constant 0 : index
    %691 = vector.load %arg22[%c0_446, %c0_447] : memref<16x4xf32, #tpu.memory_space<vmem>>, vector<16x4xf32>
    tpu.vector_store %arg22[%c0_446, %c0_447], %690 {strides = array<i32>} : memref<16x4xf32, #tpu.memory_space<vmem>>, vector<16x4xf32>,
    return
  }
}

</mosaic_0001>

<llo_original>
// kernel: transformer_ais_forward.1
$region0: #{transformer_ais_forward.1}
  #allocation0 [shape = 'u32[]', space=smem, size = 0x4, offset = 0x4, fixed_abs, tag = 'smem constant byte address 0x4 - core index']
  #allocation1 [shape = 'u32[72,128]{1,0:T(1,128)}', space=vmem, size = 0x9000, scoped, tag = 'internal scratch']
  #allocation2 [shape = 'f32[16,32]{1,0:T(8,128)}', space=vmem, size = 0x2000, scoped, tag = 'scratch operand']
  %s0 = inlined_call_operand.vmem [shape: f32[16,4], index: 0, kind: input, shape index: {}]
  %s1 = inlined_call_operand.vmem [shape: f32[16,32], index: 1, kind: input, shape index: {}]
  %s2 = inlined_call_operand.hbm [shape: f32[4,32], index: 2, kind: input, shape index: {}]
  %s3 = inlined_call_operand.vmem [shape: f32[1,32], index: 3, kind: input, shape index: {}]
  %s4 = inlined_call_operand.vmem [shape: f32[8,8,32], index: 4, kind: input, shape index: {}]
  %s5 = inlined_call_operand.vmem [shape: f32[8,1,8], index: 5, kind: input, shape index: {}]
  %s6 = inlined_call_operand.hbm [shape: f32[8,8,32], index: 6, kind: input, shape index: {}]
  %s7 = inlined_call_operand.vmem [shape: f32[8,1,8], index: 7, kind: input, shape index: {}]
  %s8 = inlined_call_operand.hbm [shape: f32[8,8,32], index: 8, kind: input, shape index: {}]
  %s9 = inlined_call_operand.vmem [shape: f32[8,1,8], index: 9, kind: input, shape index: {}]
  %s10 = inlined_call_operand.hbm [shape: f32[8,8,32], index: 10, kind: input, shape index: {}]
  %s11 = inlined_call_operand.hbm [shape: f32[2,1,32], index: 11, kind: input, shape index: {}]
  %s12 = inlined_call_operand.hbm [shape: f32[2,1,32], index: 12, kind: input, shape index: {}]
  %s13 = inlined_call_operand.hbm [shape: f32[2,1,32], index: 13, kind: input, shape index: {}]
  %s14 = inlined_call_operand.hbm [shape: bf16[2,32,2048], index: 14, kind: input, shape index: {}]
  %s15 = inlined_call_operand.hbm [shape: f32[2,1,2048], index: 15, kind: input, shape index: {}]
  %s16 = inlined_call_operand.hbm [shape: bf16[2,32,2048], index: 16, kind: input, shape index: {}]
  %s17 = inlined_call_operand.hbm [shape: f32[2,1,32], index: 17, kind: input, shape index: {}]
  %s18 = inlined_call_operand.hbm [shape: f32[2,1,32], index: 18, kind: input, shape index: {}]
  %s19 = inlined_call_operand.hbm [shape: f32[2,1,32], index: 19, kind: input, shape index: {}]
  %s20 = inlined_call_operand.hbm [shape: f32[4,32], index: 20, kind: input, shape index: {}]
  %s21 = inlined_call_operand.hbm [shape: f32[1,4], index: 21, kind: input, shape index: {}]
  %s22 = inlined_call_operand.vmem [shape: f32[16,4], index: 22, kind: output, shape index: {}]
  %s23 = sld [smem:[#allocation0]]
  $region158: #{transformer_ais_forward.1} parent=0
    _
  %s25 = ssub.s32 1, %s23
  %s26 = scalar_select 0, %s25, %s23
  $region1: #{transformer_ais_forward.1} parent=0
    #allocation3 [shape = 'u8[2048]{0}', space=vmem, size = 0x800, scoped, tag = 'input window, operand 2, single buffered']
    #allocation4 [shape = 's32[1]{0}', space=sflag, size = 0x4, scoped, tag = 'scoped memory for transformer_ais_forward.1']
    #allocation5 [shape = 'u8[32768]{0}', space=vmem, size = 0x8000, scoped, tag = 'input window, operand 6, single buffered']
    #allocation6 [shape = 's32[1]{0}', space=sflag, size = 0x4, scoped, tag = 'scoped memory for transformer_ais_forward.1']
    #allocation7 [shape = 'u8[32768]{0}', space=vmem, size = 0x8000, scoped, tag = 'input window, operand 8, single buffered']
    #allocation8 [shape = 'u8[32768]{0}', space=vmem, size = 0x8000, scoped, tag = 'input window, operand 10, single buffered']
    #allocation9 [shape = 's32[1]{0}', space=sflag, size = 0x4, scoped, tag = 'scoped memory for transformer_ais_forward.1']
    #allocation10 [shape = 'u8[1024]{0}', space=vmem, size = 0x400, scoped, tag = 'input window, operand 11, single buffered']
    #allocation11 [shape = 'u8[1024]{0}', space=vmem, size = 0x400, scoped, tag = 'input window, operand 12, single buffered']
    #allocation12 [shape = 's32[1]{0}', space=sflag, size = 0x4, scoped, tag = 'scoped memory for transformer_ais_forward.1']
    #allocation13 [shape = 'u8[1024]{0}', space=vmem, size = 0x400, scoped, tag = 'input window, operand 13, single buffered']
    #allocation14 [shape = 'u8[262144]{0}', space=vmem, size = 0x40000, scoped, tag = 'input window, operand 14, single buffered']
    #allocation15 [shape = 's32[1]{0}', space=sflag, size = 0x4, scoped, tag = 'scoped memory for transformer_ais_forward.1']
    #allocation16 [shape = 'u8[16384]{0}', space=vmem, size = 0x4000, scoped, tag = 'input window, operand 15, single buffered']
    #allocation17 [shape = 'u8[262144]{0}', space=vmem, size = 0x40000, scoped, tag = 'input window, operand 16, single buffered']
    #allocation18 [shape = 's32[1]{0}', space=sflag, size = 0x4, scoped, tag = 'scoped memory for transformer_ais_forward.1']
    #allocation19 [shape = 'u8[1024]{0}', space=vmem, size = 0x400, scoped, tag = 'input window, operand 17, single buffered']
    #allocation20 [shape = 'u8[1024]{0}', space=vmem, size = 0x400, scoped, tag = 'input window, operand 18, single buffered']
    #allocation21 [shape = 's32[1]{0}', space=sflag, size = 0x4, scoped, tag = 'scoped memory for transformer_ais_forward.1']
    #allocation22 [shape = 'u8[1024]{0}', space=vmem, size = 0x400, scoped, tag = 'input window, operand 19, single buffered']
    #allocation23 [shape = 'u8[2048]{0}', space=vmem, size = 0x800, scoped, tag = 'input window, operand 20, single buffered']
    #allocation24 [shape = 's32[1]{0}', space=sflag, size = 0x4, scoped, tag = 'scoped memory for transformer_ais_forward.1']
    #allocation25 [shape = 'u8[512]{0}', space=vmem, size = 0x400, scoped, tag = 'input window, operand 21, single buffered']
    %27 = vsyncpa [#allocation4], 0
    %28 = vsyncpa [#allocation6], 0
    %29 = vsyncpa [#allocation9], 0
    %30 = vsyncpa [#allocation12], 0
    %31 = vsyncpa [#allocation15], 0
    %32 = vsyncpa [#allocation18], 0
    %33 = vsyncpa [#allocation21], 0
    %34 = vsyncpa [#allocation24], 0
    // Predicated region
    $region2: #{transformer_ais_forward.1} parent=1 // pred_check
      _
    $region3: #{transformer_ais_forward.1} parent=1 // pred_check_branch
      %36 = sbr.rel (0) target = $region5
    $region4: #{transformer_ais_forward.1} parent=1 // pred_region
      _
    $region5: #{transformer_ais_forward.1} parent=1 // pred_fallthru
      _
    // Predicated region
    $region6: #{transformer_ais_forward.1} parent=1 // pred_check
      _
    $region7: #{transformer_ais_forward.1} parent=1 // pred_check_branch
      %38 = sbr.rel (0) target = $region9
    $region8: #{transformer_ais_forward.1} parent=1 // pred_region
      _
    $region9: #{transformer_ais_forward.1} parent=1 // pred_fallthru
      _
    // Predicated region
    $region10: #{transformer_ais_forward.1} parent=1 // pred_check
      _
    $region11: #{transformer_ais_forward.1} parent=1 // pred_check_branch
      %40 = sbr.rel (0) target = $region13
    $region12: #{transformer_ais_forward.1} parent=1 // pred_region
      %42 = vsyncadd [#allocation4], 0
      %s44 = sshll.u32 %s2, 4
      %s45 = int_to_ptr.hbm [resolvable:$true] %s44
      %s46 = sshll.u32 [#allocation3], 4
      %s47 = int_to_ptr.vmem [resolvable:$true] %s46
      %49 = dma.hbm_to_vmem [thread:$0]  %s45, 64, %s47, [#allocation4]
    $region13: #{transformer_ais_forward.1} parent=1 // pred_fallthru
      _
    // Predicated region
    $region14: #{transformer_ais_forward.1} parent=1 // pred_check
      _
    $region15: #{transformer_ais_forward.1} parent=1 // pred_check_branch
      %51 = sbr.rel (0) target = $region17
    $region16: #{transformer_ais_forward.1} parent=1 // pred_region
      _
    $region17: #{transformer_ais_forward.1} parent=1 // pred_fallthru
      _
    // Predicated region
    $region18: #{transformer_ais_forward.1} parent=1 // pred_check
      _
    $region19: #{transformer_ais_forward.1} parent=1 // pred_check_branch
      %53 = sbr.rel (0) target = $region21
    $region20: #{transformer_ais_forward.1} parent=1 // pred_region
      _
    $region21: #{transformer_ais_forward.1} parent=1 // pred_fallthru
      _
    // Predicated region
    $region22: #{transformer_ais_forward.1} parent=1 // pred_check
      _
    $region23: #{transformer_ais_forward.1} parent=1 // pred_check_branch
      %55 = sbr.rel (0) target = $region25
    $region24: #{transformer_ais_forward.1} parent=1 // pred_region
      _
    $region25: #{transformer_ais_forward.1} parent=1 // pred_fallthru
      _
    // Predicated region
    $region26: #{transformer_ais_forward.1} parent=1 // pred_check
      _
    $region27: #{transformer_ais_forward.1} parent=1 // pred_check_branch
      %57 = sbr.rel (0) target = $region29
    $region28: #{transformer_ais_forward.1} parent=1 // pred_region
      %59 = vsyncadd [#allocation6], 0
      %s60 = sshll.u32 %s6, 4
      %s61 = int_to_ptr.hbm [resolvable:$true] %s60
      %s62 = sshll.u32 [#allocation5], 4
      %s63 = int_to_ptr.vmem [resolvable:$true] %s62
      %68 = dma.hbm_to_vmem [thread:$0]  %s61, 1024, %s63, [#allocation6], 128, 128, 8
    $region29: #{transformer_ais_forward.1} parent=1 // pred_fallthru
      _
    // Predicated region
    $region30: #{transformer_ais_forward.1} parent=1 // pred_check
      _
    $region31: #{transformer_ais_forward.1} parent=1 // pred_check_branch
      %70 = sbr.rel (0) target = $region33
    $region32: #{transformer_ais_forward.1} parent=1 // pred_region
      _
    $region33: #{transformer_ais_forward.1} parent=1 // pred_fallthru
      _
    // Predicated region
    $region34: #{transformer_ais_forward.1} parent=1 // pred_check
      _
    $region35: #{transformer_ais_forward.1} parent=1 // pred_check_branch
      %72 = sbr.rel (0) target = $region37
    $region36: #{transformer_ais_forward.1} parent=1 // pred_region
      %74 = vsyncadd [#allocation6], 0
      %s75 = sshll.u32 %s8, 4
      %s76 = int_to_ptr.hbm [resolvable:$true] %s75
      %s77 = sshll.u32 [#allocation7], 4
      %s78 = int_to_ptr.vmem [resolvable:$true] %s77
      %83 = dma.hbm_to_vmem [thread:$0]  %s76, 1024, %s78, [#allocation6], 128, 128, 8
    $region37: #{transformer_ais_forward.1} parent=1 // pred_fallthru
      _
    // Predicated region
    $region38: #{transformer_ais_forward.1} parent=1 // pred_check
      _
    $region39: #{transformer_ais_forward.1} parent=1 // pred_check_branch
      %85 = sbr.rel (0) target = $region41
    $region40: #{transformer_ais_forward.1} parent=1 // pred_region
      _
    $region41: #{transformer_ais_forward.1} parent=1 // pred_fallthru
      _
    // Predicated region
    $region42: #{transformer_ais_forward.1} parent=1 // pred_check
      _
    $region43: #{transformer_ais_forward.1} parent=1 // pred_check_branch
      %87 = sbr.rel (0) target = $region45
    $region44: #{transformer_ais_forward.1} parent=1 // pred_region
      %89 = vsyncadd [#allocation9], 0
      %s90 = sshll.u32 %s10, 4
      %s91 = int_to_ptr.hbm [resolvable:$true] %s90
      %s92 = sshll.u32 [#allocation8], 4
      %s93 = int_to_ptr.vmem [resolvable:$true] %s92
      %98 = dma.hbm_to_vmem [thread:$0]  %s91, 1024, %s93, [#allocation9], 128, 128, 8
    $region45: #{transformer_ais_forward.1} parent=1 // pred_fallthru
      _
    // Predicated region
    $region46: #{transformer_ais_forward.1} parent=1 // pred_check
      _
    $region47: #{transformer_ais_forward.1} parent=1 // pred_check_branch
      %100 = sbr.rel (0) target = $region49
    $region48: #{transformer_ais_forward.1} parent=1 // pred_region
      %102 = vsyncadd [#allocation9], 0
      %s103 = sshll.u32 %s11, 4
      %s104 = int_to_ptr.hbm [resolvable:$true] %s103
      %s105 = sshll.u32 [#allocation10], 4
      %s106 = int_to_ptr.vmem [resolvable:$true] %s105
      %111 = dma.hbm_to_vmem [thread:$0]  %s104, 32, %s106, [#allocation9], 16, 16, 1
    $region49: #{transformer_ais_forward.1} parent=1 // pred_fallthru
      _
    // Predicated region
    $region50: #{transformer_ais_forward.1} parent=1 // pred_check
      _
    $region51: #{transformer_ais_forward.1} parent=1 // pred_check_branch
      %113 = sbr.rel (0) target = $region53
    $region52: #{transformer_ais_forward.1} parent=1 // pred_region
      %115 = vsyncadd [#allocation12], 0
      %s116 = sshll.u32 %s12, 4
      %s117 = int_to_ptr.hbm [resolvable:$true] %s116
      %s118 = sshll.u32 [#allocation11], 4
      %s119 = int_to_ptr.vmem [resolvable:$true] %s118
      %124 = dma.hbm_to_vmem [thread:$0]  %s117, 32, %s119, [#allocation12], 16, 16, 1
    $region53: #{transformer_ais_forward.1} parent=1 // pred_fallthru
      _
    // Predicated region
    $region54: #{transformer_ais_forward.1} parent=1 // pred_check
      _
    $region55: #{transformer_ais_forward.1} parent=1 // pred_check_branch
      %126 = sbr.rel (0) target = $region57
    $region56: #{transformer_ais_forward.1} parent=1 // pred_region
      %128 = vsyncadd [#allocation12], 0
      %s129 = sshll.u32 %s13, 4
      %s130 = int_to_ptr.hbm [resolvable:$true] %s129
      %s131 = sshll.u32 [#allocation13], 4
      %s132 = int_to_ptr.vmem [resolvable:$true] %s131
      %137 = dma.hbm_to_vmem [thread:$0]  %s130, 32, %s132, [#allocation12], 16, 16, 1
    $region57: #{transformer_ais_forward.1} parent=1 // pred_fallthru
      _
    // Predicated region
    $region58: #{transformer_ais_forward.1} parent=1 // pred_check
      _
    $region59: #{transformer_ais_forward.1} parent=1 // pred_check_branch
      %139 = sbr.rel (0) target = $region61
    $region60: #{transformer_ais_forward.1} parent=1 // pred_region
      %141 = vsyncadd [#allocation15], 0
      %s142 = sshll.u32 %s14, 4
      %s143 = int_to_ptr.hbm [resolvable:$true] %s142
      %s144 = sshll.u32 [#allocation14], 4
      %s145 = int_to_ptr.vmem [resolvable:$true] %s144
      %150 = dma.hbm_to_vmem [thread:$0]  %s143, 8192, %s145, [#allocation15], 1024, 1024, 64
    $region61: #{transformer_ais_forward.1} parent=1 // pred_fallthru
      _
    // Predicated region
    $region62: #{transformer_ais_forward.1} parent=1 // pred_check
      _
    $region63: #{transformer_ais_forward.1} parent=1 // pred_check_branch
      %152 = sbr.rel (0) target = $region65
    $region64: #{transformer_ais_forward.1} parent=1 // pred_region
      %154 = vsyncadd [#allocation15], 0
      %s155 = sshll.u32 %s15, 4
      %s156 = int_to_ptr.hbm [resolvable:$true] %s155
      %s157 = sshll.u32 [#allocation16], 4
      %s158 = int_to_ptr.vmem [resolvable:$true] %s157
      %163 = dma.hbm_to_vmem [thread:$0]  %s156, 512, %s158, [#allocation15], 256, 256, 16
    $region65: #{transformer_ais_forward.1} parent=1 // pred_fallthru
      _
    // Predicated region
    $region66: #{transformer_ais_forward.1} parent=1 // pred_check
      _
    $region67: #{transformer_ais_forward.1} parent=1 // pred_check_branch
      %165 = sbr.rel (0) target = $region69
    $region68: #{transformer_ais_forward.1} parent=1 // pred_region
      %167 = vsyncadd [#allocation18], 0
      %s168 = sshll.u32 %s16, 4
      %s169 = int_to_ptr.hbm [resolvable:$true] %s168
      %s170 = sshll.u32 [#allocation17], 4
      %s171 = int_to_ptr.vmem [resolvable:$true] %s170
      %176 = dma.hbm_to_vmem [thread:$0]  %s169, 8192, %s171, [#allocation18], 1024, 1024, 64
    $region69: #{transformer_ais_forward.1} parent=1 // pred_fallthru
      _
    // Predicated region
    $region70: #{transformer_ais_forward.1} parent=1 // pred_check
      _
    $region71: #{transformer_ais_forward.1} parent=1 // pred_check_branch
      %178 = sbr.rel (0) target = $region73
    $region72: #{transformer_ais_forward.1} parent=1 // pred_region
      %180 = vsyncadd [#allocation18], 0
      %s181 = sshll.u32 %s17, 4
      %s182 = int_to_ptr.hbm [resolvable:$true] %s181
      %s183 = sshll.u32 [#allocation19], 4
      %s184 = int_to_ptr.vmem [resolvable:$true] %s183
      %189 = dma.hbm_to_vmem [thread:$0]  %s182, 32, %s184, [#allocation18], 16, 16, 1
    $region73: #{transformer_ais_forward.1} parent=1 // pred_fallthru
      _
    // Predicated region
    $region74: #{transformer_ais_forward.1} parent=1 // pred_check
      _
    $region75: #{transformer_ais_forward.1} parent=1 // pred_check_branch
      %191 = sbr.rel (0) target = $region77
    $region76: #{transformer_ais_forward.1} parent=1 // pred_region
      %193 = vsyncadd [#allocation21], 0
      %s194 = sshll.u32 %s18, 4
      %s195 = int_to_ptr.hbm [resolvable:$true] %s194
      %s196 = sshll.u32 [#allocation20], 4
      %s197 = int_to_ptr.vmem [resolvable:$true] %s196
      %202 = dma.hbm_to_vmem [thread:$0]  %s195, 32, %s197, [#allocation21], 16, 16, 1
    $region77: #{transformer_ais_forward.1} parent=1 // pred_fallthru
      _
    // Predicated region
    $region78: #{transformer_ais_forward.1} parent=1 // pred_check
      _
    $region79: #{transformer_ais_forward.1} parent=1 // pred_check_branch
      %204 = sbr.rel (0) target = $region81
    $region80: #{transformer_ais_forward.1} parent=1 // pred_region
      %206 = vsyncadd [#allocation21], 0
      %s207 = sshll.u32 %s19, 4
      %s208 = int_to_ptr.hbm [resolvable:$true] %s207
      %s209 = sshll.u32 [#allocation22], 4
      %s210 = int_to_ptr.vmem [resolvable:$true] %s209
      %215 = dma.hbm_to_vmem [thread:$0]  %s208, 32, %s210, [#allocation21], 16, 16, 1
    $region81: #{transformer_ais_forward.1} parent=1 // pred_fallthru
      _
    // Predicated region
    $region82: #{transformer_ais_forward.1} parent=1 // pred_check
      _
    $region83: #{transformer_ais_forward.1} parent=1 // pred_check_branch
      %217 = sbr.rel (0) target = $region85
    $region84: #{transformer_ais_forward.1} parent=1 // pred_region
      %219 = vsyncadd [#allocation24], 0
      %s221 = sshll.u32 %s20, 4
      %s222 = int_to_ptr.hbm [resolvable:$true] %s221
      %s223 = sshll.u32 [#allocation23], 4
      %s224 = int_to_ptr.vmem [resolvable:$true] %s223
      %226 = dma.hbm_to_vmem [thread:$0]  %s222, 64, %s224, [#allocation24]
    $region85: #{transformer_ais_forward.1} parent=1 // pred_fallthru
      _
    // Predicated region
    $region86: #{transformer_ais_forward.1} parent=1 // pred_check
      _
    $region87: #{transformer_ais_forward.1} parent=1 // pred_check_branch
      %228 = sbr.rel (0) target = $region89
    $region88: #{transformer_ais_forward.1} parent=1 // pred_region
      %230 = vsyncadd [#allocation24], 0
      %s232 = sshll.u32 %s21, 4
      %s233 = int_to_ptr.hbm [resolvable:$true] %s232
      %s234 = sshll.u32 [#allocation25], 4
      %s235 = int_to_ptr.vmem [resolvable:$true] %s234
      %237 = dma.hbm_to_vmem [thread:$0]  %s233, 16, %s235, [#allocation24]
    $region89: #{transformer_ais_forward.1} parent=1 // pred_fallthru
      _
    // Predicated region
    $region90: #{transformer_ais_forward.1} parent=1 // pred_check
      _
    $region91: #{transformer_ais_forward.1} parent=1 // pred_check_branch
      %239 = sbr.rel (0) target = $region93
    $region92: #{transformer_ais_forward.1} parent=1 // pred_region
      %241 = dma.done [#allocation4], 64
    $region93: #{transformer_ais_forward.1} parent=1 // pred_fallthru
      _
    // Predicated region
    $region94: #{transformer_ais_forward.1} parent=1 // pred_check
      _
    $region95: #{transformer_ais_forward.1} parent=1 // pred_check_branch
      %243 = sbr.rel (0) target = $region97
    $region96: #{transformer_ais_forward.1} parent=1 // pred_region
      %245 = dma.done [#allocation6], 1024
    $region97: #{transformer_ais_forward.1} parent=1 // pred_fallthru
      _
    // Predicated region
    $region98: #{transformer_ais_forward.1} parent=1 // pred_check
      _
    $region99: #{transformer_ais_forward.1} parent=1 // pred_check_branch
      %247 = sbr.rel (0) target = $region101
    $region100: #{transformer_ais_forward.1} parent=1 // pred_region
      %249 = dma.done [#allocation6], 1024
    $region101: #{transformer_ais_forward.1} parent=1 // pred_fallthru
      _
    // Predicated region
    $region102: #{transformer_ais_forward.1} parent=1 // pred_check
      _
    $region103: #{transformer_ais_forward.1} parent=1 // pred_check_branch
      %251 = sbr.rel (0) target = $region105
    $region104: #{transformer_ais_forward.1} parent=1 // pred_region
      %253 = dma.done [#allocation9], 1024
    $region105: #{transformer_ais_forward.1} parent=1 // pred_fallthru
      _
    // Predicated region
    $region106: #{transformer_ais_forward.1} parent=1 // pred_check
      _
    $region107: #{transformer_ais_forward.1} parent=1 // pred_check_branch
      %255 = sbr.rel (0) target = $region109
    $region108: #{transformer_ais_forward.1} parent=1 // pred_region
      %257 = dma.done [#allocation9], 32
    $region109: #{transformer_ais_forward.1} parent=1 // pred_fallthru
      _
    // Predicated region
    $region110: #{transformer_ais_forward.1} parent=1 // pred_check
      _
    $region111: #{transformer_ais_forward.1} parent=1 // pred_check_branch
      %259 = sbr.rel (0) target = $region113
    $region112: #{transformer_ais_forward.1} parent=1 // pred_region
      %261 = dma.done [#allocation12], 32
    $region113: #{transformer_ais_forward.1} parent=1 // pred_fallthru
      _
    // Predicated region
    $region114: #{transformer_ais_forward.1} parent=1 // pred_check
      _
    $region115: #{transformer_ais_forward.1} parent=1 // pred_check_branch
      %263 = sbr.rel (0) target = $region117
    $region116: #{transformer_ais_forward.1} parent=1 // pred_region
      %265 = dma.done [#allocation12], 32
    $region117: #{transformer_ais_forward.1} parent=1 // pred_fallthru
      _
    // Predicated region
    $region118: #{transformer_ais_forward.1} parent=1 // pred_check
      _
    $region119: #{transformer_ais_forward.1} parent=1 // pred_check_branch
      %267 = sbr.rel (0) target = $region121
    $region120: #{transformer_ais_forward.1} parent=1 // pred_region
      %269 = dma.done [#allocation15], 8192
    $region121: #{transformer_ais_forward.1} parent=1 // pred_fallthru
      _
    // Predicated region
    $region122: #{transformer_ais_forward.1} parent=1 // pred_check
      _
    $region123: #{transformer_ais_forward.1} parent=1 // pred_check_branch
      %271 = sbr.rel (0) target = $region125
    $region124: #{transformer_ais_forward.1} parent=1 // pred_region
      %273 = dma.done [#allocation15], 512
    $region125: #{transformer_ais_forward.1} parent=1 // pred_fallthru
      _
    // Predicated region
    $region126: #{transformer_ais_forward.1} parent=1 // pred_check
      _
    $region127: #{transformer_ais_forward.1} parent=1 // pred_check_branch
      %275 = sbr.rel (0) target = $region129
    $region128: #{transformer_ais_forward.1} parent=1 // pred_region
      %277 = dma.done [#allocation18], 8192
    $region129: #{transformer_ais_forward.1} parent=1 // pred_fallthru
      _
    // Predicated region
    $region130: #{transformer_ais_forward.1} parent=1 // pred_check
      _
    $region131: #{transformer_ais_forward.1} parent=1 // pred_check_branch
      %279 = sbr.rel (0) target = $region133
    $region132: #{transformer_ais_forward.1} parent=1 // pred_region
      %281 = dma.done [#allocation18], 32
    $region133: #{transformer_ais_forward.1} parent=1 // pred_fallthru
      _
    // Predicated region
    $region134: #{transformer_ais_forward.1} parent=1 // pred_check
      _
    $region135: #{transformer_ais_forward.1} parent=1 // pred_check_branch
      %283 = sbr.rel (0) target = $region137
    $region136: #{transformer_ais_forward.1} parent=1 // pred_region
      %285 = dma.done [#allocation21], 32
    $region137: #{transformer_ais_forward.1} parent=1 // pred_fallthru
      _
    // Predicated region
    $region138: #{transformer_ais_forward.1} parent=1 // pred_check
      _
    $region139: #{transformer_ais_forward.1} parent=1 // pred_check_branch
      %287 = sbr.rel (0) target = $region141
    $region140: #{transformer_ais_forward.1} parent=1 // pred_region
      %289 = dma.done [#allocation21], 32
    $region141: #{transformer_ais_forward.1} parent=1 // pred_fallthru
      _
    // Predicated region
    $region142: #{transformer_ais_forward.1} parent=1 // pred_check
      _
    $region143: #{transformer_ais_forward.1} parent=1 // pred_check_branch
      %291 = sbr.rel (0) target = $region145
    $region144: #{transformer_ais_forward.1} parent=1 // pred_region
      %293 = dma.done [#allocation24], 64
    $region145: #{transformer_ais_forward.1} parent=1 // pred_fallthru
      _
    // Predicated region
    $region146: #{transformer_ais_forward.1} parent=1 // pred_check
      _
    $region147: #{transformer_ais_forward.1} parent=1 // pred_check_branch
      %295 = sbr.rel (0) target = $region149
    $region148: #{transformer_ais_forward.1} parent=1 // pred_region
      %297 = dma.done [#allocation24], 16
    $region149: #{transformer_ais_forward.1} parent=1 // pred_fallthru
      _
    %v299 = vld [vmem:[%s0] sm:$0xff]
    %v300 = vld [vmem:[%s0 + $0x8] sm:$0xff]
    %v301 = vld [vmem:[#allocation3] sm:$0xf]
    %v302 = vld [vmem:[%s3] sm:$0x1]
    %v304 = vperm.slane %v302, 0
    %vm306 = vcmask 31744
    %v308 = vsel %vm306, %v299, 0
    %v311 = vsel %vm306, %v300, 0
    %vm313 = vcmask 1043456
    %v315 = vsel %vm313, %v301, 0
    %317 = vmatpush.msra.mxu0 0.0
    %318 = vmatpush.msra.mxu0 0.0
    %319 = vmatpush.msra.mxu0 0.0
    %320 = vmatpush.msra.mxu0 0.0
    %321 = vmatpush.msra.mxu0 0.0
    %322 = vmatpush.msra.mxu0 0.0
    %323 = vmatpush.msra.mxu0 0.0
    %324 = vmatpush.msra.mxu0 0.0
    %325 = vmatpush.msra.mxu0 0.0
    %326 = vmatpush.msra.mxu0 0.0
    %327 = vmatpush.msra.mxu0 0.0
    %328 = vmatpush.msra.mxu0 0.0
    %329 = vmatpush.msra.mxu0 0.0
    %330 = vmatpush.msra.mxu0 0.0
    %331 = vmatpush.msra.mxu0 0.0
    %332 = vmatpush.msra.mxu0 %v315
    %333 = vmatmul.f32.gmra.mxu0 %v308
    %v334 = vpop.f32.mrf.mxu0
    %v335 = vadd.f32 %v304, %v334
    %336 = vmatmul.f32.gmra.mxu0 %v311
    %v337 = vpop.f32.mrf.mxu0
    %v338 = vadd.f32 %v304, %v337
    %339 = vdwg.mxu0
    %v340 = vld [vmem:[%s1] sm:$0xff]
    %v341 = vld [vmem:[%s1 + $0x8] sm:$0xff]
    %v342 = vadd.f32 %v335, %v340
    %v343 = vadd.f32 %v338, %v341
    %vm344 = vcmask 261120
    %345 = vst.msk [vmem:[#allocation2] sm:$0xff] %vm344, 0.0
    %346 = vst.msk [vmem:[#allocation2 + $0x8] sm:$0xff] %vm344, 0.0
    %v347 = vld [vmem:[%s4] sm:$0xff]
    %v348 = vld [vmem:[%s5] sm:$0x1]
    %v350 = vperm.slane %v348, 0
    %v353 = vsel %vm344, %v342, 0
    %v356 = vsel %vm344, %v343, 0
    %v359 = vsel %vm344, %v347, 0
    %361 = vmatpush.xpose.msra.mxu0 0.0
    %362 = vmatpush.xpose.msra.mxu0 0.0
    %363 = vmatpush.xpose.msra.mxu0 0.0
    %364 = vmatpush.xpose.msra.mxu0 0.0
    %365 = vmatpush.xpose.msra.mxu0 0.0
    %366 = vmatpush.xpose.msra.mxu0 0.0
    %367 = vmatpush.xpose.msra.mxu0 0.0
    %368 = vmatpush.xpose.msra.mxu0 0.0
    %369 = vmatpush.xpose.msra.mxu0 0.0
    %370 = vmatpush.xpose.msra.mxu0 0.0
    %371 = vmatpush.xpose.msra.mxu0 0.0
    %372 = vmatpush.xpose.msra.mxu0 0.0
    %373 = vmatpush.xpose.msra.mxu0 0.0
    %374 = vmatpush.xpose.msra.mxu0 0.0
    %375 = vmatpush.xpose.msra.mxu0 0.0
    %376 = vmatpush.xpose.msra.mxu0 %v359
    %377 = vmatmul.f32.gmra.mxu0 %v353
    %v378 = vpop.f32.mrf.mxu0
    %v379 = vadd.f32 %v350, %v378
    %380 = vmatmul.f32.gmra.mxu0 %v356
    %v381 = vpop.f32.mrf.mxu0
    %v382 = vadd.f32 %v350, %v381
    %383 = vdwg.mxu0
    %v384 = vld [vmem:[#allocation5] sm:$0xff]
    %v385 = vld [vmem:[%s7] sm:$0x1]
    %v387 = vperm.slane %v385, 0
    %v390 = vsel %vm344, %v384, 0
    %392 = vmatpush.xpose.msra.mxu0 0.0
    %393 = vmatpush.xpose.msra.mxu0 0.0
    %394 = vmatpush.xpose.msra.mxu0 0.0
    %395 = vmatpush.xpose.msra.mxu0 0.0
    %396 = vmatpush.xpose.msra.mxu0 0.0
    %397 = vmatpush.xpose.msra.mxu0 0.0
    %398 = vmatpush.xpose.msra.mxu0 0.0
    %399 = vmatpush.xpose.msra.mxu0 0.0
    %400 = vmatpush.xpose.msra.mxu0 0.0
    %401 = vmatpush.xpose.msra.mxu0 0.0
    %402 = vmatpush.xpose.msra.mxu0 0.0
    %403 = vmatpush.xpose.msra.mxu0 0.0
    %404 = vmatpush.xpose.msra.mxu0 0.0
    %405 = vmatpush.xpose.msra.mxu0 0.0
    %406 = vmatpush.xpose.msra.mxu0 0.0
    %407 = vmatpush.xpose.msra.mxu0 %v390
    %408 = vmatmul.f32.gmra.mxu0 %v353
    %v409 = vpop.f32.mrf.mxu0
    %v410 = vadd.f32 %v387, %v409
    %411 = vmatmul.f32.gmra.mxu0 %v356
    %v412 = vpop.f32.mrf.mxu0
    %v413 = vadd.f32 %v387, %v412
    %414 = vdwg.mxu0
    %v415 = vld [vmem:[#allocation7] sm:$0xff]
    %v416 = vld [vmem:[%s9] sm:$0x1]
    %v418 = vperm.slane %v416, 0
    %v421 = vsel %vm344, %v415, 0
    %423 = vmatpush.xpose.msra.mxu0 0.0
    %424 = vmatpush.xpose.msra.mxu0 0.0
    %425 = vmatpush.xpose.msra.mxu0 0.0
    %426 = vmatpush.xpose.msra.mxu0 0.0
    %427 = vmatpush.xpose.msra.mxu0 0.0
    %428 = vmatpush.xpose.msra.mxu0 0.0
    %429 = vmatpush.xpose.msra.mxu0 0.0
    %430 = vmatpush.xpose.msra.mxu0 0.0
    %431 = vmatpush.xpose.msra.mxu0 0.0
    %432 = vmatpush.xpose.msra.mxu0 0.0
    %433 = vmatpush.xpose.msra.mxu0 0.0
    %434 = vmatpush.xpose.msra.mxu0 0.0
    %435 = vmatpush.xpose.msra.mxu0 0.0
    %436 = vmatpush.xpose.msra.mxu0 0.0
    %437 = vmatpush.xpose.msra.mxu0 0.0
    %438 = vmatpush.xpose.msra.mxu0 %v421
    %439 = vmatmul.f32.gmra.mxu0 %v353
    %v440 = vpop.f32.mrf.mxu0
    %v441 = vadd.f32 %v418, %v440
    %442 = vmatmul.f32.gmra.mxu0 %v356
    %v443 = vpop.f32.mrf.mxu0
    %v444 = vadd.f32 %v418, %v443
    %445 = vdwg.mxu0
    %v446 = vld [vmem:[#allocation8] sm:$0xff]
    %vm447 = vcmask 64512
    %v449 = vsel %vm447, %v379, 0
    %v452 = vsel %vm447, %v410, 0
    %454 = vmatpush.xpose.msra.mxu0 0.0
    %455 = vmatpush.xpose.msra.mxu0 0.0
    %456 = vmatpush.xpose.msra.mxu0 0.0
    %457 = vmatpush.xpose.msra.mxu0 0.0
    %458 = vmatpush.xpose.msra.mxu0 0.0
    %459 = vmatpush.xpose.msra.mxu0 0.0
    %460 = vmatpush.xpose.msra.mxu0 0.0
    %461 = vmatpush.xpose.msra.mxu0 0.0
    %462 = vmatpush.xpose.msra.mxu0 0.0
    %463 = vmatpush.xpose.msra.mxu0 0.0
    %464 = vmatpush.xpose.msra.mxu0 0.0
    %465 = vmatpush.xpose.msra.mxu0 0.0
    %466 = vmatpush.xpose.msra.mxu0 0.0
    %467 = vmatpush.xpose.msra.mxu0 0.0
    %468 = vmatpush.xpose.msra.mxu0 0.0
    %469 = vmatpush.xpose.msra.mxu0 %v452
    %470 = vmatmul.f32.gmra.mxu0 %v449
    %v471 = vpop.f32.mrf.mxu0
    %v472 = vadd.f32 0.0, %v471
    %473 = vdwg.mxu0
    %v474 = vmul.f32 %v472, 0.35355338
    %v475 = vsel %vm447, %v474, -inf
    %476 = vmax.xlane.f32.xlu0 %v475
    %v477 = vpop.xlane.xlu0 %476
    %v478 = vsub.f32 %v474, %v477
    %v479 = vmul.f32 %v478, 1.442695
    %v480 = vpow.pop %v479
    %v481 = vsel %vm447, %v480, 0.0
    %482 = vadd.xlane.f32.xlu0 %v481
    %v483 = vpop.xlane.xlu0 %482
    %v484 = vrcp.pop %v483
    %v485 = vmul.f32 %v480, %v484
    %v487 = vsel %vm447, %v485, 0
    %489 = vmatpush.msra.mxu0 0.0
    %490 = vmatpush.msra.mxu0 0.0
    %491 = vmatpush.msra.mxu0 0.0
    %492 = vmatpush.msra.mxu0 0.0
    %493 = vmatpush.msra.mxu0 0.0
    %494 = vmatpush.msra.mxu0 0.0
    %495 = vmatpush.msra.mxu0 0.0
    %496 = vmatpush.msra.mxu0 0.0
    %497 = vmatpush.msra.mxu0 0.0
    %498 = vmatpush.msra.mxu0 0.0
    %499 = vmatpush.msra.mxu0 0.0
    %500 = vmatpush.msra.mxu0 0.0
    %501 = vmatpush.msra.mxu0 0.0
    %502 = vmatpush.msra.mxu0 0.0
    %503 = vmatpush.msra.mxu0 0.0
    %504 = vmatpush.msra.mxu0 %v441
    %505 = vmatmul.f32.gmra.mxu0 %v487
    %v506 = vpop.f32.mrf.mxu0
    %v507 = vadd.f32 0.0, %v506
    %508 = vdwg.mxu0
    %v509 = vld [vmem:[#allocation2] sm:$0xff]
    %v511 = vsel %vm447, %v507, 0
    %513 = vmatpush.msra.mxu0 0.0
    %514 = vmatpush.msra.mxu0 0.0
    %515 = vmatpush.msra.mxu0 0.0
    %516 = vmatpush.msra.mxu0 0.0
    %517 = vmatpush.msra.mxu0 0.0
    %518 = vmatpush.msra.mxu0 0.0
    %519 = vmatpush.msra.mxu0 0.0
    %520 = vmatpush.msra.mxu0 0.0
    %521 = vmatpush.msra.mxu0 0.0
    %522 = vmatpush.msra.mxu0 0.0
    %523 = vmatpush.msra.mxu0 0.0
    %524 = vmatpush.msra.mxu0 0.0
    %525 = vmatpush.msra.mxu0 0.0
    %526 = vmatpush.msra.mxu0 0.0
    %527 = vmatpush.msra.mxu0 0.0
    %528 = vmatpush.msra.mxu0 %v446
    %529 = vmatmul.f32.gmra.mxu0 %v511
    %v530 = vpop.f32.mrf.mxu0
    %v531 = vadd.f32 0.0, %v530
    %532 = vdwg.mxu0
    %v533 = vadd.f32 %v509, %v531
    %534 = vst.msk [vmem:[#allocation2] sm:$0xff] %vm344, %v533
    %v536 = vsel %vm447, %v382, 0
    %v539 = vsel %vm447, %v413, 0
    %541 = vmatpush.xpose.msra.mxu0 0.0
    %542 = vmatpush.xpose.msra.mxu0 0.0
    %543 = vmatpush.xpose.msra.mxu0 0.0
    %544 = vmatpush.xpose.msra.mxu0 0.0
    %545 = vmatpush.xpose.msra.mxu0 0.0
    %546 = vmatpush.xpose.msra.mxu0 0.0
    %547 = vmatpush.xpose.msra.mxu0 0.0
    %548 = vmatpush.xpose.msra.mxu0 0.0
    %549 = vmatpush.xpose.msra.mxu0 0.0
    %550 = vmatpush.xpose.msra.mxu0 0.0
    %551 = vmatpush.xpose.msra.mxu0 0.0
    %552 = vmatpush.xpose.msra.mxu0 0.0
    %553 = vmatpush.xpose.msra.mxu0 0.0
    %554 = vmatpush.xpose.msra.mxu0 0.0
    %555 = vmatpush.xpose.msra.mxu0 0.0
    %556 = vmatpush.xpose.msra.mxu0 %v539
    %557 = vmatmul.f32.gmra.mxu0 %v536
    %v558 = vpop.f32.mrf.mxu0
    %v559 = vadd.f32 0.0, %v558
    %560 = vdwg.mxu0
    %v561 = vmul.f32 %v559, 0.35355338
    %v562 = vsel %vm447, %v561, -inf
    %563 = vmax.xlane.f32.xlu0 %v562
    %v564 = vpop.xlane.xlu0 %563
    %v565 = vsub.f32 %v561, %v564
    %v566 = vmul.f32 %v565, 1.442695
    %v567 = vpow.pop %v566
    %v568 = vsel %vm447, %v567, 0.0
    %569 = vadd.xlane.f32.xlu0 %v568
    %v570 = vpop.xlane.xlu0 %569
    %v571 = vrcp.pop %v570
    %v572 = vmul.f32 %v567, %v571
    %v574 = vsel %vm447, %v572, 0
    %576 = vmatpush.msra.mxu0 0.0
    %577 = vmatpush.msra.mxu0 0.0
    %578 = vmatpush.msra.mxu0 0.0
    %579 = vmatpush.msra.mxu0 0.0
    %580 = vmatpush.msra.mxu0 0.0
    %581 = vmatpush.msra.mxu0 0.0
    %582 = vmatpush.msra.mxu0 0.0
    %583 = vmatpush.msra.mxu0 0.0
    %584 = vmatpush.msra.mxu0 0.0
    %585 = vmatpush.msra.mxu0 0.0
    %586 = vmatpush.msra.mxu0 0.0
    %587 = vmatpush.msra.mxu0 0.0
    %588 = vmatpush.msra.mxu0 0.0
    %589 = vmatpush.msra.mxu0 0.0
    %590 = vmatpush.msra.mxu0 0.0
    %591 = vmatpush.msra.mxu0 %v444
    %592 = vmatmul.f32.gmra.mxu0 %v574
    %v593 = vpop.f32.mrf.mxu0
    %v594 = vadd.f32 0.0, %v593
    %595 = vdwg.mxu0
    %v596 = vld [vmem:[#allocation2 + $0x8] sm:$0xff]
    %v598 = vsel %vm447, %v594, 0
    %600 = vmatpush.msra.mxu0 0.0
    %601 = vmatpush.msra.mxu0 0.0
    %602 = vmatpush.msra.mxu0 0.0
    %603 = vmatpush.msra.mxu0 0.0
    %604 = vmatpush.msra.mxu0 0.0
    %605 = vmatpush.msra.mxu0 0.0
    %606 = vmatpush.msra.mxu0 0.0
    %607 = vmatpush.msra.mxu0 0.0
    %608 = vmatpush.msra.mxu0 0.0
    %609 = vmatpush.msra.mxu0 0.0
    %610 = vmatpush.msra.mxu0 0.0
    %611 = vmatpush.msra.mxu0 0.0
    %612 = vmatpush.msra.mxu0 0.0
    %613 = vmatpush.msra.mxu0 0.0
    %614 = vmatpush.msra.mxu0 0.0
    %615 = vmatpush.msra.mxu0 %v446
    %616 = vmatmul.f32.gmra.mxu0 %v598
    %v617 = vpop.f32.mrf.mxu0
    %v618 = vadd.f32 0.0, %v617
    %619 = vdwg.mxu0
    %v620 = vadd.f32 %v596, %v618
    %621 = vst.msk [vmem:[#allocation2 + $0x8] sm:$0xff] %vm344, %v620
    %s622 = scalar_lea.vmem %s4, 8
    %v623 = vld [vmem:[%s622] sm:$0xff]
    %s624 = scalar_lea.vmem %s5, 1
    %v625 = vld [vmem:[%s624] sm:$0x1]
    %v627 = vperm.slane %v625, 0
    %v630 = vsel %vm344, %v623, 0
    %632 = vmatpush.xpose.msra.mxu0 0.0
    %633 = vmatpush.xpose.msra.mxu0 0.0
    %634 = vmatpush.xpose.msra.mxu0 0.0
    %635 = vmatpush.xpose.msra.mxu0 0.0
    %636 = vmatpush.xpose.msra.mxu0 0.0
    %637 = vmatpush.xpose.msra.mxu0 0.0
    %638 = vmatpush.xpose.msra.mxu0 0.0
    %639 = vmatpush.xpose.msra.mxu0 0.0
    %640 = vmatpush.xpose.msra.mxu0 0.0
    %641 = vmatpush.xpose.msra.mxu0 0.0
    %642 = vmatpush.xpose.msra.mxu0 0.0
    %643 = vmatpush.xpose.msra.mxu0 0.0
    %644 = vmatpush.xpose.msra.mxu0 0.0
    %645 = vmatpush.xpose.msra.mxu0 0.0
    %646 = vmatpush.xpose.msra.mxu0 0.0
    %647 = vmatpush.xpose.msra.mxu0 %v630
    %648 = vmatmul.f32.gmra.mxu0 %v353
    %v649 = vpop.f32.mrf.mxu0
    %v650 = vadd.f32 %v627, %v649
    %651 = vmatmul.f32.gmra.mxu0 %v356
    %v652 = vpop.f32.mrf.mxu0
    %v653 = vadd.f32 %v627, %v652
    %654 = vdwg.mxu0
    %s655 = scalar_lea.vmem [#allocation5], 8
    %v656 = vld [vmem:[%s655] sm:$0xff]
    %s657 = scalar_lea.vmem %s7, 1
    %v658 = vld [vmem:[%s657] sm:$0x1]
    %v660 = vperm.slane %v658, 0
    %v663 = vsel %vm344, %v656, 0
    %665 = vmatpush.xpose.msra.mxu0 0.0
    %666 = vmatpush.xpose.msra.mxu0 0.0
    %667 = vmatpush.xpose.msra.mxu0 0.0
    %668 = vmatpush.xpose.msra.mxu0 0.0
    %669 = vmatpush.xpose.msra.mxu0 0.0
    %670 = vmatpush.xpose.msra.mxu0 0.0
    %671 = vmatpush.xpose.msra.mxu0 0.0
    %672 = vmatpush.xpose.msra.mxu0 0.0
    %673 = vmatpush.xpose.msra.mxu0 0.0
    %674 = vmatpush.xpose.msra.mxu0 0.0
    %675 = vmatpush.xpose.msra.mxu0 0.0
    %676 = vmatpush.xpose.msra.mxu0 0.0
    %677 = vmatpush.xpose.msra.mxu0 0.0
    %678 = vmatpush.xpose.msra.mxu0 0.0
    %679 = vmatpush.xpose.msra.mxu0 0.0
    %680 = vmatpush.xpose.msra.mxu0 %v663
    %681 = vmatmul.f32.gmra.mxu0 %v353
    %v682 = vpop.f32.mrf.mxu0
    %v683 = vadd.f32 %v660, %v682
    %684 = vmatmul.f32.gmra.mxu0 %v356
    %v685 = vpop.f32.mrf.mxu0
    %v686 = vadd.f32 %v660, %v685
    %687 = vdwg.mxu0
    %s688 = scalar_lea.vmem [#allocation7], 8
    %v689 = vld [vmem:[%s688] sm:$0xff]
    %s690 = scalar_lea.vmem %s9, 1
    %v691 = vld [vmem:[%s690] sm:$0x1]
    %v693 = vperm.slane %v691, 0
    %v696 = vsel %vm344, %v689, 0
    %698 = vmatpush.xpose.msra.mxu0 0.0
    %699 = vmatpush.xpose.msra.mxu0 0.0
    %700 = vmatpush.xpose.msra.mxu0 0.0
    %701 = vmatpush.xpose.msra.mxu0 0.0
    %702 = vmatpush.xpose.msra.mxu0 0.0
    %703 = vmatpush.xpose.msra.mxu0 0.0
    %704 = vmatpush.xpose.msra.mxu0 0.0
    %705 = vmatpush.xpose.msra.mxu0 0.0
    %706 = vmatpush.xpose.msra.mxu0 0.0
    %707 = vmatpush.xpose.msra.mxu0 0.0
    %708 = vmatpush.xpose.msra.mxu0 0.0
    %709 = vmatpush.xpose.msra.mxu0 0.0
    %710 = vmatpush.xpose.msra.mxu0 0.0
    %711 = vmatpush.xpose.msra.mxu0 0.0
    %712 = vmatpush.xpose.msra.mxu0 0.0
    %713 = vmatpush.xpose.msra.mxu0 %v696
    %714 = vmatmul.f32.gmra.mxu0 %v353
    %v715 = vpop.f32.mrf.mxu0
    %v716 = vadd.f32 %v693, %v715
    %717 = vmatmul.f32.gmra.mxu0 %v356
    %v718 = vpop.f32.mrf.mxu0
    %v719 = vadd.f32 %v693, %v718
    %720 = vdwg.mxu0
    %s721 = scalar_lea.vmem [#allocation8], 8
    %v722 = vld [vmem:[%s721] sm:$0xff]
    %v724 = vsel %vm447, %v650, 0
    %v727 = vsel %vm447, %v683, 0
    %729 = vmatpush.xpose.msra.mxu0 0.0
    %730 = vmatpush.xpose.msra.mxu0 0.0
    %731 = vmatpush.xpose.msra.mxu0 0.0
    %732 = vmatpush.xpose.msra.mxu0 0.0
    %733 = vmatpush.xpose.msra.mxu0 0.0
    %734 = vmatpush.xpose.msra.mxu0 0.0
    %735 = vmatpush.xpose.msra.mxu0 0.0
    %736 = vmatpush.xpose.msra.mxu0 0.0
    %737 = vmatpush.xpose.msra.mxu0 0.0
    %738 = vmatpush.xpose.msra.mxu0 0.0
    %739 = vmatpush.xpose.msra.mxu0 0.0
    %740 = vmatpush.xpose.msra.mxu0 0.0
    %741 = vmatpush.xpose.msra.mxu0 0.0
    %742 = vmatpush.xpose.msra.mxu0 0.0
    %743 = vmatpush.xpose.msra.mxu0 0.0
    %744 = vmatpush.xpose.msra.mxu0 %v727
    %745 = vmatmul.f32.gmra.mxu0 %v724
    %v746 = vpop.f32.mrf.mxu0
    %v747 = vadd.f32 0.0, %v746
    %748 = vdwg.mxu0
    %v749 = vmul.f32 %v747, 0.35355338
    %v750 = vsel %vm447, %v749, -inf
    %751 = vmax.xlane.f32.xlu0 %v750
    %v752 = vpop.xlane.xlu0 %751
    %v753 = vsub.f32 %v749, %v752
    %v754 = vmul.f32 %v753, 1.442695
    %v755 = vpow.pop %v754
    %v756 = vsel %vm447, %v755, 0.0
    %757 = vadd.xlane.f32.xlu0 %v756
    %v758 = vpop.xlane.xlu0 %757
    %v759 = vrcp.pop %v758
    %v760 = vmul.f32 %v755, %v759
    %v762 = vsel %vm447, %v760, 0
    %764 = vmatpush.msra.mxu0 0.0
    %765 = vmatpush.msra.mxu0 0.0
    %766 = vmatpush.msra.mxu0 0.0
    %767 = vmatpush.msra.mxu0 0.0
    %768 = vmatpush.msra.mxu0 0.0
    %769 = vmatpush.msra.mxu0 0.0
    %770 = vmatpush.msra.mxu0 0.0
    %771 = vmatpush.msra.mxu0 0.0
    %772 = vmatpush.msra.mxu0 0.0
    %773 = vmatpush.msra.mxu0 0.0
    %774 = vmatpush.msra.mxu0 0.0
    %775 = vmatpush.msra.mxu0 0.0
    %776 = vmatpush.msra.mxu0 0.0
    %777 = vmatpush.msra.mxu0 0.0
    %778 = vmatpush.msra.mxu0 0.0
    %779 = vmatpush.msra.mxu0 %v716
    %780 = vmatmul.f32.gmra.mxu0 %v762
    %v781 = vpop.f32.mrf.mxu0
    %v782 = vadd.f32 0.0, %v781
    %783 = vdwg.mxu0
    %v784 = vld [vmem:[#allocation2] sm:$0xff]
    %v786 = vsel %vm447, %v782, 0
    %788 = vmatpush.msra.mxu0 0.0
    %789 = vmatpush.msra.mxu0 0.0
    %790 = vmatpush.msra.mxu0 0.0
    %791 = vmatpush.msra.mxu0 0.0
    %792 = vmatpush.msra.mxu0 0.0
    %793 = vmatpush.msra.mxu0 0.0
    %794 = vmatpush.msra.mxu0 0.0
    %795 = vmatpush.msra.mxu0 0.0
    %796 = vmatpush.msra.mxu0 0.0
    %797 = vmatpush.msra.mxu0 0.0
    %798 = vmatpush.msra.mxu0 0.0
    %799 = vmatpush.msra.mxu0 0.0
    %800 = vmatpush.msra.mxu0 0.0
    %801 = vmatpush.msra.mxu0 0.0
    %802 = vmatpush.msra.mxu0 0.0
    %803 = vmatpush.msra.mxu0 %v722
    %804 = vmatmul.f32.gmra.mxu0 %v786
    %v805 = vpop.f32.mrf.mxu0
    %v806 = vadd.f32 0.0, %v805
    %807 = vdwg.mxu0
    %v808 = vadd.f32 %v784, %v806
    %809 = vst.msk [vmem:[#allocation2] sm:$0xff] %vm344, %v808
    %v811 = vsel %vm447, %v653, 0
    %v814 = vsel %vm447, %v686, 0
    %816 = vmatpush.xpose.msra.mxu0 0.0
    %817 = vmatpush.xpose.msra.mxu0 0.0
    %818 = vmatpush.xpose.msra.mxu0 0.0
    %819 = vmatpush.xpose.msra.mxu0 0.0
    %820 = vmatpush.xpose.msra.mxu0 0.0
    %821 = vmatpush.xpose.msra.mxu0 0.0
    %822 = vmatpush.xpose.msra.mxu0 0.0
    %823 = vmatpush.xpose.msra.mxu0 0.0
    %824 = vmatpush.xpose.msra.mxu0 0.0
    %825 = vmatpush.xpose.msra.mxu0 0.0
    %826 = vmatpush.xpose.msra.mxu0 0.0
    %827 = vmatpush.xpose.msra.mxu0 0.0
    %828 = vmatpush.xpose.msra.mxu0 0.0
    %829 = vmatpush.xpose.msra.mxu0 0.0
    %830 = vmatpush.xpose.msra.mxu0 0.0
    %831 = vmatpush.xpose.msra.mxu0 %v814
    %832 = vmatmul.f32.gmra.mxu0 %v811
    %v833 = vpop.f32.mrf.mxu0
    %v834 = vadd.f32 0.0, %v833
    %835 = vdwg.mxu0
    %v836 = vmul.f32 %v834, 0.35355338
    %v837 = vsel %vm447, %v836, -inf
    %838 = vmax.xlane.f32.xlu0 %v837
    %v839 = vpop.xlane.xlu0 %838
    %v840 = vsub.f32 %v836, %v839
    %v841 = vmul.f32 %v840, 1.442695
    %v842 = vpow.pop %v841
    %v843 = vsel %vm447, %v842, 0.0
    %844 = vadd.xlane.f32.xlu0 %v843
    %v845 = vpop.xlane.xlu0 %844
    %v846 = vrcp.pop %v845
    %v847 = vmul.f32 %v842, %v846
    %v849 = vsel %vm447, %v847, 0
    %851 = vmatpush.msra.mxu0 0.0
    %852 = vmatpush.msra.mxu0 0.0
    %853 = vmatpush.msra.mxu0 0.0
    %854 = vmatpush.msra.mxu0 0.0
    %855 = vmatpush.msra.mxu0 0.0
    %856 = vmatpush.msra.mxu0 0.0
    %857 = vmatpush.msra.mxu0 0.0
    %858 = vmatpush.msra.mxu0 0.0
    %859 = vmatpush.msra.mxu0 0.0
    %860 = vmatpush.msra.mxu0 0.0
    %861 = vmatpush.msra.mxu0 0.0
    %862 = vmatpush.msra.mxu0 0.0
    %863 = vmatpush.msra.mxu0 0.0
    %864 = vmatpush.msra.mxu0 0.0
    %865 = vmatpush.msra.mxu0 0.0
    %866 = vmatpush.msra.mxu0 %v719
    %867 = vmatmul.f32.gmra.mxu0 %v849
    %v868 = vpop.f32.mrf.mxu0
    %v869 = vadd.f32 0.0, %v868
    %870 = vdwg.mxu0
    %v871 = vld [vmem:[#allocation2 + $0x8] sm:$0xff]
    %v873 = vsel %vm447, %v869, 0
    %875 = vmatpush.msra.mxu0 0.0
    %876 = vmatpush.msra.mxu0 0.0
    %877 = vmatpush.msra.mxu0 0.0
    %878 = vmatpush.msra.mxu0 0.0
    %879 = vmatpush.msra.mxu0 0.0
    %880 = vmatpush.msra.mxu0 0.0
    %881 = vmatpush.msra.mxu0 0.0
    %882 = vmatpush.msra.mxu0 0.0
    %883 = vmatpush.msra.mxu0 0.0
    %884 = vmatpush.msra.mxu0 0.0
    %885 = vmatpush.msra.mxu0 0.0
    %886 = vmatpush.msra.mxu0 0.0
    %887 = vmatpush.msra.mxu0 0.0
    %888 = vmatpush.msra.mxu0 0.0
    %889 = vmatpush.msra.mxu0 0.0
    %890 = vmatpush.msra.mxu0 %v722
    %891 = vmatmul.f32.gmra.mxu0 %v873
    %v892 = vpop.f32.mrf.mxu0
    %v893 = vadd.f32 0.0, %v892
    %894 = vdwg.mxu0
    %v895 = vadd.f32 %v871, %v893
    %896 = vst.msk [vmem:[#allocation2 + $0x8] sm:$0xff] %vm344, %v895
    %s897 = scalar_lea.vmem %s4, 16
    %v898 = vld [vmem:[%s897] sm:$0xff]
    %s899 = scalar_lea.vmem %s5, 2
    %v900 = vld [vmem:[%s899] sm:$0x1]
    %v902 = vperm.slane %v900, 0
    %v905 = vsel %vm344, %v898, 0
    %907 = vmatpush.xpose.msra.mxu0 0.0
    %908 = vmatpush.xpose.msra.mxu0 0.0
    %909 = vmatpush.xpose.msra.mxu0 0.0
    %910 = vmatpush.xpose.msra.mxu0 0.0
    %911 = vmatpush.xpose.msra.mxu0 0.0
    %912 = vmatpush.xpose.msra.mxu0 0.0
    %913 = vmatpush.xpose.msra.mxu0 0.0
    %914 = vmatpush.xpose.msra.mxu0 0.0
    %915 = vmatpush.xpose.msra.mxu0 0.0
    %916 = vmatpush.xpose.msra.mxu0 0.0
    %917 = vmatpush.xpose.msra.mxu0 0.0
    %918 = vmatpush.xpose.msra.mxu0 0.0
    %919 = vmatpush.xpose.msra.mxu0 0.0
    %920 = vmatpush.xpose.msra.mxu0 0.0
    %921 = vmatpush.xpose.msra.mxu0 0.0
    %922 = vmatpush.xpose.msra.mxu0 %v905
    %923 = vmatmul.f32.gmra.mxu0 %v353
    %v924 = vpop.f32.mrf.mxu0
    %v925 = vadd.f32 %v902, %v924
    %926 = vmatmul.f32.gmra.mxu0 %v356
    %v927 = vpop.f32.mrf.mxu0
    %v928 = vadd.f32 %v902, %v927
    %929 = vdwg.mxu0
    %s930 = scalar_lea.vmem [#allocation5], 16
    %v931 = vld [vmem:[%s930] sm:$0xff]
    %s932 = scalar_lea.vmem %s7, 2
    %v933 = vld [vmem:[%s932] sm:$0x1]
    %v935 = vperm.slane %v933, 0
    %v938 = vsel %vm344, %v931, 0
    %940 = vmatpush.xpose.msra.mxu0 0.0
    %941 = vmatpush.xpose.msra.mxu0 0.0
    %942 = vmatpush.xpose.msra.mxu0 0.0
    %943 = vmatpush.xpose.msra.mxu0 0.0
    %944 = vmatpush.xpose.msra.mxu0 0.0
    %945 = vmatpush.xpose.msra.mxu0 0.0
    %946 = vmatpush.xpose.msra.mxu0 0.0
    %947 = vmatpush.xpose.msra.mxu0 0.0
    %948 = vmatpush.xpose.msra.mxu0 0.0
    %949 = vmatpush.xpose.msra.mxu0 0.0
    %950 = vmatpush.xpose.msra.mxu0 0.0
    %951 = vmatpush.xpose.msra.mxu0 0.0
    %952 = vmatpush.xpose.msra.mxu0 0.0
    %953 = vmatpush.xpose.msra.mxu0 0.0
    %954 = vmatpush.xpose.msra.mxu0 0.0
    %955 = vmatpush.xpose.msra.mxu0 %v938
    %956 = vmatmul.f32.gmra.mxu0 %v353
    %v957 = vpop.f32.mrf.mxu0
    %v958 = vadd.f32 %v935, %v957
    %959 = vmatmul.f32.gmra.mxu0 %v356
    %v960 = vpop.f32.mrf.mxu0
    %v961 = vadd.f32 %v935, %v960
    %962 = vdwg.mxu0
    %s963 = scalar_lea.vmem [#allocation7], 16
    %v964 = vld [vmem:[%s963] sm:$0xff]
    %s965 = scalar_lea.vmem %s9, 2
    %v966 = vld [vmem:[%s965] sm:$0x1]
    %v968 = vperm.slane %v966, 0
    %v971 = vsel %vm344, %v964, 0
    %973 = vmatpush.xpose.msra.mxu0 0.0
    %974 = vmatpush.xpose.msra.mxu0 0.0
    %975 = vmatpush.xpose.msra.mxu0 0.0
    %976 = vmatpush.xpose.msra.mxu0 0.0
    %977 = vmatpush.xpose.msra.mxu0 0.0
    %978 = vmatpush.xpose.msra.mxu0 0.0
    %979 = vmatpush.xpose.msra.mxu0 0.0
    %980 = vmatpush.xpose.msra.mxu0 0.0
    %981 = vmatpush.xpose.msra.mxu0 0.0
    %982 = vmatpush.xpose.msra.mxu0 0.0
    %983 = vmatpush.xpose.msra.mxu0 0.0
    %984 = vmatpush.xpose.msra.mxu0 0.0
    %985 = vmatpush.xpose.msra.mxu0 0.0
    %986 = vmatpush.xpose.msra.mxu0 0.0
    %987 = vmatpush.xpose.msra.mxu0 0.0
    %988 = vmatpush.xpose.msra.mxu0 %v971
    %989 = vmatmul.f32.gmra.mxu0 %v353
    %v990 = vpop.f32.mrf.mxu0
    %v991 = vadd.f32 %v968, %v990
    %992 = vmatmul.f32.gmra.mxu0 %v356
    %v993 = vpop.f32.mrf.mxu0
    %v994 = vadd.f32 %v968, %v993
    %995 = vdwg.mxu0
    %s996 = scalar_lea.vmem [#allocation8], 16
    %v997 = vld [vmem:[%s996] sm:$0xff]
    %v999 = vsel %vm447, %v925, 0
    %v1002 = vsel %vm447, %v958, 0
    %1004 = vmatpush.xpose.msra.mxu0 0.0
    %1005 = vmatpush.xpose.msra.mxu0 0.0
    %1006 = vmatpush.xpose.msra.mxu0 0.0
    %1007 = vmatpush.xpose.msra.mxu0 0.0
    %1008 = vmatpush.xpose.msra.mxu0 0.0
    %1009 = vmatpush.xpose.msra.mxu0 0.0
    %1010 = vmatpush.xpose.msra.mxu0 0.0
    %1011 = vmatpush.xpose.msra.mxu0 0.0
    %1012 = vmatpush.xpose.msra.mxu0 0.0
    %1013 = vmatpush.xpose.msra.mxu0 0.0
    %1014 = vmatpush.xpose.msra.mxu0 0.0
    %1015 = vmatpush.xpose.msra.mxu0 0.0
    %1016 = vmatpush.xpose.msra.mxu0 0.0
    %1017 = vmatpush.xpose.msra.mxu0 0.0
    %1018 = vmatpush.xpose.msra.mxu0 0.0
    %1019 = vmatpush.xpose.msra.mxu0 %v1002
    %1020 = vmatmul.f32.gmra.mxu0 %v999
    %v1021 = vpop.f32.mrf.mxu0
    %v1022 = vadd.f32 0.0, %v1021
    %1023 = vdwg.mxu0
    %v1024 = vmul.f32 %v1022, 0.35355338
    %v1025 = vsel %vm447, %v1024, -inf
    %1026 = vmax.xlane.f32.xlu0 %v1025
    %v1027 = vpop.xlane.xlu0 %1026
    %v1028 = vsub.f32 %v1024, %v1027
    %v1029 = vmul.f32 %v1028, 1.442695
    %v1030 = vpow.pop %v1029
    %v1031 = vsel %vm447, %v1030, 0.0
    %1032 = vadd.xlane.f32.xlu0 %v1031
    %v1033 = vpop.xlane.xlu0 %1032
    %v1034 = vrcp.pop %v1033
    %v1035 = vmul.f32 %v1030, %v1034
    %v1037 = vsel %vm447, %v1035, 0
    %1039 = vmatpush.msra.mxu0 0.0
    %1040 = vmatpush.msra.mxu0 0.0
    %1041 = vmatpush.msra.mxu0 0.0
    %1042 = vmatpush.msra.mxu0 0.0
    %1043 = vmatpush.msra.mxu0 0.0
    %1044 = vmatpush.msra.mxu0 0.0
    %1045 = vmatpush.msra.mxu0 0.0
    %1046 = vmatpush.msra.mxu0 0.0
    %1047 = vmatpush.msra.mxu0 0.0
    %1048 = vmatpush.msra.mxu0 0.0
    %1049 = vmatpush.msra.mxu0 0.0
    %1050 = vmatpush.msra.mxu0 0.0
    %1051 = vmatpush.msra.mxu0 0.0
    %1052 = vmatpush.msra.mxu0 0.0
    %1053 = vmatpush.msra.mxu0 0.0
    %1054 = vmatpush.msra.mxu0 %v991
    %1055 = vmatmul.f32.gmra.mxu0 %v1037
    %v1056 = vpop.f32.mrf.mxu0
    %v1057 = vadd.f32 0.0, %v1056
    %1058 = vdwg.mxu0
    %v1059 = vld [vmem:[#allocation2] sm:$0xff]
    %v1061 = vsel %vm447, %v1057, 0
    %1063 = vmatpush.msra.mxu0 0.0
    %1064 = vmatpush.msra.mxu0 0.0
    %1065 = vmatpush.msra.mxu0 0.0
    %1066 = vmatpush.msra.mxu0 0.0
    %1067 = vmatpush.msra.mxu0 0.0
    %1068 = vmatpush.msra.mxu0 0.0
    %1069 = vmatpush.msra.mxu0 0.0
    %1070 = vmatpush.msra.mxu0 0.0
    %1071 = vmatpush.msra.mxu0 0.0
    %1072 = vmatpush.msra.mxu0 0.0
    %1073 = vmatpush.msra.mxu0 0.0
    %1074 = vmatpush.msra.mxu0 0.0
    %1075 = vmatpush.msra.mxu0 0.0
    %1076 = vmatpush.msra.mxu0 0.0
    %1077 = vmatpush.msra.mxu0 0.0
    %1078 = vmatpush.msra.mxu0 %v997
    %1079 = vmatmul.f32.gmra.mxu0 %v1061
    %v1080 = vpop.f32.mrf.mxu0
    %v1081 = vadd.f32 0.0, %v1080
    %1082 = vdwg.mxu0
    %v1083 = vadd.f32 %v1059, %v1081
    %1084 = vst.msk [vmem:[#allocation2] sm:$0xff] %vm344, %v1083
    %v1086 = vsel %vm447, %v928, 0
    %v1089 = vsel %vm447, %v961, 0
    %1091 = vmatpush.xpose.msra.mxu0 0.0
    %1092 = vmatpush.xpose.msra.mxu0 0.0
    %1093 = vmatpush.xpose.msra.mxu0 0.0
    %1094 = vmatpush.xpose.msra.mxu0 0.0
    %1095 = vmatpush.xpose.msra.mxu0 0.0
    %1096 = vmatpush.xpose.msra.mxu0 0.0
    %1097 = vmatpush.xpose.msra.mxu0 0.0
    %1098 = vmatpush.xpose.msra.mxu0 0.0
    %1099 = vmatpush.xpose.msra.mxu0 0.0
    %1100 = vmatpush.xpose.msra.mxu0 0.0
    %1101 = vmatpush.xpose.msra.mxu0 0.0
    %1102 = vmatpush.xpose.msra.mxu0 0.0
    %1103 = vmatpush.xpose.msra.mxu0 0.0
    %1104 = vmatpush.xpose.msra.mxu0 0.0
    %1105 = vmatpush.xpose.msra.mxu0 0.0
    %1106 = vmatpush.xpose.msra.mxu0 %v1089
    %1107 = vmatmul.f32.gmra.mxu0 %v1086
    %v1108 = vpop.f32.mrf.mxu0
    %v1109 = vadd.f32 0.0, %v1108
    %1110 = vdwg.mxu0
    %v1111 = vmul.f32 %v1109, 0.35355338
    %v1112 = vsel %vm447, %v1111, -inf
    %1113 = vmax.xlane.f32.xlu0 %v1112
    %v1114 = vpop.xlane.xlu0 %1113
    %v1115 = vsub.f32 %v1111, %v1114
    %v1116 = vmul.f32 %v1115, 1.442695
    %v1117 = vpow.pop %v1116
    %v1118 = vsel %vm447, %v1117, 0.0
    %1119 = vadd.xlane.f32.xlu0 %v1118
    %v1120 = vpop.xlane.xlu0 %1119
    %v1121 = vrcp.pop %v1120
    %v1122 = vmul.f32 %v1117, %v1121
    %v1124 = vsel %vm447, %v1122, 0
    %1126 = vmatpush.msra.mxu0 0.0
    %1127 = vmatpush.msra.mxu0 0.0
    %1128 = vmatpush.msra.mxu0 0.0
    %1129 = vmatpush.msra.mxu0 0.0
    %1130 = vmatpush.msra.mxu0 0.0
    %1131 = vmatpush.msra.mxu0 0.0
    %1132 = vmatpush.msra.mxu0 0.0
    %1133 = vmatpush.msra.mxu0 0.0
    %1134 = vmatpush.msra.mxu0 0.0
    %1135 = vmatpush.msra.mxu0 0.0
    %1136 = vmatpush.msra.mxu0 0.0
    %1137 = vmatpush.msra.mxu0 0.0
    %1138 = vmatpush.msra.mxu0 0.0
    %1139 = vmatpush.msra.mxu0 0.0
    %1140 = vmatpush.msra.mxu0 0.0
    %1141 = vmatpush.msra.mxu0 %v994
    %1142 = vmatmul.f32.gmra.mxu0 %v1124
    %v1143 = vpop.f32.mrf.mxu0
    %v1144 = vadd.f32 0.0, %v1143
    %1145 = vdwg.mxu0
    %v1146 = vld [vmem:[#allocation2 + $0x8] sm:$0xff]
    %v1148 = vsel %vm447, %v1144, 0
    %1150 = vmatpush.msra.mxu0 0.0
    %1151 = vmatpush.msra.mxu0 0.0
    %1152 = vmatpush.msra.mxu0 0.0
    %1153 = vmatpush.msra.mxu0 0.0
    %1154 = vmatpush.msra.mxu0 0.0
    %1155 = vmatpush.msra.mxu0 0.0
    %1156 = vmatpush.msra.mxu0 0.0
    %1157 = vmatpush.msra.mxu0 0.0
    %1158 = vmatpush.msra.mxu0 0.0
    %1159 = vmatpush.msra.mxu0 0.0
    %1160 = vmatpush.msra.mxu0 0.0
    %1161 = vmatpush.msra.mxu0 0.0
    %1162 = vmatpush.msra.mxu0 0.0
    %1163 = vmatpush.msra.mxu0 0.0
    %1164 = vmatpush.msra.mxu0 0.0
    %1165 = vmatpush.msra.mxu0 %v997
    %1166 = vmatmul.f32.gmra.mxu0 %v1148
    %v1167 = vpop.f32.mrf.mxu0
    %v1168 = vadd.f32 0.0, %v1167
    %1169 = vdwg.mxu0
    %v1170 = vadd.f32 %v1146, %v1168
    %1171 = vst.msk [vmem:[#allocation2 + $0x8] sm:$0xff] %vm344, %v1170
    %s1172 = scalar_lea.vmem %s4, 24
    %v1173 = vld [vmem:[%s1172] sm:$0xff]
    %s1174 = scalar_lea.vmem %s5, 3
    %v1175 = vld [vmem:[%s1174] sm:$0x1]
    %v1177 = vperm.slane %v1175, 0
    %v1180 = vsel %vm344, %v1173, 0
    %1182 = vmatpush.xpose.msra.mxu0 0.0
    %1183 = vmatpush.xpose.msra.mxu0 0.0
    %1184 = vmatpush.xpose.msra.mxu0 0.0
    %1185 = vmatpush.xpose.msra.mxu0 0.0
    %1186 = vmatpush.xpose.msra.mxu0 0.0
    %1187 = vmatpush.xpose.msra.mxu0 0.0
    %1188 = vmatpush.xpose.msra.mxu0 0.0
    %1189 = vmatpush.xpose.msra.mxu0 0.0
    %1190 = vmatpush.xpose.msra.mxu0 0.0
    %1191 = vmatpush.xpose.msra.mxu0 0.0
    %1192 = vmatpush.xpose.msra.mxu0 0.0
    %1193 = vmatpush.xpose.msra.mxu0 0.0
    %1194 = vmatpush.xpose.msra.mxu0 0.0
    %1195 = vmatpush.xpose.msra.mxu0 0.0
    %1196 = vmatpush.xpose.msra.mxu0 0.0
    %1197 = vmatpush.xpose.msra.mxu0 %v1180
    %1198 = vmatmul.f32.gmra.mxu0 %v353
    %v1199 = vpop.f32.mrf.mxu0
    %v1200 = vadd.f32 %v1177, %v1199
    %1201 = vmatmul.f32.gmra.mxu0 %v356
    %v1202 = vpop.f32.mrf.mxu0
    %v1203 = vadd.f32 %v1177, %v1202
    %1204 = vdwg.mxu0
    %s1205 = scalar_lea.vmem [#allocation5], 24
    %v1206 = vld [vmem:[%s1205] sm:$0xff]
    %s1207 = scalar_lea.vmem %s7, 3
    %v1208 = vld [vmem:[%s1207] sm:$0x1]
    %v1210 = vperm.slane %v1208, 0
    %v1213 = vsel %vm344, %v1206, 0
    %1215 = vmatpush.xpose.msra.mxu0 0.0
    %1216 = vmatpush.xpose.msra.mxu0 0.0
    %1217 = vmatpush.xpose.msra.mxu0 0.0
    %1218 = vmatpush.xpose.msra.mxu0 0.0
    %1219 = vmatpush.xpose.msra.mxu0 0.0
    %1220 = vmatpush.xpose.msra.mxu0 0.0
    %1221 = vmatpush.xpose.msra.mxu0 0.0
    %1222 = vmatpush.xpose.msra.mxu0 0.0
    %1223 = vmatpush.xpose.msra.mxu0 0.0
    %1224 = vmatpush.xpose.msra.mxu0 0.0
    %1225 = vmatpush.xpose.msra.mxu0 0.0
    %1226 = vmatpush.xpose.msra.mxu0 0.0
    %1227 = vmatpush.xpose.msra.mxu0 0.0
    %1228 = vmatpush.xpose.msra.mxu0 0.0
    %1229 = vmatpush.xpose.msra.mxu0 0.0
    %1230 = vmatpush.xpose.msra.mxu0 %v1213
    %1231 = vmatmul.f32.gmra.mxu0 %v353
    %v1232 = vpop.f32.mrf.mxu0
    %v1233 = vadd.f32 %v1210, %v1232
    %1234 = vmatmul.f32.gmra.mxu0 %v356
    %v1235 = vpop.f32.mrf.mxu0
    %v1236 = vadd.f32 %v1210, %v1235
    %1237 = vdwg.mxu0
    %s1238 = scalar_lea.vmem [#allocation7], 24
    %v1239 = vld [vmem:[%s1238] sm:$0xff]
    %s1240 = scalar_lea.vmem %s9, 3
    %v1241 = vld [vmem:[%s1240] sm:$0x1]
    %v1243 = vperm.slane %v1241, 0
    %v1246 = vsel %vm344, %v1239, 0
    %1248 = vmatpush.xpose.msra.mxu0 0.0
    %1249 = vmatpush.xpose.msra.mxu0 0.0
    %1250 = vmatpush.xpose.msra.mxu0 0.0
    %1251 = vmatpush.xpose.msra.mxu0 0.0
    %1252 = vmatpush.xpose.msra.mxu0 0.0
    %1253 = vmatpush.xpose.msra.mxu0 0.0
    %1254 = vmatpush.xpose.msra.mxu0 0.0
    %1255 = vmatpush.xpose.msra.mxu0 0.0
    %1256 = vmatpush.xpose.msra.mxu0 0.0
    %1257 = vmatpush.xpose.msra.mxu0 0.0
    %1258 = vmatpush.xpose.msra.mxu0 0.0
    %1259 = vmatpush.xpose.msra.mxu0 0.0
    %1260 = vmatpush.xpose.msra.mxu0 0.0
    %1261 = vmatpush.xpose.msra.mxu0 0.0
    %1262 = vmatpush.xpose.msra.mxu0 0.0
    %1263 = vmatpush.xpose.msra.mxu0 %v1246
    %1264 = vmatmul.f32.gmra.mxu0 %v353
    %v1265 = vpop.f32.mrf.mxu0
    %v1266 = vadd.f32 %v1243, %v1265
    %1267 = vmatmul.f32.gmra.mxu0 %v356
    %v1268 = vpop.f32.mrf.mxu0
    %v1269 = vadd.f32 %v1243, %v1268
    %1270 = vdwg.mxu0
    %s1271 = scalar_lea.vmem [#allocation8], 24
    %v1272 = vld [vmem:[%s1271] sm:$0xff]
    %v1274 = vsel %vm447, %v1200, 0
    %v1277 = vsel %vm447, %v1233, 0
    %1279 = vmatpush.xpose.msra.mxu0 0.0
    %1280 = vmatpush.xpose.msra.mxu0 0.0
    %1281 = vmatpush.xpose.msra.mxu0 0.0
    %1282 = vmatpush.xpose.msra.mxu0 0.0
    %1283 = vmatpush.xpose.msra.mxu0 0.0
    %1284 = vmatpush.xpose.msra.mxu0 0.0
    %1285 = vmatpush.xpose.msra.mxu0 0.0
    %1286 = vmatpush.xpose.msra.mxu0 0.0
    %1287 = vmatpush.xpose.msra.mxu0 0.0
    %1288 = vmatpush.xpose.msra.mxu0 0.0
    %1289 = vmatpush.xpose.msra.mxu0 0.0
    %1290 = vmatpush.xpose.msra.mxu0 0.0
    %1291 = vmatpush.xpose.msra.mxu0 0.0
    %1292 = vmatpush.xpose.msra.mxu0 0.0
    %1293 = vmatpush.xpose.msra.mxu0 0.0
    %1294 = vmatpush.xpose.msra.mxu0 %v1277
    %1295 = vmatmul.f32.gmra.mxu0 %v1274
    %v1296 = vpop.f32.mrf.mxu0
    %v1297 = vadd.f32 0.0, %v1296
    %1298 = vdwg.mxu0
    %v1299 = vmul.f32 %v1297, 0.35355338
    %v1300 = vsel %vm447, %v1299, -inf
    %1301 = vmax.xlane.f32.xlu0 %v1300
    %v1302 = vpop.xlane.xlu0 %1301
    %v1303 = vsub.f32 %v1299, %v1302
    %v1304 = vmul.f32 %v1303, 1.442695
    %v1305 = vpow.pop %v1304
    %v1306 = vsel %vm447, %v1305, 0.0
    %1307 = vadd.xlane.f32.xlu0 %v1306
    %v1308 = vpop.xlane.xlu0 %1307
    %v1309 = vrcp.pop %v1308
    %v1310 = vmul.f32 %v1305, %v1309
    %v1312 = vsel %vm447, %v1310, 0
    %1314 = vmatpush.msra.mxu0 0.0
    %1315 = vmatpush.msra.mxu0 0.0
    %1316 = vmatpush.msra.mxu0 0.0
    %1317 = vmatpush.msra.mxu0 0.0
    %1318 = vmatpush.msra.mxu0 0.0
    %1319 = vmatpush.msra.mxu0 0.0
    %1320 = vmatpush.msra.mxu0 0.0
    %1321 = vmatpush.msra.mxu0 0.0
    %1322 = vmatpush.msra.mxu0 0.0
    %1323 = vmatpush.msra.mxu0 0.0
    %1324 = vmatpush.msra.mxu0 0.0
    %1325 = vmatpush.msra.mxu0 0.0
    %1326 = vmatpush.msra.mxu0 0.0
    %1327 = vmatpush.msra.mxu0 0.0
    %1328 = vmatpush.msra.mxu0 0.0
    %1329 = vmatpush.msra.mxu0 %v1266
    %1330 = vmatmul.f32.gmra.mxu0 %v1312
    %v1331 = vpop.f32.mrf.mxu0
    %v1332 = vadd.f32 0.0, %v1331
    %1333 = vdwg.mxu0
    %v1334 = vld [vmem:[#allocation2] sm:$0xff]
    %v1336 = vsel %vm447, %v1332, 0
    %1338 = vmatpush.msra.mxu0 0.0
    %1339 = vmatpush.msra.mxu0 0.0
    %1340 = vmatpush.msra.mxu0 0.0
    %1341 = vmatpush.msra.mxu0 0.0
    %1342 = vmatpush.msra.mxu0 0.0
    %1343 = vmatpush.msra.mxu0 0.0
    %1344 = vmatpush.msra.mxu0 0.0
    %1345 = vmatpush.msra.mxu0 0.0
    %1346 = vmatpush.msra.mxu0 0.0
    %1347 = vmatpush.msra.mxu0 0.0
    %1348 = vmatpush.msra.mxu0 0.0
    %1349 = vmatpush.msra.mxu0 0.0
    %1350 = vmatpush.msra.mxu0 0.0
    %1351 = vmatpush.msra.mxu0 0.0
    %1352 = vmatpush.msra.mxu0 0.0
    %1353 = vmatpush.msra.mxu0 %v1272
    %1354 = vmatmul.f32.gmra.mxu0 %v1336
    %v1355 = vpop.f32.mrf.mxu0
    %v1356 = vadd.f32 0.0, %v1355
    %1357 = vdwg.mxu0
    %v1358 = vadd.f32 %v1334, %v1356
    %1359 = vst.msk [vmem:[#allocation2] sm:$0xff] %vm344, %v1358
    %v1361 = vsel %vm447, %v1203, 0
    %v1364 = vsel %vm447, %v1236, 0
    %1366 = vmatpush.xpose.msra.mxu0 0.0
    %1367 = vmatpush.xpose.msra.mxu0 0.0
    %1368 = vmatpush.xpose.msra.mxu0 0.0
    %1369 = vmatpush.xpose.msra.mxu0 0.0
    %1370 = vmatpush.xpose.msra.mxu0 0.0
    %1371 = vmatpush.xpose.msra.mxu0 0.0
    %1372 = vmatpush.xpose.msra.mxu0 0.0
    %1373 = vmatpush.xpose.msra.mxu0 0.0
    %1374 = vmatpush.xpose.msra.mxu0 0.0
    %1375 = vmatpush.xpose.msra.mxu0 0.0
    %1376 = vmatpush.xpose.msra.mxu0 0.0
    %1377 = vmatpush.xpose.msra.mxu0 0.0
    %1378 = vmatpush.xpose.msra.mxu0 0.0
    %1379 = vmatpush.xpose.msra.mxu0 0.0
    %1380 = vmatpush.xpose.msra.mxu0 0.0
    %1381 = vmatpush.xpose.msra.mxu0 %v1364
    %1382 = vmatmul.f32.gmra.mxu0 %v1361
    %v1383 = vpop.f32.mrf.mxu0
    %v1384 = vadd.f32 0.0, %v1383
    %1385 = vdwg.mxu0
    %v1386 = vmul.f32 %v1384, 0.35355338
    %v1387 = vsel %vm447, %v1386, -inf
    %1388 = vmax.xlane.f32.xlu0 %v1387
    %v1389 = vpop.xlane.xlu0 %1388
    %v1390 = vsub.f32 %v1386, %v1389
    %v1391 = vmul.f32 %v1390, 1.442695
    %v1392 = vpow.pop %v1391
    %v1393 = vsel %vm447, %v1392, 0.0
    %1394 = vadd.xlane.f32.xlu0 %v1393
    %v1395 = vpop.xlane.xlu0 %1394
    %v1396 = vrcp.pop %v1395
    %v1397 = vmul.f32 %v1392, %v1396
    %v1399 = vsel %vm447, %v1397, 0
    %1401 = vmatpush.msra.mxu0 0.0
    %1402 = vmatpush.msra.mxu0 0.0
    %1403 = vmatpush.msra.mxu0 0.0
    %1404 = vmatpush.msra.mxu0 0.0
    %1405 = vmatpush.msra.mxu0 0.0
    %1406 = vmatpush.msra.mxu0 0.0
    %1407 = vmatpush.msra.mxu0 0.0
    %1408 = vmatpush.msra.mxu0 0.0
    %1409 = vmatpush.msra.mxu0 0.0
    %1410 = vmatpush.msra.mxu0 0.0
    %1411 = vmatpush.msra.mxu0 0.0
    %1412 = vmatpush.msra.mxu0 0.0
    %1413 = vmatpush.msra.mxu0 0.0
    %1414 = vmatpush.msra.mxu0 0.0
    %1415 = vmatpush.msra.mxu0 0.0
    %1416 = vmatpush.msra.mxu0 %v1269
    %1417 = vmatmul.f32.gmra.mxu0 %v1399
    %v1418 = vpop.f32.mrf.mxu0
    %v1419 = vadd.f32 0.0, %v1418
    %1420 = vdwg.mxu0
    %v1421 = vld [vmem:[#allocation2 + $0x8] sm:$0xff]
    %v1423 = vsel %vm447, %v1419, 0
    %1425 = vmatpush.msra.mxu0 0.0
    %1426 = vmatpush.msra.mxu0 0.0
    %1427 = vmatpush.msra.mxu0 0.0
    %1428 = vmatpush.msra.mxu0 0.0
    %1429 = vmatpush.msra.mxu0 0.0
    %1430 = vmatpush.msra.mxu0 0.0
    %1431 = vmatpush.msra.mxu0 0.0
    %1432 = vmatpush.msra.mxu0 0.0
    %1433 = vmatpush.msra.mxu0 0.0
    %1434 = vmatpush.msra.mxu0 0.0
    %1435 = vmatpush.msra.mxu0 0.0
    %1436 = vmatpush.msra.mxu0 0.0
    %1437 = vmatpush.msra.mxu0 0.0
    %1438 = vmatpush.msra.mxu0 0.0
    %1439 = vmatpush.msra.mxu0 0.0
    %1440 = vmatpush.msra.mxu0 %v1272
    %1441 = vmatmul.f32.gmra.mxu0 %v1423
    %v1442 = vpop.f32.mrf.mxu0
    %v1443 = vadd.f32 0.0, %v1442
    %1444 = vdwg.mxu0
    %v1445 = vadd.f32 %v1421, %v1443
    %1446 = vst.msk [vmem:[#allocation2 + $0x8] sm:$0xff] %vm344, %v1445
    %v1447 = vld [vmem:[#allocation2] sm:$0xff]
    %v1448 = vld [vmem:[#allocation2 + $0x8] sm:$0xff]
    %v1449 = vld [vmem:[#allocation10] sm:$0x1]
    %v1451 = vperm.slane %v1449, 0
    %v1453 = vadd.f32 %v1447, %v1451
    %v1454 = vadd.f32 %v1448, %v1451
    %v1455 = vadd.f32 %v342, %v1453
    %v1456 = vadd.f32 %v343, %v1454
    %v1457 = vld [vmem:[#allocation11] sm:$0x1]
    %v1458 = vld [vmem:[#allocation13] sm:$0x1]
    %v1459 = vsel %vm344, %v1455, 0.0
    %1460 = vadd.xlane.f32.xlu0 %v1459
    %v1461 = vpop.xlane.xlu0 %1460
    %v1462 = vsel %vm344, %v1456, 0.0
    %1463 = vadd.xlane.f32.xlu0 %v1462
    %v1464 = vpop.xlane.xlu0 %1463
    %v1465 = vrcp.pop 32.0
    %v1466 = vmul.f32 32.0, %v1465
    %v1467 = vsub.f32 1.0, %v1466
    %v1468 = vmul.f32 %v1465, %v1467
    %v1469 = vadd.f32 %v1465, %v1468
    %vm1470 = vweird.f32 %v1465
    %v1471 = vsel %vm1470, %v1465, %v1469
    %v1472 = vmul.f32 %v1461, %v1471
    %v1473 = vmul.f32 %v1464, %v1471
    %v1474 = vsub.f32 %v1455, %v1472
    %v1475 = vsub.f32 %v1456, %v1473
    %v1476 = vmul.f32 %v1474, %v1474
    %v1477 = vmul.f32 %v1475, %v1475
    %v1478 = vsel %vm344, %v1476, 0.0
    %1479 = vadd.xlane.f32.xlu0 %v1478
    %v1480 = vpop.xlane.xlu0 %1479
    %v1481 = vsel %vm344, %v1477, 0.0
    %1482 = vadd.xlane.f32.xlu0 %v1481
    %v1483 = vpop.xlane.xlu0 %1482
    %v1484 = vmul.f32 %v1480, %v1471
    %v1485 = vmul.f32 %v1483, %v1471
    %v1486 = vadd.f32 %v1484, 1e-05
    %v1487 = vadd.f32 %v1485, 1e-05
    %v1488 = vrsqrt.pop %v1486
    %v1489 = vmul.f32 %v1488, %v1486
    %v1490 = vmul.f32 %v1489, %v1488
    %v1491 = vmul.f32 0.5, %v1490
    %v1492 = vsub.f32 1.5, %v1491
    %v1493 = vmul.f32 %v1488, %v1492
    %vm1494 = vweird.f32 %v1486
    %vm1495 = vweird.f32 %v1488
    %vm1496 = vmor %vm1494, %vm1495
    %v1497 = vsel %vm1496, %v1488, %v1493
    %v1498 = vrsqrt.pop %v1487
    %v1499 = vmul.f32 %v1498, %v1487
    %v1500 = vmul.f32 %v1499, %v1498
    %v1501 = vmul.f32 0.5, %v1500
    %v1502 = vsub.f32 1.5, %v1501
    %v1503 = vmul.f32 %v1498, %v1502
    %vm1504 = vweird.f32 %v1487
    %vm1505 = vweird.f32 %v1498
    %vm1506 = vmor %vm1504, %vm1505
    %v1507 = vsel %vm1506, %v1498, %v1503
    %v1508 = vmul.f32 %v1474, %v1497
    %v1509 = vmul.f32 %v1475, %v1507
    %v1511 = vperm.slane %v1457, 0
    %v1513 = vmul.f32 %v1508, %v1511
    %v1514 = vmul.f32 %v1509, %v1511
    %v1516 = vperm.slane %v1458, 0
    %v1518 = vadd.f32 %v1513, %v1516
    %v1519 = vadd.f32 %v1514, %v1516
    %v1520 = vpack.c.bf16 %v1519, %v1518
    %v1521 = vld [vmem:[#allocation14] sm:$0xff]
    %v1522 = vld [vmem:[#allocation14 + $0x8] sm:$0xff]
    %v1523 = vld [vmem:[#allocation14 + $0x10] sm:$0xff]
    %v1524 = vld [vmem:[#allocation14 + $0x18] sm:$0xff]
    %v1525 = vld [vmem:[#allocation14 + $0x20] sm:$0xff]
    %v1526 = vld [vmem:[#allocation14 + $0x28] sm:$0xff]
    %v1527 = vld [vmem:[#allocation14 + $0x30] sm:$0xff]
    %v1528 = vld [vmem:[#allocation14 + $0x38] sm:$0xff]
    %v1529 = vld [vmem:[#allocation14 + $0x40] sm:$0xff]
    %v1530 = vld [vmem:[#allocation14 + $0x48] sm:$0xff]
    %v1531 = vld [vmem:[#allocation14 + $0x50] sm:$0xff]
    %v1532 = vld [vmem:[#allocation14 + $0x58] sm:$0xff]
    %v1533 = vld [vmem:[#allocation14 + $0x60] sm:$0xff]
    %v1534 = vld [vmem:[#allocation14 + $0x68] sm:$0xff]
    %v1535 = vld [vmem:[#allocation14 + $0x70] sm:$0xff]
    %v1536 = vld [vmem:[#allocation14 + $0x78] sm:$0xff]
    %v1537 = vld [vmem:[#allocation14 + $0x80] sm:$0xff]
    %v1538 = vld [vmem:[#allocation14 + $0x88] sm:$0xff]
    %v1539 = vld [vmem:[#allocation14 + $0x90] sm:$0xff]
    %v1540 = vld [vmem:[#allocation14 + $0x98] sm:$0xff]
    %v1541 = vld [vmem:[#allocation14 + $0xa0] sm:$0xff]
    %v1542 = vld [vmem:[#allocation14 + $0xa8] sm:$0xff]
    %v1543 = vld [vmem:[#allocation14 + $0xb0] sm:$0xff]
    %v1544 = vld [vmem:[#allocation14 + $0xb8] sm:$0xff]
    %v1545 = vld [vmem:[#allocation14 + $0xc0] sm:$0xff]
    %v1546 = vld [vmem:[#allocation14 + $0xc8] sm:$0xff]
    %v1547 = vld [vmem:[#allocation14 + $0xd0] sm:$0xff]
    %v1548 = vld [vmem:[#allocation14 + $0xd8] sm:$0xff]
    %v1549 = vld [vmem:[#allocation14 + $0xe0] sm:$0xff]
    %v1550 = vld [vmem:[#allocation14 + $0xe8] sm:$0xff]
    %v1551 = vld [vmem:[#allocation14 + $0xf0] sm:$0xff]
    %v1552 = vld [vmem:[#allocation14 + $0xf8] sm:$0xff]
    %v1553 = vld [vmem:[#allocation16] sm:$0xff]
    %v1554 = vld [vmem:[#allocation16 + $0x8] sm:$0xff]
    %v1557 = vperm.slane %v1553, 0
    %v1558 = vperm.slane %v1553, 1
    %v1559 = vperm.slane %v1553, 2
    %v1560 = vperm.slane %v1553, 3
    %v1561 = vperm.slane %v1553, 4
    %v1562 = vperm.slane %v1553, 5
    %v1563 = vperm.slane %v1553, 6
    %v1564 = vperm.slane %v1553, 7
    %v1565 = vperm.slane %v1554, 0
    %v1566 = vperm.slane %v1554, 1
    %v1567 = vperm.slane %v1554, 2
    %v1568 = vperm.slane %v1554, 3
    %v1569 = vperm.slane %v1554, 4
    %v1570 = vperm.slane %v1554, 5
    %v1571 = vperm.slane %v1554, 6
    %v1572 = vperm.slane %v1554, 7
    %v1621 = vunpack.c.l.b16 %v1521
    %v1622 = vunpack.c.h.b16 %v1521
    %v1623 = vunpack.c.l.b16 %v1522
    %v1624 = vunpack.c.h.b16 %v1522
    %v1625 = vunpack.c.l.b16 %v1523
    %v1626 = vunpack.c.h.b16 %v1523
    %v1627 = vunpack.c.l.b16 %v1524
    %v1628 = vunpack.c.h.b16 %v1524
    %v1629 = vunpack.c.l.b16 %v1525
    %v1630 = vunpack.c.h.b16 %v1525
    %v1631 = vunpack.c.l.b16 %v1526
    %v1632 = vunpack.c.h.b16 %v1526
    %v1633 = vunpack.c.l.b16 %v1527
    %v1634 = vunpack.c.h.b16 %v1527
    %v1635 = vunpack.c.l.b16 %v1528
    %v1636 = vunpack.c.h.b16 %v1528
    %v1637 = vunpack.c.l.b16 %v1529
    %v1638 = vunpack.c.h.b16 %v1529
    %v1639 = vunpack.c.l.b16 %v1530
    %v1640 = vunpack.c.h.b16 %v1530
    %v1641 = vunpack.c.l.b16 %v1531
    %v1642 = vunpack.c.h.b16 %v1531
    %v1643 = vunpack.c.l.b16 %v1532
    %v1644 = vunpack.c.h.b16 %v1532
    %v1645 = vunpack.c.l.b16 %v1533
    %v1646 = vunpack.c.h.b16 %v1533
    %v1647 = vunpack.c.l.b16 %v1534
    %v1648 = vunpack.c.h.b16 %v1534
    %v1649 = vunpack.c.l.b16 %v1535
    %v1650 = vunpack.c.h.b16 %v1535
    %v1651 = vunpack.c.l.b16 %v1536
    %v1652 = vunpack.c.h.b16 %v1536
    %v1653 = vunpack.c.l.b16 %v1537
    %v1654 = vunpack.c.h.b16 %v1537
    %v1655 = vunpack.c.l.b16 %v1538
    %v1656 = vunpack.c.h.b16 %v1538
    %v1657 = vunpack.c.l.b16 %v1539
    %v1658 = vunpack.c.h.b16 %v1539
    %v1659 = vunpack.c.l.b16 %v1540
    %v1660 = vunpack.c.h.b16 %v1540
    %v1661 = vunpack.c.l.b16 %v1541
    %v1662 = vunpack.c.h.b16 %v1541
    %v1663 = vunpack.c.l.b16 %v1542
    %v1664 = vunpack.c.h.b16 %v1542
    %v1665 = vunpack.c.l.b16 %v1543
    %v1666 = vunpack.c.h.b16 %v1543
    %v1667 = vunpack.c.l.b16 %v1544
    %v1668 = vunpack.c.h.b16 %v1544
    %v1669 = vunpack.c.l.b16 %v1545
    %v1670 = vunpack.c.h.b16 %v1545
    %v1671 = vunpack.c.l.b16 %v1546
    %v1672 = vunpack.c.h.b16 %v1546
    %v1673 = vunpack.c.l.b16 %v1547
    %v1674 = vunpack.c.h.b16 %v1547
    %v1675 = vunpack.c.l.b16 %v1548
    %v1676 = vunpack.c.h.b16 %v1548
    %v1677 = vunpack.c.l.b16 %v1549
    %v1678 = vunpack.c.h.b16 %v1549
    %v1679 = vunpack.c.l.b16 %v1550
    %v1680 = vunpack.c.h.b16 %v1550
    %v1681 = vunpack.c.l.b16 %v1551
    %v1682 = vunpack.c.h.b16 %v1551
    %v1683 = vunpack.c.l.b16 %v1552
    %v1684 = vunpack.c.h.b16 %v1552
    %v1685 = vpack.c.b16 %v1637, %v1621
    %v1686 = vpack.c.b16 %v1638, %v1622
    %v1687 = vpack.c.b16 %v1639, %v1623
    %v1688 = vpack.c.b16 %v1640, %v1624
    %v1689 = vpack.c.b16 %v1641, %v1625
    %v1690 = vpack.c.b16 %v1642, %v1626
    %v1691 = vpack.c.b16 %v1643, %v1627
    %v1692 = vpack.c.b16 %v1644, %v1628
    %v1693 = vpack.c.b16 %v1645, %v1629
    %v1694 = vpack.c.b16 %v1646, %v1630
    %v1695 = vpack.c.b16 %v1647, %v1631
    %v1696 = vpack.c.b16 %v1648, %v1632
    %v1697 = vpack.c.b16 %v1649, %v1633
    %v1698 = vpack.c.b16 %v1650, %v1634
    %v1699 = vpack.c.b16 %v1651, %v1635
    %v1700 = vpack.c.b16 %v1652, %v1636
    %v1701 = vpack.c.b16 %v1669, %v1653
    %v1702 = vpack.c.b16 %v1670, %v1654
    %v1703 = vpack.c.b16 %v1671, %v1655
    %v1704 = vpack.c.b16 %v1672, %v1656
    %v1705 = vpack.c.b16 %v1673, %v1657
    %v1706 = vpack.c.b16 %v1674, %v1658
    %v1707 = vpack.c.b16 %v1675, %v1659
    %v1708 = vpack.c.b16 %v1676, %v1660
    %v1709 = vpack.c.b16 %v1677, %v1661
    %v1710 = vpack.c.b16 %v1678, %v1662
    %v1711 = vpack.c.b16 %v1679, %v1663
    %v1712 = vpack.c.b16 %v1680, %v1664
    %v1713 = vpack.c.b16 %v1681, %v1665
    %v1714 = vpack.c.b16 %v1682, %v1666
    %v1715 = vpack.c.b16 %v1683, %v1667
    %v1716 = vpack.c.b16 %v1684, %v1668
    %v1750 = vsel %vm344, %v1520, 0
    %1752 = vmatpush.bf16.msra.mxu0 0
    %1753 = vmatpush.bf16.msra.mxu0 0
    %1754 = vmatpush.bf16.msra.mxu0 0
    %1755 = vmatpush.bf16.msra.mxu0 0
    %1756 = vmatpush.bf16.msra.mxu0 0
    %1757 = vmatpush.bf16.msra.mxu0 0
    %1758 = vmatpush.bf16.msra.mxu0 %v1701
    %1759 = vmatpush.bf16.msra.mxu0 %v1685
    %1760 = vmatmul.bf16.gmra.mxu0 %v1750
    %v1761 = vpop.f32.mrf.mxu0
    %v1762 = vadd.f32 %v1557, %v1761
    %v1763 = vpop.f32.mrf.mxu0
    %v1764 = vadd.f32 %v1557, %v1763
    %1765 = vdwg.mxu0
    %1766 = vmatpush.bf16.msra.mxu0 0
    %1767 = vmatpush.bf16.msra.mxu0 0
    %1768 = vmatpush.bf16.msra.mxu0 0
    %1769 = vmatpush.bf16.msra.mxu0 0
    %1770 = vmatpush.bf16.msra.mxu0 0
    %1771 = vmatpush.bf16.msra.mxu0 0
    %1772 = vmatpush.bf16.msra.mxu0 %v1702
    %1773 = vmatpush.bf16.msra.mxu0 %v1686
    %1774 = vmatmul.bf16.gmra.mxu0 %v1750
    %v1775 = vpop.f32.mrf.mxu0
    %v1776 = vadd.f32 %v1558, %v1775
    %v1777 = vpop.f32.mrf.mxu0
    %v1778 = vadd.f32 %v1558, %v1777
    %1779 = vdwg.mxu0
    %1780 = vmatpush.bf16.msra.mxu0 0
    %1781 = vmatpush.bf16.msra.mxu0 0
    %1782 = vmatpush.bf16.msra.mxu0 0
    %1783 = vmatpush.bf16.msra.mxu0 0
    %1784 = vmatpush.bf16.msra.mxu0 0
    %1785 = vmatpush.bf16.msra.mxu0 0
    %1786 = vmatpush.bf16.msra.mxu0 %v1703
    %1787 = vmatpush.bf16.msra.mxu0 %v1687
    %1788 = vmatmul.bf16.gmra.mxu0 %v1750
    %v1789 = vpop.f32.mrf.mxu0
    %v1790 = vadd.f32 %v1559, %v1789
    %v1791 = vpop.f32.mrf.mxu0
    %v1792 = vadd.f32 %v1559, %v1791
    %1793 = vdwg.mxu0
    %1794 = vmatpush.bf16.msra.mxu0 0
    %1795 = vmatpush.bf16.msra.mxu0 0
    %1796 = vmatpush.bf16.msra.mxu0 0
    %1797 = vmatpush.bf16.msra.mxu0 0
    %1798 = vmatpush.bf16.msra.mxu0 0
    %1799 = vmatpush.bf16.msra.mxu0 0
    %1800 = vmatpush.bf16.msra.mxu0 %v1704
    %1801 = vmatpush.bf16.msra.mxu0 %v1688
    %1802 = vmatmul.bf16.gmra.mxu0 %v1750
    %v1803 = vpop.f32.mrf.mxu0
    %v1804 = vadd.f32 %v1560, %v1803
    %v1805 = vpop.f32.mrf.mxu0
    %v1806 = vadd.f32 %v1560, %v1805
    %1807 = vdwg.mxu0
    %1808 = vmatpush.bf16.msra.mxu0 0
    %1809 = vmatpush.bf16.msra.mxu0 0
    %1810 = vmatpush.bf16.msra.mxu0 0
    %1811 = vmatpush.bf16.msra.mxu0 0
    %1812 = vmatpush.bf16.msra.mxu0 0
    %1813 = vmatpush.bf16.msra.mxu0 0
    %1814 = vmatpush.bf16.msra.mxu0 %v1705
    %1815 = vmatpush.bf16.msra.mxu0 %v1689
    %1816 = vmatmul.bf16.gmra.mxu0 %v1750
    %v1817 = vpop.f32.mrf.mxu0
    %v1818 = vadd.f32 %v1561, %v1817
    %v1819 = vpop.f32.mrf.mxu0
    %v1820 = vadd.f32 %v1561, %v1819
    %1821 = vdwg.mxu0
    %1822 = vmatpush.bf16.msra.mxu0 0
    %1823 = vmatpush.bf16.msra.mxu0 0
    %1824 = vmatpush.bf16.msra.mxu0 0
    %1825 = vmatpush.bf16.msra.mxu0 0
    %1826 = vmatpush.bf16.msra.mxu0 0
    %1827 = vmatpush.bf16.msra.mxu0 0
    %1828 = vmatpush.bf16.msra.mxu0 %v1706
    %1829 = vmatpush.bf16.msra.mxu0 %v1690
    %1830 = vmatmul.bf16.gmra.mxu0 %v1750
    %v1831 = vpop.f32.mrf.mxu0
    %v1832 = vadd.f32 %v1562, %v1831
    %v1833 = vpop.f32.mrf.mxu0
    %v1834 = vadd.f32 %v1562, %v1833
    %1835 = vdwg.mxu0
    %1836 = vmatpush.bf16.msra.mxu0 0
    %1837 = vmatpush.bf16.msra.mxu0 0
    %1838 = vmatpush.bf16.msra.mxu0 0
    %1839 = vmatpush.bf16.msra.mxu0 0
    %1840 = vmatpush.bf16.msra.mxu0 0
    %1841 = vmatpush.bf16.msra.mxu0 0
    %1842 = vmatpush.bf16.msra.mxu0 %v1707
    %1843 = vmatpush.bf16.msra.mxu0 %v1691
    %1844 = vmatmul.bf16.gmra.mxu0 %v1750
    %v1845 = vpop.f32.mrf.mxu0
    %v1846 = vadd.f32 %v1563, %v1845
    %v1847 = vpop.f32.mrf.mxu0
    %v1848 = vadd.f32 %v1563, %v1847
    %1849 = vdwg.mxu0
    %1850 = vmatpush.bf16.msra.mxu0 0
    %1851 = vmatpush.bf16.msra.mxu0 0
    %1852 = vmatpush.bf16.msra.mxu0 0
    %1853 = vmatpush.bf16.msra.mxu0 0
    %1854 = vmatpush.bf16.msra.mxu0 0
    %1855 = vmatpush.bf16.msra.mxu0 0
    %1856 = vmatpush.bf16.msra.mxu0 %v1708
    %1857 = vmatpush.bf16.msra.mxu0 %v1692
    %1858 = vmatmul.bf16.gmra.mxu0 %v1750
    %v1859 = vpop.f32.mrf.mxu0
    %v1860 = vadd.f32 %v1564, %v1859
    %v1861 = vpop.f32.mrf.mxu0
    %v1862 = vadd.f32 %v1564, %v1861
    %1863 = vdwg.mxu0
    %1864 = vmatpush.bf16.msra.mxu0 0
    %1865 = vmatpush.bf16.msra.mxu0 0
    %1866 = vmatpush.bf16.msra.mxu0 0
    %1867 = vmatpush.bf16.msra.mxu0 0
    %1868 = vmatpush.bf16.msra.mxu0 0
    %1869 = vmatpush.bf16.msra.mxu0 0
    %1870 = vmatpush.bf16.msra.mxu0 %v1709
    %1871 = vmatpush.bf16.msra.mxu0 %v1693
    %1872 = vmatmul.bf16.gmra.mxu0 %v1750
    %v1873 = vpop.f32.mrf.mxu0
    %v1874 = vadd.f32 %v1565, %v1873
    %v1875 = vpop.f32.mrf.mxu0
    %v1876 = vadd.f32 %v1565, %v1875
    %1877 = vdwg.mxu0
    %1878 = vmatpush.bf16.msra.mxu0 0
    %1879 = vmatpush.bf16.msra.mxu0 0
    %1880 = vmatpush.bf16.msra.mxu0 0
    %1881 = vmatpush.bf16.msra.mxu0 0
    %1882 = vmatpush.bf16.msra.mxu0 0
    %1883 = vmatpush.bf16.msra.mxu0 0
    %1884 = vmatpush.bf16.msra.mxu0 %v1710
    %1885 = vmatpush.bf16.msra.mxu0 %v1694
    %1886 = vmatmul.bf16.gmra.mxu0 %v1750
    %v1887 = vpop.f32.mrf.mxu0
    %v1888 = vadd.f32 %v1566, %v1887
    %v1889 = vpop.f32.mrf.mxu0
    %v1890 = vadd.f32 %v1566, %v1889
    %1891 = vdwg.mxu0
    %1892 = vmatpush.bf16.msra.mxu0 0
    %1893 = vmatpush.bf16.msra.mxu0 0
    %1894 = vmatpush.bf16.msra.mxu0 0
    %1895 = vmatpush.bf16.msra.mxu0 0
    %1896 = vmatpush.bf16.msra.mxu0 0
    %1897 = vmatpush.bf16.msra.mxu0 0
    %1898 = vmatpush.bf16.msra.mxu0 %v1711
    %1899 = vmatpush.bf16.msra.mxu0 %v1695
    %1900 = vmatmul.bf16.gmra.mxu0 %v1750
    %v1901 = vpop.f32.mrf.mxu0
    %v1902 = vadd.f32 %v1567, %v1901
    %v1903 = vpop.f32.mrf.mxu0
    %v1904 = vadd.f32 %v1567, %v1903
    %1905 = vdwg.mxu0
    %1906 = vmatpush.bf16.msra.mxu0 0
    %1907 = vmatpush.bf16.msra.mxu0 0
    %1908 = vmatpush.bf16.msra.mxu0 0
    %1909 = vmatpush.bf16.msra.mxu0 0
    %1910 = vmatpush.bf16.msra.mxu0 0
    %1911 = vmatpush.bf16.msra.mxu0 0
    %1912 = vmatpush.bf16.msra.mxu0 %v1712
    %1913 = vmatpush.bf16.msra.mxu0 %v1696
    %1914 = vmatmul.bf16.gmra.mxu0 %v1750
    %v1915 = vpop.f32.mrf.mxu0
    %v1916 = vadd.f32 %v1568, %v1915
    %v1917 = vpop.f32.mrf.mxu0
    %v1918 = vadd.f32 %v1568, %v1917
    %1919 = vdwg.mxu0
    %1920 = vmatpush.bf16.msra.mxu0 0
    %1921 = vmatpush.bf16.msra.mxu0 0
    %1922 = vmatpush.bf16.msra.mxu0 0
    %1923 = vmatpush.bf16.msra.mxu0 0
    %1924 = vmatpush.bf16.msra.mxu0 0
    %1925 = vmatpush.bf16.msra.mxu0 0
    %1926 = vmatpush.bf16.msra.mxu0 %v1713
    %1927 = vmatpush.bf16.msra.mxu0 %v1697
    %1928 = vmatmul.bf16.gmra.mxu0 %v1750
    %v1929 = vpop.f32.mrf.mxu0
    %v1930 = vadd.f32 %v1569, %v1929
    %v1931 = vpop.f32.mrf.mxu0
    %v1932 = vadd.f32 %v1569, %v1931
    %1933 = vdwg.mxu0
    %1934 = vmatpush.bf16.msra.mxu0 0
    %1935 = vmatpush.bf16.msra.mxu0 0
    %1936 = vmatpush.bf16.msra.mxu0 0
    %1937 = vmatpush.bf16.msra.mxu0 0
    %1938 = vmatpush.bf16.msra.mxu0 0
    %1939 = vmatpush.bf16.msra.mxu0 0
    %1940 = vmatpush.bf16.msra.mxu0 %v1714
    %1941 = vmatpush.bf16.msra.mxu0 %v1698
    %1942 = vmatmul.bf16.gmra.mxu0 %v1750
    %v1943 = vpop.f32.mrf.mxu0
    %v1944 = vadd.f32 %v1570, %v1943
    %v1945 = vpop.f32.mrf.mxu0
    %v1946 = vadd.f32 %v1570, %v1945
    %1947 = vdwg.mxu0
    %1948 = vmatpush.bf16.msra.mxu0 0
    %1949 = vmatpush.bf16.msra.mxu0 0
    %1950 = vmatpush.bf16.msra.mxu0 0
    %1951 = vmatpush.bf16.msra.mxu0 0
    %1952 = vmatpush.bf16.msra.mxu0 0
    %1953 = vmatpush.bf16.msra.mxu0 0
    %1954 = vmatpush.bf16.msra.mxu0 %v1715
    %1955 = vmatpush.bf16.msra.mxu0 %v1699
    %1956 = vmatmul.bf16.gmra.mxu0 %v1750
    %v1957 = vpop.f32.mrf.mxu0
    %v1958 = vadd.f32 %v1571, %v1957
    %v1959 = vpop.f32.mrf.mxu0
    %v1960 = vadd.f32 %v1571, %v1959
    %1961 = vdwg.mxu0
    %1962 = vmatpush.bf16.msra.mxu0 0
    %1963 = vmatpush.bf16.msra.mxu0 0
    %1964 = vmatpush.bf16.msra.mxu0 0
    %1965 = vmatpush.bf16.msra.mxu0 0
    %1966 = vmatpush.bf16.msra.mxu0 0
    %1967 = vmatpush.bf16.msra.mxu0 0
    %1968 = vmatpush.bf16.msra.mxu0 %v1716
    %1969 = vmatpush.bf16.msra.mxu0 %v1700
    %1970 = vmatmul.bf16.gmra.mxu0 %v1750
    %v1971 = vpop.f32.mrf.mxu0
    %v1972 = vadd.f32 %v1572, %v1971
    %v1973 = vpop.f32.mrf.mxu0
    %v1974 = vadd.f32 %v1572, %v1973
    %1975 = vdwg.mxu0
    %v1976 = vmax.f32 %v1762, 0.0
    %v1977 = vmax.f32 %v1776, 0.0
    %v1978 = vmax.f32 %v1790, 0.0
    %v1979 = vmax.f32 %v1804, 0.0
    %v1980 = vmax.f32 %v1818, 0.0
    %v1981 = vmax.f32 %v1832, 0.0
    %v1982 = vmax.f32 %v1846, 0.0
    %v1983 = vmax.f32 %v1860, 0.0
    %v1984 = vmax.f32 %v1874, 0.0
    %v1985 = vmax.f32 %v1888, 0.0
    %v1986 = vmax.f32 %v1902, 0.0
    %v1987 = vmax.f32 %v1916, 0.0
    %v1988 = vmax.f32 %v1930, 0.0
    %v1989 = vmax.f32 %v1944, 0.0
    %v1990 = vmax.f32 %v1958, 0.0
    %v1991 = vmax.f32 %v1972, 0.0
    %v1992 = vmax.f32 %v1764, 0.0
    %v1993 = vmax.f32 %v1778, 0.0
    %v1994 = vmax.f32 %v1792, 0.0
    %v1995 = vmax.f32 %v1806, 0.0
    %v1996 = vmax.f32 %v1820, 0.0
    %v1997 = vmax.f32 %v1834, 0.0
    %v1998 = vmax.f32 %v1848, 0.0
    %v1999 = vmax.f32 %v1862, 0.0
    %v2000 = vmax.f32 %v1876, 0.0
    %v2001 = vmax.f32 %v1890, 0.0
    %v2002 = vmax.f32 %v1904, 0.0
    %v2003 = vmax.f32 %v1918, 0.0
    %v2004 = vmax.f32 %v1932, 0.0
    %v2005 = vmax.f32 %v1946, 0.0
    %v2006 = vmax.f32 %v1960, 0.0
    %v2007 = vmax.f32 %v1974, 0.0
    %v2008 = vpack.c.bf16 %v1992, %v1976
    %v2009 = vpack.c.bf16 %v1993, %v1977
    %v2010 = vpack.c.bf16 %v1994, %v1978
    %v2011 = vpack.c.bf16 %v1995, %v1979
    %v2012 = vpack.c.bf16 %v1996, %v1980
    %v2013 = vpack.c.bf16 %v1997, %v1981
    %v2014 = vpack.c.bf16 %v1998, %v1982
    %v2015 = vpack.c.bf16 %v1999, %v1983
    %v2016 = vpack.c.bf16 %v2000, %v1984
    %v2017 = vpack.c.bf16 %v2001, %v1985
    %v2018 = vpack.c.bf16 %v2002, %v1986
    %v2019 = vpack.c.bf16 %v2003, %v1987
    %v2020 = vpack.c.bf16 %v2004, %v1988
    %v2021 = vpack.c.bf16 %v2005, %v1989
    %v2022 = vpack.c.bf16 %v2006, %v1990
    %v2023 = vpack.c.bf16 %v2007, %v1991
    %v2024 = vld [vmem:[#allocation17] sm:$0xff]
    %v2025 = vld [vmem:[#allocation17 + $0x8] sm:$0xff]
    %v2026 = vld [vmem:[#allocation17 + $0x10] sm:$0xff]
    %v2027 = vld [vmem:[#allocation17 + $0x18] sm:$0xff]
    %v2028 = vld [vmem:[#allocation17 + $0x20] sm:$0xff]
    %v2029 = vld [vmem:[#allocation17 + $0x28] sm:$0xff]
    %v2030 = vld [vmem:[#allocation17 + $0x30] sm:$0xff]
    %v2031 = vld [vmem:[#allocation17 + $0x38] sm:$0xff]
    %v2032 = vld [vmem:[#allocation17 + $0x40] sm:$0xff]
    %v2033 = vld [vmem:[#allocation17 + $0x48] sm:$0xff]
    %v2034 = vld [vmem:[#allocation17 + $0x50] sm:$0xff]
    %v2035 = vld [vmem:[#allocation17 + $0x58] sm:$0xff]
    %v2036 = vld [vmem:[#allocation17 + $0x60] sm:$0xff]
    %v2037 = vld [vmem:[#allocation17 + $0x68] sm:$0xff]
    %v2038 = vld [vmem:[#allocation17 + $0x70] sm:$0xff]
    %v2039 = vld [vmem:[#allocation17 + $0x78] sm:$0xff]
    %v2040 = vld [vmem:[#allocation17 + $0x80] sm:$0xff]
    %v2041 = vld [vmem:[#allocation17 + $0x88] sm:$0xff]
    %v2042 = vld [vmem:[#allocation17 + $0x90] sm:$0xff]
    %v2043 = vld [vmem:[#allocation17 + $0x98] sm:$0xff]
    %v2044 = vld [vmem:[#allocation17 + $0xa0] sm:$0xff]
    %v2045 = vld [vmem:[#allocation17 + $0xa8] sm:$0xff]
    %v2046 = vld [vmem:[#allocation17 + $0xb0] sm:$0xff]
    %v2047 = vld [vmem:[#allocation17 + $0xb8] sm:$0xff]
    %v2048 = vld [vmem:[#allocation17 + $0xc0] sm:$0xff]
    %v2049 = vld [vmem:[#allocation17 + $0xc8] sm:$0xff]
    %v2050 = vld [vmem:[#allocation17 + $0xd0] sm:$0xff]
    %v2051 = vld [vmem:[#allocation17 + $0xd8] sm:$0xff]
    %v2052 = vld [vmem:[#allocation17 + $0xe0] sm:$0xff]
    %v2053 = vld [vmem:[#allocation17 + $0xe8] sm:$0xff]
    %v2054 = vld [vmem:[#allocation17 + $0xf0] sm:$0xff]
    %v2055 = vld [vmem:[#allocation17 + $0xf8] sm:$0xff]
    %v2056 = vld [vmem:[#allocation19] sm:$0x1]
    %v2058 = vperm.slane %v2056, 0
    %v2092 = vunpack.c.l.b16 %v2024
    %v2093 = vunpack.c.h.b16 %v2024
    %v2094 = vunpack.c.l.b16 %v2025
    %v2095 = vunpack.c.h.b16 %v2025
    %v2096 = vunpack.c.l.b16 %v2026
    %v2097 = vunpack.c.h.b16 %v2026
    %v2098 = vunpack.c.l.b16 %v2027
    %v2099 = vunpack.c.h.b16 %v2027
    %v2100 = vunpack.c.l.b16 %v2028
    %v2101 = vunpack.c.h.b16 %v2028
    %v2102 = vunpack.c.l.b16 %v2029
    %v2103 = vunpack.c.h.b16 %v2029
    %v2104 = vunpack.c.l.b16 %v2030
    %v2105 = vunpack.c.h.b16 %v2030
    %v2106 = vunpack.c.l.b16 %v2031
    %v2107 = vunpack.c.h.b16 %v2031
    %v2108 = vunpack.c.l.b16 %v2032
    %v2109 = vunpack.c.h.b16 %v2032
    %v2110 = vunpack.c.l.b16 %v2033
    %v2111 = vunpack.c.h.b16 %v2033
    %v2112 = vunpack.c.l.b16 %v2034
    %v2113 = vunpack.c.h.b16 %v2034
    %v2114 = vunpack.c.l.b16 %v2035
    %v2115 = vunpack.c.h.b16 %v2035
    %v2116 = vunpack.c.l.b16 %v2036
    %v2117 = vunpack.c.h.b16 %v2036
    %v2118 = vunpack.c.l.b16 %v2037
    %v2119 = vunpack.c.h.b16 %v2037
    %v2120 = vunpack.c.l.b16 %v2038
    %v2121 = vunpack.c.h.b16 %v2038
    %v2122 = vunpack.c.l.b16 %v2039
    %v2123 = vunpack.c.h.b16 %v2039
    %v2124 = vunpack.c.l.b16 %v2040
    %v2125 = vunpack.c.h.b16 %v2040
    %v2126 = vunpack.c.l.b16 %v2041
    %v2127 = vunpack.c.h.b16 %v2041
    %v2128 = vunpack.c.l.b16 %v2042
    %v2129 = vunpack.c.h.b16 %v2042
    %v2130 = vunpack.c.l.b16 %v2043
    %v2131 = vunpack.c.h.b16 %v2043
    %v2132 = vunpack.c.l.b16 %v2044
    %v2133 = vunpack.c.h.b16 %v2044
    %v2134 = vunpack.c.l.b16 %v2045
    %v2135 = vunpack.c.h.b16 %v2045
    %v2136 = vunpack.c.l.b16 %v2046
    %v2137 = vunpack.c.h.b16 %v2046
    %v2138 = vunpack.c.l.b16 %v2047
    %v2139 = vunpack.c.h.b16 %v2047
    %v2140 = vunpack.c.l.b16 %v2048
    %v2141 = vunpack.c.h.b16 %v2048
    %v2142 = vunpack.c.l.b16 %v2049
    %v2143 = vunpack.c.h.b16 %v2049
    %v2144 = vunpack.c.l.b16 %v2050
    %v2145 = vunpack.c.h.b16 %v2050
    %v2146 = vunpack.c.l.b16 %v2051
    %v2147 = vunpack.c.h.b16 %v2051
    %v2148 = vunpack.c.l.b16 %v2052
    %v2149 = vunpack.c.h.b16 %v2052
    %v2150 = vunpack.c.l.b16 %v2053
    %v2151 = vunpack.c.h.b16 %v2053
    %v2152 = vunpack.c.l.b16 %v2054
    %v2153 = vunpack.c.h.b16 %v2054
    %v2154 = vunpack.c.l.b16 %v2055
    %v2155 = vunpack.c.h.b16 %v2055
    %v2156 = vpack.c.b16 %v2108, %v2092
    %v2157 = vpack.c.b16 %v2109, %v2093
    %v2158 = vpack.c.b16 %v2110, %v2094
    %v2159 = vpack.c.b16 %v2111, %v2095
    %v2160 = vpack.c.b16 %v2112, %v2096
    %v2161 = vpack.c.b16 %v2113, %v2097
    %v2162 = vpack.c.b16 %v2114, %v2098
    %v2163 = vpack.c.b16 %v2115, %v2099
    %v2164 = vpack.c.b16 %v2116, %v2100
    %v2165 = vpack.c.b16 %v2117, %v2101
    %v2166 = vpack.c.b16 %v2118, %v2102
    %v2167 = vpack.c.b16 %v2119, %v2103
    %v2168 = vpack.c.b16 %v2120, %v2104
    %v2169 = vpack.c.b16 %v2121, %v2105
    %v2170 = vpack.c.b16 %v2122, %v2106
    %v2171 = vpack.c.b16 %v2123, %v2107
    %v2172 = vpack.c.b16 %v2140, %v2124
    %v2173 = vpack.c.b16 %v2141, %v2125
    %v2174 = vpack.c.b16 %v2142, %v2126
    %v2175 = vpack.c.b16 %v2143, %v2127
    %v2176 = vpack.c.b16 %v2144, %v2128
    %v2177 = vpack.c.b16 %v2145, %v2129
    %v2178 = vpack.c.b16 %v2146, %v2130
    %v2179 = vpack.c.b16 %v2147, %v2131
    %v2180 = vpack.c.b16 %v2148, %v2132
    %v2181 = vpack.c.b16 %v2149, %v2133
    %v2182 = vpack.c.b16 %v2150, %v2134
    %v2183 = vpack.c.b16 %v2151, %v2135
    %v2184 = vpack.c.b16 %v2152, %v2136
    %v2185 = vpack.c.b16 %v2153, %v2137
    %v2186 = vpack.c.b16 %v2154, %v2138
    %v2187 = vpack.c.b16 %v2155, %v2139
    %2220 = vmatpush.bf16.xpose.msra.mxu0 0
    %2221 = vmatpush.bf16.xpose.msra.mxu0 0
    %2222 = vmatpush.bf16.xpose.msra.mxu0 0
    %2223 = vmatpush.bf16.xpose.msra.mxu0 0
    %2224 = vmatpush.bf16.xpose.msra.mxu0 0
    %2225 = vmatpush.bf16.xpose.msra.mxu0 0
    %2226 = vmatpush.bf16.xpose.msra.mxu0 %v2172
    %2227 = vmatpush.bf16.xpose.msra.mxu0 %v2156
    %2228 = vmatmul.bf16.gmra.mxu0 %v2008
    %v2229 = vpop.f32.mrf.mxu0
    %v2230 = vadd.f32 %v2058, %v2229
    %v2231 = vpop.f32.mrf.mxu0
    %v2232 = vadd.f32 %v2058, %v2231
    %2233 = vdwg.mxu0
    %2234 = vmatpush.bf16.xpose.msra.mxu0 0
    %2235 = vmatpush.bf16.xpose.msra.mxu0 0
    %2236 = vmatpush.bf16.xpose.msra.mxu0 0
    %2237 = vmatpush.bf16.xpose.msra.mxu0 0
    %2238 = vmatpush.bf16.xpose.msra.mxu0 0
    %2239 = vmatpush.bf16.xpose.msra.mxu0 0
    %2240 = vmatpush.bf16.xpose.msra.mxu0 %v2173
    %2241 = vmatpush.bf16.xpose.msra.mxu0 %v2157
    %2242 = vmatmul.bf16.gmra.mxu0 %v2009
    %v2243 = vpop.f32.mrf.mxu0
    %v2244 = vadd.f32 %v2230, %v2243
    %v2245 = vpop.f32.mrf.mxu0
    %v2246 = vadd.f32 %v2232, %v2245
    %2247 = vdwg.mxu0
    %2248 = vmatpush.bf16.xpose.msra.mxu0 0
    %2249 = vmatpush.bf16.xpose.msra.mxu0 0
    %2250 = vmatpush.bf16.xpose.msra.mxu0 0
    %2251 = vmatpush.bf16.xpose.msra.mxu0 0
    %2252 = vmatpush.bf16.xpose.msra.mxu0 0
    %2253 = vmatpush.bf16.xpose.msra.mxu0 0
    %2254 = vmatpush.bf16.xpose.msra.mxu0 %v2174
    %2255 = vmatpush.bf16.xpose.msra.mxu0 %v2158
    %2256 = vmatmul.bf16.gmra.mxu0 %v2010
    %v2257 = vpop.f32.mrf.mxu0
    %v2258 = vadd.f32 %v2244, %v2257
    %v2259 = vpop.f32.mrf.mxu0
    %v2260 = vadd.f32 %v2246, %v2259
    %2261 = vdwg.mxu0
    %2262 = vmatpush.bf16.xpose.msra.mxu0 0
    %2263 = vmatpush.bf16.xpose.msra.mxu0 0
    %2264 = vmatpush.bf16.xpose.msra.mxu0 0
    %2265 = vmatpush.bf16.xpose.msra.mxu0 0
    %2266 = vmatpush.bf16.xpose.msra.mxu0 0
    %2267 = vmatpush.bf16.xpose.msra.mxu0 0
    %2268 = vmatpush.bf16.xpose.msra.mxu0 %v2175
    %2269 = vmatpush.bf16.xpose.msra.mxu0 %v2159
    %2270 = vmatmul.bf16.gmra.mxu0 %v2011
    %v2271 = vpop.f32.mrf.mxu0
    %v2272 = vadd.f32 %v2258, %v2271
    %v2273 = vpop.f32.mrf.mxu0
    %v2274 = vadd.f32 %v2260, %v2273
    %2275 = vdwg.mxu0
    %2276 = vmatpush.bf16.xpose.msra.mxu0 0
    %2277 = vmatpush.bf16.xpose.msra.mxu0 0
    %2278 = vmatpush.bf16.xpose.msra.mxu0 0
    %2279 = vmatpush.bf16.xpose.msra.mxu0 0
    %2280 = vmatpush.bf16.xpose.msra.mxu0 0
    %2281 = vmatpush.bf16.xpose.msra.mxu0 0
    %2282 = vmatpush.bf16.xpose.msra.mxu0 %v2176
    %2283 = vmatpush.bf16.xpose.msra.mxu0 %v2160
    %2284 = vmatmul.bf16.gmra.mxu0 %v2012
    %v2285 = vpop.f32.mrf.mxu0
    %v2286 = vadd.f32 %v2272, %v2285
    %v2287 = vpop.f32.mrf.mxu0
    %v2288 = vadd.f32 %v2274, %v2287
    %2289 = vdwg.mxu0
    %2290 = vmatpush.bf16.xpose.msra.mxu0 0
    %2291 = vmatpush.bf16.xpose.msra.mxu0 0
    %2292 = vmatpush.bf16.xpose.msra.mxu0 0
    %2293 = vmatpush.bf16.xpose.msra.mxu0 0
    %2294 = vmatpush.bf16.xpose.msra.mxu0 0
    %2295 = vmatpush.bf16.xpose.msra.mxu0 0
    %2296 = vmatpush.bf16.xpose.msra.mxu0 %v2177
    %2297 = vmatpush.bf16.xpose.msra.mxu0 %v2161
    %2298 = vmatmul.bf16.gmra.mxu0 %v2013
    %v2299 = vpop.f32.mrf.mxu0
    %v2300 = vadd.f32 %v2286, %v2299
    %v2301 = vpop.f32.mrf.mxu0
    %v2302 = vadd.f32 %v2288, %v2301
    %2303 = vdwg.mxu0
    %2304 = vmatpush.bf16.xpose.msra.mxu0 0
    %2305 = vmatpush.bf16.xpose.msra.mxu0 0
    %2306 = vmatpush.bf16.xpose.msra.mxu0 0
    %2307 = vmatpush.bf16.xpose.msra.mxu0 0
    %2308 = vmatpush.bf16.xpose.msra.mxu0 0
    %2309 = vmatpush.bf16.xpose.msra.mxu0 0
    %2310 = vmatpush.bf16.xpose.msra.mxu0 %v2178
    %2311 = vmatpush.bf16.xpose.msra.mxu0 %v2162
    %2312 = vmatmul.bf16.gmra.mxu0 %v2014
    %v2313 = vpop.f32.mrf.mxu0
    %v2314 = vadd.f32 %v2300, %v2313
    %v2315 = vpop.f32.mrf.mxu0
    %v2316 = vadd.f32 %v2302, %v2315
    %2317 = vdwg.mxu0
    %2318 = vmatpush.bf16.xpose.msra.mxu0 0
    %2319 = vmatpush.bf16.xpose.msra.mxu0 0
    %2320 = vmatpush.bf16.xpose.msra.mxu0 0
    %2321 = vmatpush.bf16.xpose.msra.mxu0 0
    %2322 = vmatpush.bf16.xpose.msra.mxu0 0
    %2323 = vmatpush.bf16.xpose.msra.mxu0 0
    %2324 = vmatpush.bf16.xpose.msra.mxu0 %v2179
    %2325 = vmatpush.bf16.xpose.msra.mxu0 %v2163
    %2326 = vmatmul.bf16.gmra.mxu0 %v2015
    %v2327 = vpop.f32.mrf.mxu0
    %v2328 = vadd.f32 %v2314, %v2327
    %v2329 = vpop.f32.mrf.mxu0
    %v2330 = vadd.f32 %v2316, %v2329
    %2331 = vdwg.mxu0
    %2332 = vmatpush.bf16.xpose.msra.mxu0 0
    %2333 = vmatpush.bf16.xpose.msra.mxu0 0
    %2334 = vmatpush.bf16.xpose.msra.mxu0 0
    %2335 = vmatpush.bf16.xpose.msra.mxu0 0
    %2336 = vmatpush.bf16.xpose.msra.mxu0 0
    %2337 = vmatpush.bf16.xpose.msra.mxu0 0
    %2338 = vmatpush.bf16.xpose.msra.mxu0 %v2180
    %2339 = vmatpush.bf16.xpose.msra.mxu0 %v2164
    %2340 = vmatmul.bf16.gmra.mxu0 %v2016
    %v2341 = vpop.f32.mrf.mxu0
    %v2342 = vadd.f32 %v2328, %v2341
    %v2343 = vpop.f32.mrf.mxu0
    %v2344 = vadd.f32 %v2330, %v2343
    %2345 = vdwg.mxu0
    %2346 = vmatpush.bf16.xpose.msra.mxu0 0
    %2347 = vmatpush.bf16.xpose.msra.mxu0 0
    %2348 = vmatpush.bf16.xpose.msra.mxu0 0
    %2349 = vmatpush.bf16.xpose.msra.mxu0 0
    %2350 = vmatpush.bf16.xpose.msra.mxu0 0
    %2351 = vmatpush.bf16.xpose.msra.mxu0 0
    %2352 = vmatpush.bf16.xpose.msra.mxu0 %v2181
    %2353 = vmatpush.bf16.xpose.msra.mxu0 %v2165
    %2354 = vmatmul.bf16.gmra.mxu0 %v2017
    %v2355 = vpop.f32.mrf.mxu0
    %v2356 = vadd.f32 %v2342, %v2355
    %v2357 = vpop.f32.mrf.mxu0
    %v2358 = vadd.f32 %v2344, %v2357
    %2359 = vdwg.mxu0
    %2360 = vmatpush.bf16.xpose.msra.mxu0 0
    %2361 = vmatpush.bf16.xpose.msra.mxu0 0
    %2362 = vmatpush.bf16.xpose.msra.mxu0 0
    %2363 = vmatpush.bf16.xpose.msra.mxu0 0
    %2364 = vmatpush.bf16.xpose.msra.mxu0 0
    %2365 = vmatpush.bf16.xpose.msra.mxu0 0
    %2366 = vmatpush.bf16.xpose.msra.mxu0 %v2182
    %2367 = vmatpush.bf16.xpose.msra.mxu0 %v2166
    %2368 = vmatmul.bf16.gmra.mxu0 %v2018
    %v2369 = vpop.f32.mrf.mxu0
    %v2370 = vadd.f32 %v2356, %v2369
    %v2371 = vpop.f32.mrf.mxu0
    %v2372 = vadd.f32 %v2358, %v2371
    %2373 = vdwg.mxu0
    %2374 = vmatpush.bf16.xpose.msra.mxu0 0
    %2375 = vmatpush.bf16.xpose.msra.mxu0 0
    %2376 = vmatpush.bf16.xpose.msra.mxu0 0
    %2377 = vmatpush.bf16.xpose.msra.mxu0 0
    %2378 = vmatpush.bf16.xpose.msra.mxu0 0
    %2379 = vmatpush.bf16.xpose.msra.mxu0 0
    %2380 = vmatpush.bf16.xpose.msra.mxu0 %v2183
    %2381 = vmatpush.bf16.xpose.msra.mxu0 %v2167
    %2382 = vmatmul.bf16.gmra.mxu0 %v2019
    %v2383 = vpop.f32.mrf.mxu0
    %v2384 = vadd.f32 %v2370, %v2383
    %v2385 = vpop.f32.mrf.mxu0
    %v2386 = vadd.f32 %v2372, %v2385
    %2387 = vdwg.mxu0
    %2388 = vmatpush.bf16.xpose.msra.mxu0 0
    %2389 = vmatpush.bf16.xpose.msra.mxu0 0
    %2390 = vmatpush.bf16.xpose.msra.mxu0 0
    %2391 = vmatpush.bf16.xpose.msra.mxu0 0
    %2392 = vmatpush.bf16.xpose.msra.mxu0 0
    %2393 = vmatpush.bf16.xpose.msra.mxu0 0
    %2394 = vmatpush.bf16.xpose.msra.mxu0 %v2184
    %2395 = vmatpush.bf16.xpose.msra.mxu0 %v2168
    %2396 = vmatmul.bf16.gmra.mxu0 %v2020
    %v2397 = vpop.f32.mrf.mxu0
    %v2398 = vadd.f32 %v2384, %v2397
    %v2399 = vpop.f32.mrf.mxu0
    %v2400 = vadd.f32 %v2386, %v2399
    %2401 = vdwg.mxu0
    %2402 = vmatpush.bf16.xpose.msra.mxu0 0
    %2403 = vmatpush.bf16.xpose.msra.mxu0 0
    %2404 = vmatpush.bf16.xpose.msra.mxu0 0
    %2405 = vmatpush.bf16.xpose.msra.mxu0 0
    %2406 = vmatpush.bf16.xpose.msra.mxu0 0
    %2407 = vmatpush.bf16.xpose.msra.mxu0 0
    %2408 = vmatpush.bf16.xpose.msra.mxu0 %v2185
    %2409 = vmatpush.bf16.xpose.msra.mxu0 %v2169
    %2410 = vmatmul.bf16.gmra.mxu0 %v2021
    %v2411 = vpop.f32.mrf.mxu0
    %v2412 = vadd.f32 %v2398, %v2411
    %v2413 = vpop.f32.mrf.mxu0
    %v2414 = vadd.f32 %v2400, %v2413
    %2415 = vdwg.mxu0
    %2416 = vmatpush.bf16.xpose.msra.mxu0 0
    %2417 = vmatpush.bf16.xpose.msra.mxu0 0
    %2418 = vmatpush.bf16.xpose.msra.mxu0 0
    %2419 = vmatpush.bf16.xpose.msra.mxu0 0
    %2420 = vmatpush.bf16.xpose.msra.mxu0 0
    %2421 = vmatpush.bf16.xpose.msra.mxu0 0
    %2422 = vmatpush.bf16.xpose.msra.mxu0 %v2186
    %2423 = vmatpush.bf16.xpose.msra.mxu0 %v2170
    %2424 = vmatmul.bf16.gmra.mxu0 %v2022
    %v2425 = vpop.f32.mrf.mxu0
    %v2426 = vadd.f32 %v2412, %v2425
    %v2427 = vpop.f32.mrf.mxu0
    %v2428 = vadd.f32 %v2414, %v2427
    %2429 = vdwg.mxu0
    %2430 = vmatpush.bf16.xpose.msra.mxu0 0
    %2431 = vmatpush.bf16.xpose.msra.mxu0 0
    %2432 = vmatpush.bf16.xpose.msra.mxu0 0
    %2433 = vmatpush.bf16.xpose.msra.mxu0 0
    %2434 = vmatpush.bf16.xpose.msra.mxu0 0
    %2435 = vmatpush.bf16.xpose.msra.mxu0 0
    %2436 = vmatpush.bf16.xpose.msra.mxu0 %v2187
    %2437 = vmatpush.bf16.xpose.msra.mxu0 %v2171
    %2438 = vmatmul.bf16.gmra.mxu0 %v2023
    %v2439 = vpop.f32.mrf.mxu0
    %v2440 = vadd.f32 %v2426, %v2439
    %v2441 = vpop.f32.mrf.mxu0
    %v2442 = vadd.f32 %v2428, %v2441
    %2443 = vdwg.mxu0
    %v2444 = vadd.f32 %v1518, %v2440
    %v2445 = vadd.f32 %v1519, %v2442
    %v2446 = vld [vmem:[#allocation20] sm:$0x1]
    %v2447 = vld [vmem:[#allocation22] sm:$0x1]
    %v2448 = vsel %vm344, %v2444, 0.0
    %2449 = vadd.xlane.f32.xlu0 %v2448
    %v2450 = vpop.xlane.xlu0 %2449
    %v2451 = vsel %vm344, %v2445, 0.0
    %2452 = vadd.xlane.f32.xlu0 %v2451
    %v2453 = vpop.xlane.xlu0 %2452
    %v2454 = vmul.f32 %v2450, %v1471
    %v2455 = vmul.f32 %v2453, %v1471
    %v2456 = vsub.f32 %v2444, %v2454
    %v2457 = vsub.f32 %v2445, %v2455
    %v2458 = vmul.f32 %v2456, %v2456
    %v2459 = vmul.f32 %v2457, %v2457
    %v2460 = vsel %vm344, %v2458, 0.0
    %2461 = vadd.xlane.f32.xlu0 %v2460
    %v2462 = vpop.xlane.xlu0 %2461
    %v2463 = vsel %vm344, %v2459, 0.0
    %2464 = vadd.xlane.f32.xlu0 %v2463
    %v2465 = vpop.xlane.xlu0 %2464
    %v2466 = vmul.f32 %v2462, %v1471
    %v2467 = vmul.f32 %v2465, %v1471
    %v2468 = vadd.f32 %v2466, 1e-05
    %v2469 = vadd.f32 %v2467, 1e-05
    %v2470 = vrsqrt.pop %v2468
    %v2471 = vmul.f32 %v2470, %v2468
    %v2472 = vmul.f32 %v2471, %v2470
    %v2473 = vmul.f32 0.5, %v2472
    %v2474 = vsub.f32 1.5, %v2473
    %v2475 = vmul.f32 %v2470, %v2474
    %vm2476 = vweird.f32 %v2468
    %vm2477 = vweird.f32 %v2470
    %vm2478 = vmor %vm2476, %vm2477
    %v2479 = vsel %vm2478, %v2470, %v2475
    %v2480 = vrsqrt.pop %v2469
    %v2481 = vmul.f32 %v2480, %v2469
    %v2482 = vmul.f32 %v2481, %v2480
    %v2483 = vmul.f32 0.5, %v2482
    %v2484 = vsub.f32 1.5, %v2483
    %v2485 = vmul.f32 %v2480, %v2484
    %vm2486 = vweird.f32 %v2469
    %vm2487 = vweird.f32 %v2480
    %vm2488 = vmor %vm2486, %vm2487
    %v2489 = vsel %vm2488, %v2480, %v2485
    %v2490 = vmul.f32 %v2456, %v2479
    %v2491 = vmul.f32 %v2457, %v2489
    %v2493 = vperm.slane %v2446, 0
    %v2495 = vmul.f32 %v2490, %v2493
    %v2496 = vmul.f32 %v2491, %v2493
    %v2498 = vperm.slane %v2447, 0
    %v2500 = vadd.f32 %v2495, %v2498
    %v2501 = vadd.f32 %v2496, %v2498
    %2502 = vst.msk [vmem:[#allocation2] sm:$0xff] %vm344, 0.0
    %2503 = vst.msk [vmem:[#allocation2 + $0x8] sm:$0xff] %vm344, 0.0
    %s2504 = scalar_lea.vmem %s4, 32
    %v2505 = vld [vmem:[%s2504] sm:$0xff]
    %s2506 = scalar_lea.vmem %s5, 4
    %v2507 = vld [vmem:[%s2506] sm:$0x1]
    %v2509 = vperm.slane %v2507, 0
    %v2512 = vsel %vm344, %v2500, 0
    %v2515 = vsel %vm344, %v2501, 0
    %v2518 = vsel %vm344, %v2505, 0
    %2520 = vmatpush.xpose.msra.mxu0 0.0
    %2521 = vmatpush.xpose.msra.mxu0 0.0
    %2522 = vmatpush.xpose.msra.mxu0 0.0
    %2523 = vmatpush.xpose.msra.mxu0 0.0
    %2524 = vmatpush.xpose.msra.mxu0 0.0
    %2525 = vmatpush.xpose.msra.mxu0 0.0
    %2526 = vmatpush.xpose.msra.mxu0 0.0
    %2527 = vmatpush.xpose.msra.mxu0 0.0
    %2528 = vmatpush.xpose.msra.mxu0 0.0
    %2529 = vmatpush.xpose.msra.mxu0 0.0
    %2530 = vmatpush.xpose.msra.mxu0 0.0
    %2531 = vmatpush.xpose.msra.mxu0 0.0
    %2532 = vmatpush.xpose.msra.mxu0 0.0
    %2533 = vmatpush.xpose.msra.mxu0 0.0
    %2534 = vmatpush.xpose.msra.mxu0 0.0
    %2535 = vmatpush.xpose.msra.mxu0 %v2518
    %2536 = vmatmul.f32.gmra.mxu0 %v2512
    %v2537 = vpop.f32.mrf.mxu0
    %v2538 = vadd.f32 %v2509, %v2537
    %2539 = vmatmul.f32.gmra.mxu0 %v2515
    %v2540 = vpop.f32.mrf.mxu0
    %v2541 = vadd.f32 %v2509, %v2540
    %2542 = vdwg.mxu0
    %s2543 = scalar_lea.vmem [#allocation5], 32
    %v2544 = vld [vmem:[%s2543] sm:$0xff]
    %s2545 = scalar_lea.vmem %s7, 4
    %v2546 = vld [vmem:[%s2545] sm:$0x1]
    %v2548 = vperm.slane %v2546, 0
    %v2551 = vsel %vm344, %v2544, 0
    %2553 = vmatpush.xpose.msra.mxu0 0.0
    %2554 = vmatpush.xpose.msra.mxu0 0.0
    %2555 = vmatpush.xpose.msra.mxu0 0.0
    %2556 = vmatpush.xpose.msra.mxu0 0.0
    %2557 = vmatpush.xpose.msra.mxu0 0.0
    %2558 = vmatpush.xpose.msra.mxu0 0.0
    %2559 = vmatpush.xpose.msra.mxu0 0.0
    %2560 = vmatpush.xpose.msra.mxu0 0.0
    %2561 = vmatpush.xpose.msra.mxu0 0.0
    %2562 = vmatpush.xpose.msra.mxu0 0.0
    %2563 = vmatpush.xpose.msra.mxu0 0.0
    %2564 = vmatpush.xpose.msra.mxu0 0.0
    %2565 = vmatpush.xpose.msra.mxu0 0.0
    %2566 = vmatpush.xpose.msra.mxu0 0.0
    %2567 = vmatpush.xpose.msra.mxu0 0.0
    %2568 = vmatpush.xpose.msra.mxu0 %v2551
    %2569 = vmatmul.f32.gmra.mxu0 %v2512
    %v2570 = vpop.f32.mrf.mxu0
    %v2571 = vadd.f32 %v2548, %v2570
    %2572 = vmatmul.f32.gmra.mxu0 %v2515
    %v2573 = vpop.f32.mrf.mxu0
    %v2574 = vadd.f32 %v2548, %v2573
    %2575 = vdwg.mxu0
    %s2576 = scalar_lea.vmem [#allocation7], 32
    %v2577 = vld [vmem:[%s2576] sm:$0xff]
    %s2578 = scalar_lea.vmem %s9, 4
    %v2579 = vld [vmem:[%s2578] sm:$0x1]
    %v2581 = vperm.slane %v2579, 0
    %v2584 = vsel %vm344, %v2577, 0
    %2586 = vmatpush.xpose.msra.mxu0 0.0
    %2587 = vmatpush.xpose.msra.mxu0 0.0
    %2588 = vmatpush.xpose.msra.mxu0 0.0
    %2589 = vmatpush.xpose.msra.mxu0 0.0
    %2590 = vmatpush.xpose.msra.mxu0 0.0
    %2591 = vmatpush.xpose.msra.mxu0 0.0
    %2592 = vmatpush.xpose.msra.mxu0 0.0
    %2593 = vmatpush.xpose.msra.mxu0 0.0
    %2594 = vmatpush.xpose.msra.mxu0 0.0
    %2595 = vmatpush.xpose.msra.mxu0 0.0
    %2596 = vmatpush.xpose.msra.mxu0 0.0
    %2597 = vmatpush.xpose.msra.mxu0 0.0
    %2598 = vmatpush.xpose.msra.mxu0 0.0
    %2599 = vmatpush.xpose.msra.mxu0 0.0
    %2600 = vmatpush.xpose.msra.mxu0 0.0
    %2601 = vmatpush.xpose.msra.mxu0 %v2584
    %2602 = vmatmul.f32.gmra.mxu0 %v2512
    %v2603 = vpop.f32.mrf.mxu0
    %v2604 = vadd.f32 %v2581, %v2603
    %2605 = vmatmul.f32.gmra.mxu0 %v2515
    %v2606 = vpop.f32.mrf.mxu0
    %v2607 = vadd.f32 %v2581, %v2606
    %2608 = vdwg.mxu0
    %s2609 = scalar_lea.vmem [#allocation8], 32
    %v2610 = vld [vmem:[%s2609] sm:$0xff]
    %v2612 = vsel %vm447, %v2538, 0
    %v2615 = vsel %vm447, %v2571, 0
    %2617 = vmatpush.xpose.msra.mxu0 0.0
    %2618 = vmatpush.xpose.msra.mxu0 0.0
    %2619 = vmatpush.xpose.msra.mxu0 0.0
    %2620 = vmatpush.xpose.msra.mxu0 0.0
    %2621 = vmatpush.xpose.msra.mxu0 0.0
    %2622 = vmatpush.xpose.msra.mxu0 0.0
    %2623 = vmatpush.xpose.msra.mxu0 0.0
    %2624 = vmatpush.xpose.msra.mxu0 0.0
    %2625 = vmatpush.xpose.msra.mxu0 0.0
    %2626 = vmatpush.xpose.msra.mxu0 0.0
    %2627 = vmatpush.xpose.msra.mxu0 0.0
    %2628 = vmatpush.xpose.msra.mxu0 0.0
    %2629 = vmatpush.xpose.msra.mxu0 0.0
    %2630 = vmatpush.xpose.msra.mxu0 0.0
    %2631 = vmatpush.xpose.msra.mxu0 0.0
    %2632 = vmatpush.xpose.msra.mxu0 %v2615
    %2633 = vmatmul.f32.gmra.mxu0 %v2612
    %v2634 = vpop.f32.mrf.mxu0
    %v2635 = vadd.f32 0.0, %v2634
    %2636 = vdwg.mxu0
    %v2637 = vmul.f32 %v2635, 0.35355338
    %v2638 = vsel %vm447, %v2637, -inf
    %2639 = vmax.xlane.f32.xlu0 %v2638
    %v2640 = vpop.xlane.xlu0 %2639
    %v2641 = vsub.f32 %v2637, %v2640
    %v2642 = vmul.f32 %v2641, 1.442695
    %v2643 = vpow.pop %v2642
    %v2644 = vsel %vm447, %v2643, 0.0
    %2645 = vadd.xlane.f32.xlu0 %v2644
    %v2646 = vpop.xlane.xlu0 %2645
    %v2647 = vrcp.pop %v2646
    %v2648 = vmul.f32 %v2643, %v2647
    %v2650 = vsel %vm447, %v2648, 0
    %2652 = vmatpush.msra.mxu0 0.0
    %2653 = vmatpush.msra.mxu0 0.0
    %2654 = vmatpush.msra.mxu0 0.0
    %2655 = vmatpush.msra.mxu0 0.0
    %2656 = vmatpush.msra.mxu0 0.0
    %2657 = vmatpush.msra.mxu0 0.0
    %2658 = vmatpush.msra.mxu0 0.0
    %2659 = vmatpush.msra.mxu0 0.0
    %2660 = vmatpush.msra.mxu0 0.0
    %2661 = vmatpush.msra.mxu0 0.0
    %2662 = vmatpush.msra.mxu0 0.0
    %2663 = vmatpush.msra.mxu0 0.0
    %2664 = vmatpush.msra.mxu0 0.0
    %2665 = vmatpush.msra.mxu0 0.0
    %2666 = vmatpush.msra.mxu0 0.0
    %2667 = vmatpush.msra.mxu0 %v2604
    %2668 = vmatmul.f32.gmra.mxu0 %v2650
    %v2669 = vpop.f32.mrf.mxu0
    %v2670 = vadd.f32 0.0, %v2669
    %2671 = vdwg.mxu0
    %v2672 = vld [vmem:[#allocation2] sm:$0xff]
    %v2674 = vsel %vm447, %v2670, 0
    %2676 = vmatpush.msra.mxu0 0.0
    %2677 = vmatpush.msra.mxu0 0.0
    %2678 = vmatpush.msra.mxu0 0.0
    %2679 = vmatpush.msra.mxu0 0.0
    %2680 = vmatpush.msra.mxu0 0.0
    %2681 = vmatpush.msra.mxu0 0.0
    %2682 = vmatpush.msra.mxu0 0.0
    %2683 = vmatpush.msra.mxu0 0.0
    %2684 = vmatpush.msra.mxu0 0.0
    %2685 = vmatpush.msra.mxu0 0.0
    %2686 = vmatpush.msra.mxu0 0.0
    %2687 = vmatpush.msra.mxu0 0.0
    %2688 = vmatpush.msra.mxu0 0.0
    %2689 = vmatpush.msra.mxu0 0.0
    %2690 = vmatpush.msra.mxu0 0.0
    %2691 = vmatpush.msra.mxu0 %v2610
    %2692 = vmatmul.f32.gmra.mxu0 %v2674
    %v2693 = vpop.f32.mrf.mxu0
    %v2694 = vadd.f32 0.0, %v2693
    %2695 = vdwg.mxu0
    %v2696 = vadd.f32 %v2672, %v2694
    %2697 = vst.msk [vmem:[#allocation2] sm:$0xff] %vm344, %v2696
    %v2699 = vsel %vm447, %v2541, 0
    %v2702 = vsel %vm447, %v2574, 0
    %2704 = vmatpush.xpose.msra.mxu0 0.0
    %2705 = vmatpush.xpose.msra.mxu0 0.0
    %2706 = vmatpush.xpose.msra.mxu0 0.0
    %2707 = vmatpush.xpose.msra.mxu0 0.0
    %2708 = vmatpush.xpose.msra.mxu0 0.0
    %2709 = vmatpush.xpose.msra.mxu0 0.0
    %2710 = vmatpush.xpose.msra.mxu0 0.0
    %2711 = vmatpush.xpose.msra.mxu0 0.0
    %2712 = vmatpush.xpose.msra.mxu0 0.0
    %2713 = vmatpush.xpose.msra.mxu0 0.0
    %2714 = vmatpush.xpose.msra.mxu0 0.0
    %2715 = vmatpush.xpose.msra.mxu0 0.0
    %2716 = vmatpush.xpose.msra.mxu0 0.0
    %2717 = vmatpush.xpose.msra.mxu0 0.0
    %2718 = vmatpush.xpose.msra.mxu0 0.0
    %2719 = vmatpush.xpose.msra.mxu0 %v2702
    %2720 = vmatmul.f32.gmra.mxu0 %v2699
    %v2721 = vpop.f32.mrf.mxu0
    %v2722 = vadd.f32 0.0, %v2721
    %2723 = vdwg.mxu0
    %v2724 = vmul.f32 %v2722, 0.35355338
    %v2725 = vsel %vm447, %v2724, -inf
    %2726 = vmax.xlane.f32.xlu0 %v2725
    %v2727 = vpop.xlane.xlu0 %2726
    %v2728 = vsub.f32 %v2724, %v2727
    %v2729 = vmul.f32 %v2728, 1.442695
    %v2730 = vpow.pop %v2729
    %v2731 = vsel %vm447, %v2730, 0.0
    %2732 = vadd.xlane.f32.xlu0 %v2731
    %v2733 = vpop.xlane.xlu0 %2732
    %v2734 = vrcp.pop %v2733
    %v2735 = vmul.f32 %v2730, %v2734
    %v2737 = vsel %vm447, %v2735, 0
    %2739 = vmatpush.msra.mxu0 0.0
    %2740 = vmatpush.msra.mxu0 0.0
    %2741 = vmatpush.msra.mxu0 0.0
    %2742 = vmatpush.msra.mxu0 0.0
    %2743 = vmatpush.msra.mxu0 0.0
    %2744 = vmatpush.msra.mxu0 0.0
    %2745 = vmatpush.msra.mxu0 0.0
    %2746 = vmatpush.msra.mxu0 0.0
    %2747 = vmatpush.msra.mxu0 0.0
    %2748 = vmatpush.msra.mxu0 0.0
    %2749 = vmatpush.msra.mxu0 0.0
    %2750 = vmatpush.msra.mxu0 0.0
    %2751 = vmatpush.msra.mxu0 0.0
    %2752 = vmatpush.msra.mxu0 0.0
    %2753 = vmatpush.msra.mxu0 0.0
    %2754 = vmatpush.msra.mxu0 %v2607
    %2755 = vmatmul.f32.gmra.mxu0 %v2737
    %v2756 = vpop.f32.mrf.mxu0
    %v2757 = vadd.f32 0.0, %v2756
    %2758 = vdwg.mxu0
    %v2759 = vld [vmem:[#allocation2 + $0x8] sm:$0xff]
    %v2761 = vsel %vm447, %v2757, 0
    %2763 = vmatpush.msra.mxu0 0.0
    %2764 = vmatpush.msra.mxu0 0.0
    %2765 = vmatpush.msra.mxu0 0.0
    %2766 = vmatpush.msra.mxu0 0.0
    %2767 = vmatpush.msra.mxu0 0.0
    %2768 = vmatpush.msra.mxu0 0.0
    %2769 = vmatpush.msra.mxu0 0.0
    %2770 = vmatpush.msra.mxu0 0.0
    %2771 = vmatpush.msra.mxu0 0.0
    %2772 = vmatpush.msra.mxu0 0.0
    %2773 = vmatpush.msra.mxu0 0.0
    %2774 = vmatpush.msra.mxu0 0.0
    %2775 = vmatpush.msra.mxu0 0.0
    %2776 = vmatpush.msra.mxu0 0.0
    %2777 = vmatpush.msra.mxu0 0.0
    %2778 = vmatpush.msra.mxu0 %v2610
    %2779 = vmatmul.f32.gmra.mxu0 %v2761
    %v2780 = vpop.f32.mrf.mxu0
    %v2781 = vadd.f32 0.0, %v2780
    %2782 = vdwg.mxu0
    %v2783 = vadd.f32 %v2759, %v2781
    %2784 = vst.msk [vmem:[#allocation2 + $0x8] sm:$0xff] %vm344, %v2783
    %s2785 = scalar_lea.vmem %s4, 40
    %v2786 = vld [vmem:[%s2785] sm:$0xff]
    %s2787 = scalar_lea.vmem %s5, 5
    %v2788 = vld [vmem:[%s2787] sm:$0x1]
    %v2790 = vperm.slane %v2788, 0
    %v2793 = vsel %vm344, %v2786, 0
    %2795 = vmatpush.xpose.msra.mxu0 0.0
    %2796 = vmatpush.xpose.msra.mxu0 0.0
    %2797 = vmatpush.xpose.msra.mxu0 0.0
    %2798 = vmatpush.xpose.msra.mxu0 0.0
    %2799 = vmatpush.xpose.msra.mxu0 0.0
    %2800 = vmatpush.xpose.msra.mxu0 0.0
    %2801 = vmatpush.xpose.msra.mxu0 0.0
    %2802 = vmatpush.xpose.msra.mxu0 0.0
    %2803 = vmatpush.xpose.msra.mxu0 0.0
    %2804 = vmatpush.xpose.msra.mxu0 0.0
    %2805 = vmatpush.xpose.msra.mxu0 0.0
    %2806 = vmatpush.xpose.msra.mxu0 0.0
    %2807 = vmatpush.xpose.msra.mxu0 0.0
    %2808 = vmatpush.xpose.msra.mxu0 0.0
    %2809 = vmatpush.xpose.msra.mxu0 0.0
    %2810 = vmatpush.xpose.msra.mxu0 %v2793
    %2811 = vmatmul.f32.gmra.mxu0 %v2512
    %v2812 = vpop.f32.mrf.mxu0
    %v2813 = vadd.f32 %v2790, %v2812
    %2814 = vmatmul.f32.gmra.mxu0 %v2515
    %v2815 = vpop.f32.mrf.mxu0
    %v2816 = vadd.f32 %v2790, %v2815
    %2817 = vdwg.mxu0
    %s2818 = scalar_lea.vmem [#allocation5], 40
    %v2819 = vld [vmem:[%s2818] sm:$0xff]
    %s2820 = scalar_lea.vmem %s7, 5
    %v2821 = vld [vmem:[%s2820] sm:$0x1]
    %v2823 = vperm.slane %v2821, 0
    %v2826 = vsel %vm344, %v2819, 0
    %2828 = vmatpush.xpose.msra.mxu0 0.0
    %2829 = vmatpush.xpose.msra.mxu0 0.0
    %2830 = vmatpush.xpose.msra.mxu0 0.0
    %2831 = vmatpush.xpose.msra.mxu0 0.0
    %2832 = vmatpush.xpose.msra.mxu0 0.0
    %2833 = vmatpush.xpose.msra.mxu0 0.0
    %2834 = vmatpush.xpose.msra.mxu0 0.0
    %2835 = vmatpush.xpose.msra.mxu0 0.0
    %2836 = vmatpush.xpose.msra.mxu0 0.0
    %2837 = vmatpush.xpose.msra.mxu0 0.0
    %2838 = vmatpush.xpose.msra.mxu0 0.0
    %2839 = vmatpush.xpose.msra.mxu0 0.0
    %2840 = vmatpush.xpose.msra.mxu0 0.0
    %2841 = vmatpush.xpose.msra.mxu0 0.0
    %2842 = vmatpush.xpose.msra.mxu0 0.0
    %2843 = vmatpush.xpose.msra.mxu0 %v2826
    %2844 = vmatmul.f32.gmra.mxu0 %v2512
    %v2845 = vpop.f32.mrf.mxu0
    %v2846 = vadd.f32 %v2823, %v2845
    %2847 = vmatmul.f32.gmra.mxu0 %v2515
    %v2848 = vpop.f32.mrf.mxu0
    %v2849 = vadd.f32 %v2823, %v2848
    %2850 = vdwg.mxu0
    %s2851 = scalar_lea.vmem [#allocation7], 40
    %v2852 = vld [vmem:[%s2851] sm:$0xff]
    %s2853 = scalar_lea.vmem %s9, 5
    %v2854 = vld [vmem:[%s2853] sm:$0x1]
    %v2856 = vperm.slane %v2854, 0
    %v2859 = vsel %vm344, %v2852, 0
    %2861 = vmatpush.xpose.msra.mxu0 0.0
    %2862 = vmatpush.xpose.msra.mxu0 0.0
    %2863 = vmatpush.xpose.msra.mxu0 0.0
    %2864 = vmatpush.xpose.msra.mxu0 0.0
    %2865 = vmatpush.xpose.msra.mxu0 0.0
    %2866 = vmatpush.xpose.msra.mxu0 0.0
    %2867 = vmatpush.xpose.msra.mxu0 0.0
    %2868 = vmatpush.xpose.msra.mxu0 0.0
    %2869 = vmatpush.xpose.msra.mxu0 0.0
    %2870 = vmatpush.xpose.msra.mxu0 0.0
    %2871 = vmatpush.xpose.msra.mxu0 0.0
    %2872 = vmatpush.xpose.msra.mxu0 0.0
    %2873 = vmatpush.xpose.msra.mxu0 0.0
    %2874 = vmatpush.xpose.msra.mxu0 0.0
    %2875 = vmatpush.xpose.msra.mxu0 0.0
    %2876 = vmatpush.xpose.msra.mxu0 %v2859
    %2877 = vmatmul.f32.gmra.mxu0 %v2512
    %v2878 = vpop.f32.mrf.mxu0
    %v2879 = vadd.f32 %v2856, %v2878
    %2880 = vmatmul.f32.gmra.mxu0 %v2515
    %v2881 = vpop.f32.mrf.mxu0
    %v2882 = vadd.f32 %v2856, %v2881
    %2883 = vdwg.mxu0
    %s2884 = scalar_lea.vmem [#allocation8], 40
    %v2885 = vld [vmem:[%s2884] sm:$0xff]
    %v2887 = vsel %vm447, %v2813, 0
    %v2890 = vsel %vm447, %v2846, 0
    %2892 = vmatpush.xpose.msra.mxu0 0.0
    %2893 = vmatpush.xpose.msra.mxu0 0.0
    %2894 = vmatpush.xpose.msra.mxu0 0.0
    %2895 = vmatpush.xpose.msra.mxu0 0.0
    %2896 = vmatpush.xpose.msra.mxu0 0.0
    %2897 = vmatpush.xpose.msra.mxu0 0.0
    %2898 = vmatpush.xpose.msra.mxu0 0.0
    %2899 = vmatpush.xpose.msra.mxu0 0.0
    %2900 = vmatpush.xpose.msra.mxu0 0.0
    %2901 = vmatpush.xpose.msra.mxu0 0.0
    %2902 = vmatpush.xpose.msra.mxu0 0.0
    %2903 = vmatpush.xpose.msra.mxu0 0.0
    %2904 = vmatpush.xpose.msra.mxu0 0.0
    %2905 = vmatpush.xpose.msra.mxu0 0.0
    %2906 = vmatpush.xpose.msra.mxu0 0.0
    %2907 = vmatpush.xpose.msra.mxu0 %v2890
    %2908 = vmatmul.f32.gmra.mxu0 %v2887
    %v2909 = vpop.f32.mrf.mxu0
    %v2910 = vadd.f32 0.0, %v2909
    %2911 = vdwg.mxu0
    %v2912 = vmul.f32 %v2910, 0.35355338
    %v2913 = vsel %vm447, %v2912, -inf
    %2914 = vmax.xlane.f32.xlu0 %v2913
    %v2915 = vpop.xlane.xlu0 %2914
    %v2916 = vsub.f32 %v2912, %v2915
    %v2917 = vmul.f32 %v2916, 1.442695
    %v2918 = vpow.pop %v2917
    %v2919 = vsel %vm447, %v2918, 0.0
    %2920 = vadd.xlane.f32.xlu0 %v2919
    %v2921 = vpop.xlane.xlu0 %2920
    %v2922 = vrcp.pop %v2921
    %v2923 = vmul.f32 %v2918, %v2922
    %v2925 = vsel %vm447, %v2923, 0
    %2927 = vmatpush.msra.mxu0 0.0
    %2928 = vmatpush.msra.mxu0 0.0
    %2929 = vmatpush.msra.mxu0 0.0
    %2930 = vmatpush.msra.mxu0 0.0
    %2931 = vmatpush.msra.mxu0 0.0
    %2932 = vmatpush.msra.mxu0 0.0
    %2933 = vmatpush.msra.mxu0 0.0
    %2934 = vmatpush.msra.mxu0 0.0
    %2935 = vmatpush.msra.mxu0 0.0
    %2936 = vmatpush.msra.mxu0 0.0
    %2937 = vmatpush.msra.mxu0 0.0
    %2938 = vmatpush.msra.mxu0 0.0
    %2939 = vmatpush.msra.mxu0 0.0
    %2940 = vmatpush.msra.mxu0 0.0
    %2941 = vmatpush.msra.mxu0 0.0
    %2942 = vmatpush.msra.mxu0 %v2879
    %2943 = vmatmul.f32.gmra.mxu0 %v2925
    %v2944 = vpop.f32.mrf.mxu0
    %v2945 = vadd.f32 0.0, %v2944
    %2946 = vdwg.mxu0
    %v2947 = vld [vmem:[#allocation2] sm:$0xff]
    %v2949 = vsel %vm447, %v2945, 0
    %2951 = vmatpush.msra.mxu0 0.0
    %2952 = vmatpush.msra.mxu0 0.0
    %2953 = vmatpush.msra.mxu0 0.0
    %2954 = vmatpush.msra.mxu0 0.0
    %2955 = vmatpush.msra.mxu0 0.0
    %2956 = vmatpush.msra.mxu0 0.0
    %2957 = vmatpush.msra.mxu0 0.0
    %2958 = vmatpush.msra.mxu0 0.0
    %2959 = vmatpush.msra.mxu0 0.0
    %2960 = vmatpush.msra.mxu0 0.0
    %2961 = vmatpush.msra.mxu0 0.0
    %2962 = vmatpush.msra.mxu0 0.0
    %2963 = vmatpush.msra.mxu0 0.0
    %2964 = vmatpush.msra.mxu0 0.0
    %2965 = vmatpush.msra.mxu0 0.0
    %2966 = vmatpush.msra.mxu0 %v2885
    %2967 = vmatmul.f32.gmra.mxu0 %v2949
    %v2968 = vpop.f32.mrf.mxu0
    %v2969 = vadd.f32 0.0, %v2968
    %2970 = vdwg.mxu0
    %v2971 = vadd.f32 %v2947, %v2969
    %2972 = vst.msk [vmem:[#allocation2] sm:$0xff] %vm344, %v2971
    %v2974 = vsel %vm447, %v2816, 0
    %v2977 = vsel %vm447, %v2849, 0
    %2979 = vmatpush.xpose.msra.mxu0 0.0
    %2980 = vmatpush.xpose.msra.mxu0 0.0
    %2981 = vmatpush.xpose.msra.mxu0 0.0
    %2982 = vmatpush.xpose.msra.mxu0 0.0
    %2983 = vmatpush.xpose.msra.mxu0 0.0
    %2984 = vmatpush.xpose.msra.mxu0 0.0
    %2985 = vmatpush.xpose.msra.mxu0 0.0
    %2986 = vmatpush.xpose.msra.mxu0 0.0
    %2987 = vmatpush.xpose.msra.mxu0 0.0
    %2988 = vmatpush.xpose.msra.mxu0 0.0
    %2989 = vmatpush.xpose.msra.mxu0 0.0
    %2990 = vmatpush.xpose.msra.mxu0 0.0
    %2991 = vmatpush.xpose.msra.mxu0 0.0
    %2992 = vmatpush.xpose.msra.mxu0 0.0
    %2993 = vmatpush.xpose.msra.mxu0 0.0
    %2994 = vmatpush.xpose.msra.mxu0 %v2977
    %2995 = vmatmul.f32.gmra.mxu0 %v2974
    %v2996 = vpop.f32.mrf.mxu0
    %v2997 = vadd.f32 0.0, %v2996
    %2998 = vdwg.mxu0
    %v2999 = vmul.f32 %v2997, 0.35355338
    %v3000 = vsel %vm447, %v2999, -inf
    %3001 = vmax.xlane.f32.xlu0 %v3000
    %v3002 = vpop.xlane.xlu0 %3001
    %v3003 = vsub.f32 %v2999, %v3002
    %v3004 = vmul.f32 %v3003, 1.442695
    %v3005 = vpow.pop %v3004
    %v3006 = vsel %vm447, %v3005, 0.0
    %3007 = vadd.xlane.f32.xlu0 %v3006
    %v3008 = vpop.xlane.xlu0 %3007
    %v3009 = vrcp.pop %v3008
    %v3010 = vmul.f32 %v3005, %v3009
    %v3012 = vsel %vm447, %v3010, 0
    %3014 = vmatpush.msra.mxu0 0.0
    %3015 = vmatpush.msra.mxu0 0.0
    %3016 = vmatpush.msra.mxu0 0.0
    %3017 = vmatpush.msra.mxu0 0.0
    %3018 = vmatpush.msra.mxu0 0.0
    %3019 = vmatpush.msra.mxu0 0.0
    %3020 = vmatpush.msra.mxu0 0.0
    %3021 = vmatpush.msra.mxu0 0.0
    %3022 = vmatpush.msra.mxu0 0.0
    %3023 = vmatpush.msra.mxu0 0.0
    %3024 = vmatpush.msra.mxu0 0.0
    %3025 = vmatpush.msra.mxu0 0.0
    %3026 = vmatpush.msra.mxu0 0.0
    %3027 = vmatpush.msra.mxu0 0.0
    %3028 = vmatpush.msra.mxu0 0.0
    %3029 = vmatpush.msra.mxu0 %v2882
    %3030 = vmatmul.f32.gmra.mxu0 %v3012
    %v3031 = vpop.f32.mrf.mxu0
    %v3032 = vadd.f32 0.0, %v3031
    %3033 = vdwg.mxu0
    %v3034 = vld [vmem:[#allocation2 + $0x8] sm:$0xff]
    %v3036 = vsel %vm447, %v3032, 0
    %3038 = vmatpush.msra.mxu0 0.0
    %3039 = vmatpush.msra.mxu0 0.0
    %3040 = vmatpush.msra.mxu0 0.0
    %3041 = vmatpush.msra.mxu0 0.0
    %3042 = vmatpush.msra.mxu0 0.0
    %3043 = vmatpush.msra.mxu0 0.0
    %3044 = vmatpush.msra.mxu0 0.0
    %3045 = vmatpush.msra.mxu0 0.0
    %3046 = vmatpush.msra.mxu0 0.0
    %3047 = vmatpush.msra.mxu0 0.0
    %3048 = vmatpush.msra.mxu0 0.0
    %3049 = vmatpush.msra.mxu0 0.0
    %3050 = vmatpush.msra.mxu0 0.0
    %3051 = vmatpush.msra.mxu0 0.0
    %3052 = vmatpush.msra.mxu0 0.0
    %3053 = vmatpush.msra.mxu0 %v2885
    %3054 = vmatmul.f32.gmra.mxu0 %v3036
    %v3055 = vpop.f32.mrf.mxu0
    %v3056 = vadd.f32 0.0, %v3055
    %3057 = vdwg.mxu0
    %v3058 = vadd.f32 %v3034, %v3056
    %3059 = vst.msk [vmem:[#allocation2 + $0x8] sm:$0xff] %vm344, %v3058
    %s3060 = scalar_lea.vmem %s4, 48
    %v3061 = vld [vmem:[%s3060] sm:$0xff]
    %s3062 = scalar_lea.vmem %s5, 6
    %v3063 = vld [vmem:[%s3062] sm:$0x1]
    %v3065 = vperm.slane %v3063, 0
    %v3068 = vsel %vm344, %v3061, 0
    %3070 = vmatpush.xpose.msra.mxu0 0.0
    %3071 = vmatpush.xpose.msra.mxu0 0.0
    %3072 = vmatpush.xpose.msra.mxu0 0.0
    %3073 = vmatpush.xpose.msra.mxu0 0.0
    %3074 = vmatpush.xpose.msra.mxu0 0.0
    %3075 = vmatpush.xpose.msra.mxu0 0.0
    %3076 = vmatpush.xpose.msra.mxu0 0.0
    %3077 = vmatpush.xpose.msra.mxu0 0.0
    %3078 = vmatpush.xpose.msra.mxu0 0.0
    %3079 = vmatpush.xpose.msra.mxu0 0.0
    %3080 = vmatpush.xpose.msra.mxu0 0.0
    %3081 = vmatpush.xpose.msra.mxu0 0.0
    %3082 = vmatpush.xpose.msra.mxu0 0.0
    %3083 = vmatpush.xpose.msra.mxu0 0.0
    %3084 = vmatpush.xpose.msra.mxu0 0.0
    %3085 = vmatpush.xpose.msra.mxu0 %v3068
    %3086 = vmatmul.f32.gmra.mxu0 %v2512
    %v3087 = vpop.f32.mrf.mxu0
    %v3088 = vadd.f32 %v3065, %v3087
    %3089 = vmatmul.f32.gmra.mxu0 %v2515
    %v3090 = vpop.f32.mrf.mxu0
    %v3091 = vadd.f32 %v3065, %v3090
    %3092 = vdwg.mxu0
    %s3093 = scalar_lea.vmem [#allocation5], 48
    %v3094 = vld [vmem:[%s3093] sm:$0xff]
    %s3095 = scalar_lea.vmem %s7, 6
    %v3096 = vld [vmem:[%s3095] sm:$0x1]
    %v3098 = vperm.slane %v3096, 0
    %v3101 = vsel %vm344, %v3094, 0
    %3103 = vmatpush.xpose.msra.mxu0 0.0
    %3104 = vmatpush.xpose.msra.mxu0 0.0
    %3105 = vmatpush.xpose.msra.mxu0 0.0
    %3106 = vmatpush.xpose.msra.mxu0 0.0
    %3107 = vmatpush.xpose.msra.mxu0 0.0
    %3108 = vmatpush.xpose.msra.mxu0 0.0
    %3109 = vmatpush.xpose.msra.mxu0 0.0
    %3110 = vmatpush.xpose.msra.mxu0 0.0
    %3111 = vmatpush.xpose.msra.mxu0 0.0
    %3112 = vmatpush.xpose.msra.mxu0 0.0
    %3113 = vmatpush.xpose.msra.mxu0 0.0
    %3114 = vmatpush.xpose.msra.mxu0 0.0
    %3115 = vmatpush.xpose.msra.mxu0 0.0
    %3116 = vmatpush.xpose.msra.mxu0 0.0
    %3117 = vmatpush.xpose.msra.mxu0 0.0
    %3118 = vmatpush.xpose.msra.mxu0 %v3101
    %3119 = vmatmul.f32.gmra.mxu0 %v2512
    %v3120 = vpop.f32.mrf.mxu0
    %v3121 = vadd.f32 %v3098, %v3120
    %3122 = vmatmul.f32.gmra.mxu0 %v2515
    %v3123 = vpop.f32.mrf.mxu0
    %v3124 = vadd.f32 %v3098, %v3123
    %3125 = vdwg.mxu0
    %s3126 = scalar_lea.vmem [#allocation7], 48
    %v3127 = vld [vmem:[%s3126] sm:$0xff]
    %s3128 = scalar_lea.vmem %s9, 6
    %v3129 = vld [vmem:[%s3128] sm:$0x1]
    %v3131 = vperm.slane %v3129, 0
    %v3134 = vsel %vm344, %v3127, 0
    %3136 = vmatpush.xpose.msra.mxu0 0.0
    %3137 = vmatpush.xpose.msra.mxu0 0.0
    %3138 = vmatpush.xpose.msra.mxu0 0.0
    %3139 = vmatpush.xpose.msra.mxu0 0.0
    %3140 = vmatpush.xpose.msra.mxu0 0.0
    %3141 = vmatpush.xpose.msra.mxu0 0.0
    %3142 = vmatpush.xpose.msra.mxu0 0.0
    %3143 = vmatpush.xpose.msra.mxu0 0.0
    %3144 = vmatpush.xpose.msra.mxu0 0.0
    %3145 = vmatpush.xpose.msra.mxu0 0.0
    %3146 = vmatpush.xpose.msra.mxu0 0.0
    %3147 = vmatpush.xpose.msra.mxu0 0.0
    %3148 = vmatpush.xpose.msra.mxu0 0.0
    %3149 = vmatpush.xpose.msra.mxu0 0.0
    %3150 = vmatpush.xpose.msra.mxu0 0.0
    %3151 = vmatpush.xpose.msra.mxu0 %v3134
    %3152 = vmatmul.f32.gmra.mxu0 %v2512
    %v3153 = vpop.f32.mrf.mxu0
    %v3154 = vadd.f32 %v3131, %v3153
    %3155 = vmatmul.f32.gmra.mxu0 %v2515
    %v3156 = vpop.f32.mrf.mxu0
    %v3157 = vadd.f32 %v3131, %v3156
    %3158 = vdwg.mxu0
    %s3159 = scalar_lea.vmem [#allocation8], 48
    %v3160 = vld [vmem:[%s3159] sm:$0xff]
    %v3162 = vsel %vm447, %v3088, 0
    %v3165 = vsel %vm447, %v3121, 0
    %3167 = vmatpush.xpose.msra.mxu0 0.0
    %3168 = vmatpush.xpose.msra.mxu0 0.0
    %3169 = vmatpush.xpose.msra.mxu0 0.0
    %3170 = vmatpush.xpose.msra.mxu0 0.0
    %3171 = vmatpush.xpose.msra.mxu0 0.0
    %3172 = vmatpush.xpose.msra.mxu0 0.0
    %3173 = vmatpush.xpose.msra.mxu0 0.0
    %3174 = vmatpush.xpose.msra.mxu0 0.0
    %3175 = vmatpush.xpose.msra.mxu0 0.0
    %3176 = vmatpush.xpose.msra.mxu0 0.0
    %3177 = vmatpush.xpose.msra.mxu0 0.0
    %3178 = vmatpush.xpose.msra.mxu0 0.0
    %3179 = vmatpush.xpose.msra.mxu0 0.0
    %3180 = vmatpush.xpose.msra.mxu0 0.0
    %3181 = vmatpush.xpose.msra.mxu0 0.0
    %3182 = vmatpush.xpose.msra.mxu0 %v3165
    %3183 = vmatmul.f32.gmra.mxu0 %v3162
    %v3184 = vpop.f32.mrf.mxu0
    %v3185 = vadd.f32 0.0, %v3184
    %3186 = vdwg.mxu0
    %v3187 = vmul.f32 %v3185, 0.35355338
    %v3188 = vsel %vm447, %v3187, -inf
    %3189 = vmax.xlane.f32.xlu0 %v3188
    %v3190 = vpop.xlane.xlu0 %3189
    %v3191 = vsub.f32 %v3187, %v3190
    %v3192 = vmul.f32 %v3191, 1.442695
    %v3193 = vpow.pop %v3192
    %v3194 = vsel %vm447, %v3193, 0.0
    %3195 = vadd.xlane.f32.xlu0 %v3194
    %v3196 = vpop.xlane.xlu0 %3195
    %v3197 = vrcp.pop %v3196
    %v3198 = vmul.f32 %v3193, %v3197
    %v3200 = vsel %vm447, %v3198, 0
    %3202 = vmatpush.msra.mxu0 0.0
    %3203 = vmatpush.msra.mxu0 0.0
    %3204 = vmatpush.msra.mxu0 0.0
    %3205 = vmatpush.msra.mxu0 0.0
    %3206 = vmatpush.msra.mxu0 0.0
    %3207 = vmatpush.msra.mxu0 0.0
    %3208 = vmatpush.msra.mxu0 0.0
    %3209 = vmatpush.msra.mxu0 0.0
    %3210 = vmatpush.msra.mxu0 0.0
    %3211 = vmatpush.msra.mxu0 0.0
    %3212 = vmatpush.msra.mxu0 0.0
    %3213 = vmatpush.msra.mxu0 0.0
    %3214 = vmatpush.msra.mxu0 0.0
    %3215 = vmatpush.msra.mxu0 0.0
    %3216 = vmatpush.msra.mxu0 0.0
    %3217 = vmatpush.msra.mxu0 %v3154
    %3218 = vmatmul.f32.gmra.mxu0 %v3200
    %v3219 = vpop.f32.mrf.mxu0
    %v3220 = vadd.f32 0.0, %v3219
    %3221 = vdwg.mxu0
    %v3222 = vld [vmem:[#allocation2] sm:$0xff]
    %v3224 = vsel %vm447, %v3220, 0
    %3226 = vmatpush.msra.mxu0 0.0
    %3227 = vmatpush.msra.mxu0 0.0
    %3228 = vmatpush.msra.mxu0 0.0
    %3229 = vmatpush.msra.mxu0 0.0
    %3230 = vmatpush.msra.mxu0 0.0
    %3231 = vmatpush.msra.mxu0 0.0
    %3232 = vmatpush.msra.mxu0 0.0
    %3233 = vmatpush.msra.mxu0 0.0
    %3234 = vmatpush.msra.mxu0 0.0
    %3235 = vmatpush.msra.mxu0 0.0
    %3236 = vmatpush.msra.mxu0 0.0
    %3237 = vmatpush.msra.mxu0 0.0
    %3238 = vmatpush.msra.mxu0 0.0
    %3239 = vmatpush.msra.mxu0 0.0
    %3240 = vmatpush.msra.mxu0 0.0
    %3241 = vmatpush.msra.mxu0 %v3160
    %3242 = vmatmul.f32.gmra.mxu0 %v3224
    %v3243 = vpop.f32.mrf.mxu0
    %v3244 = vadd.f32 0.0, %v3243
    %3245 = vdwg.mxu0
    %v3246 = vadd.f32 %v3222, %v3244
    %3247 = vst.msk [vmem:[#allocation2] sm:$0xff] %vm344, %v3246
    %v3249 = vsel %vm447, %v3091, 0
    %v3252 = vsel %vm447, %v3124, 0
    %3254 = vmatpush.xpose.msra.mxu0 0.0
    %3255 = vmatpush.xpose.msra.mxu0 0.0
    %3256 = vmatpush.xpose.msra.mxu0 0.0
    %3257 = vmatpush.xpose.msra.mxu0 0.0
    %3258 = vmatpush.xpose.msra.mxu0 0.0
    %3259 = vmatpush.xpose.msra.mxu0 0.0
    %3260 = vmatpush.xpose.msra.mxu0 0.0
    %3261 = vmatpush.xpose.msra.mxu0 0.0
    %3262 = vmatpush.xpose.msra.mxu0 0.0
    %3263 = vmatpush.xpose.msra.mxu0 0.0
    %3264 = vmatpush.xpose.msra.mxu0 0.0
    %3265 = vmatpush.xpose.msra.mxu0 0.0
    %3266 = vmatpush.xpose.msra.mxu0 0.0
    %3267 = vmatpush.xpose.msra.mxu0 0.0
    %3268 = vmatpush.xpose.msra.mxu0 0.0
    %3269 = vmatpush.xpose.msra.mxu0 %v3252
    %3270 = vmatmul.f32.gmra.mxu0 %v3249
    %v3271 = vpop.f32.mrf.mxu0
    %v3272 = vadd.f32 0.0, %v3271
    %3273 = vdwg.mxu0
    %v3274 = vmul.f32 %v3272, 0.35355338
    %v3275 = vsel %vm447, %v3274, -inf
    %3276 = vmax.xlane.f32.xlu0 %v3275
    %v3277 = vpop.xlane.xlu0 %3276
    %v3278 = vsub.f32 %v3274, %v3277
    %v3279 = vmul.f32 %v3278, 1.442695
    %v3280 = vpow.pop %v3279
    %v3281 = vsel %vm447, %v3280, 0.0
    %3282 = vadd.xlane.f32.xlu0 %v3281
    %v3283 = vpop.xlane.xlu0 %3282
    %v3284 = vrcp.pop %v3283
    %v3285 = vmul.f32 %v3280, %v3284
    %v3287 = vsel %vm447, %v3285, 0
    %3289 = vmatpush.msra.mxu0 0.0
    %3290 = vmatpush.msra.mxu0 0.0
    %3291 = vmatpush.msra.mxu0 0.0
    %3292 = vmatpush.msra.mxu0 0.0
    %3293 = vmatpush.msra.mxu0 0.0
    %3294 = vmatpush.msra.mxu0 0.0
    %3295 = vmatpush.msra.mxu0 0.0
    %3296 = vmatpush.msra.mxu0 0.0
    %3297 = vmatpush.msra.mxu0 0.0
    %3298 = vmatpush.msra.mxu0 0.0
    %3299 = vmatpush.msra.mxu0 0.0
    %3300 = vmatpush.msra.mxu0 0.0
    %3301 = vmatpush.msra.mxu0 0.0
    %3302 = vmatpush.msra.mxu0 0.0
    %3303 = vmatpush.msra.mxu0 0.0
    %3304 = vmatpush.msra.mxu0 %v3157
    %3305 = vmatmul.f32.gmra.mxu0 %v3287
    %v3306 = vpop.f32.mrf.mxu0
    %v3307 = vadd.f32 0.0, %v3306
    %3308 = vdwg.mxu0
    %v3309 = vld [vmem:[#allocation2 + $0x8] sm:$0xff]
    %v3311 = vsel %vm447, %v3307, 0
    %3313 = vmatpush.msra.mxu0 0.0
    %3314 = vmatpush.msra.mxu0 0.0
    %3315 = vmatpush.msra.mxu0 0.0
    %3316 = vmatpush.msra.mxu0 0.0
    %3317 = vmatpush.msra.mxu0 0.0
    %3318 = vmatpush.msra.mxu0 0.0
    %3319 = vmatpush.msra.mxu0 0.0
    %3320 = vmatpush.msra.mxu0 0.0
    %3321 = vmatpush.msra.mxu0 0.0
    %3322 = vmatpush.msra.mxu0 0.0
    %3323 = vmatpush.msra.mxu0 0.0
    %3324 = vmatpush.msra.mxu0 0.0
    %3325 = vmatpush.msra.mxu0 0.0
    %3326 = vmatpush.msra.mxu0 0.0
    %3327 = vmatpush.msra.mxu0 0.0
    %3328 = vmatpush.msra.mxu0 %v3160
    %3329 = vmatmul.f32.gmra.mxu0 %v3311
    %v3330 = vpop.f32.mrf.mxu0
    %v3331 = vadd.f32 0.0, %v3330
    %3332 = vdwg.mxu0
    %v3333 = vadd.f32 %v3309, %v3331
    %3334 = vst.msk [vmem:[#allocation2 + $0x8] sm:$0xff] %vm344, %v3333
    %s3335 = scalar_lea.vmem %s4, 56
    %v3336 = vld [vmem:[%s3335] sm:$0xff]
    %s3337 = scalar_lea.vmem %s5, 7
    %v3338 = vld [vmem:[%s3337] sm:$0x1]
    %v3340 = vperm.slane %v3338, 0
    %v3343 = vsel %vm344, %v3336, 0
    %3345 = vmatpush.xpose.msra.mxu0 0.0
    %3346 = vmatpush.xpose.msra.mxu0 0.0
    %3347 = vmatpush.xpose.msra.mxu0 0.0
    %3348 = vmatpush.xpose.msra.mxu0 0.0
    %3349 = vmatpush.xpose.msra.mxu0 0.0
    %3350 = vmatpush.xpose.msra.mxu0 0.0
    %3351 = vmatpush.xpose.msra.mxu0 0.0
    %3352 = vmatpush.xpose.msra.mxu0 0.0
    %3353 = vmatpush.xpose.msra.mxu0 0.0
    %3354 = vmatpush.xpose.msra.mxu0 0.0
    %3355 = vmatpush.xpose.msra.mxu0 0.0
    %3356 = vmatpush.xpose.msra.mxu0 0.0
    %3357 = vmatpush.xpose.msra.mxu0 0.0
    %3358 = vmatpush.xpose.msra.mxu0 0.0
    %3359 = vmatpush.xpose.msra.mxu0 0.0
    %3360 = vmatpush.xpose.msra.mxu0 %v3343
    %3361 = vmatmul.f32.gmra.mxu0 %v2512
    %v3362 = vpop.f32.mrf.mxu0
    %v3363 = vadd.f32 %v3340, %v3362
    %3364 = vmatmul.f32.gmra.mxu0 %v2515
    %v3365 = vpop.f32.mrf.mxu0
    %v3366 = vadd.f32 %v3340, %v3365
    %3367 = vdwg.mxu0
    %s3368 = scalar_lea.vmem [#allocation5], 56
    %v3369 = vld [vmem:[%s3368] sm:$0xff]
    %s3370 = scalar_lea.vmem %s7, 7
    %v3371 = vld [vmem:[%s3370] sm:$0x1]
    %v3373 = vperm.slane %v3371, 0
    %v3376 = vsel %vm344, %v3369, 0
    %3378 = vmatpush.xpose.msra.mxu0 0.0
    %3379 = vmatpush.xpose.msra.mxu0 0.0
    %3380 = vmatpush.xpose.msra.mxu0 0.0
    %3381 = vmatpush.xpose.msra.mxu0 0.0
    %3382 = vmatpush.xpose.msra.mxu0 0.0
    %3383 = vmatpush.xpose.msra.mxu0 0.0
    %3384 = vmatpush.xpose.msra.mxu0 0.0
    %3385 = vmatpush.xpose.msra.mxu0 0.0
    %3386 = vmatpush.xpose.msra.mxu0 0.0
    %3387 = vmatpush.xpose.msra.mxu0 0.0
    %3388 = vmatpush.xpose.msra.mxu0 0.0
    %3389 = vmatpush.xpose.msra.mxu0 0.0
    %3390 = vmatpush.xpose.msra.mxu0 0.0
    %3391 = vmatpush.xpose.msra.mxu0 0.0
    %3392 = vmatpush.xpose.msra.mxu0 0.0
    %3393 = vmatpush.xpose.msra.mxu0 %v3376
    %3394 = vmatmul.f32.gmra.mxu0 %v2512
    %v3395 = vpop.f32.mrf.mxu0
    %v3396 = vadd.f32 %v3373, %v3395
    %3397 = vmatmul.f32.gmra.mxu0 %v2515
    %v3398 = vpop.f32.mrf.mxu0
    %v3399 = vadd.f32 %v3373, %v3398
    %3400 = vdwg.mxu0
    %s3401 = scalar_lea.vmem [#allocation7], 56
    %v3402 = vld [vmem:[%s3401] sm:$0xff]
    %s3403 = scalar_lea.vmem %s9, 7
    %v3404 = vld [vmem:[%s3403] sm:$0x1]
    %v3406 = vperm.slane %v3404, 0
    %v3409 = vsel %vm344, %v3402, 0
    %3411 = vmatpush.xpose.msra.mxu0 0.0
    %3412 = vmatpush.xpose.msra.mxu0 0.0
    %3413 = vmatpush.xpose.msra.mxu0 0.0
    %3414 = vmatpush.xpose.msra.mxu0 0.0
    %3415 = vmatpush.xpose.msra.mxu0 0.0
    %3416 = vmatpush.xpose.msra.mxu0 0.0
    %3417 = vmatpush.xpose.msra.mxu0 0.0
    %3418 = vmatpush.xpose.msra.mxu0 0.0
    %3419 = vmatpush.xpose.msra.mxu0 0.0
    %3420 = vmatpush.xpose.msra.mxu0 0.0
    %3421 = vmatpush.xpose.msra.mxu0 0.0
    %3422 = vmatpush.xpose.msra.mxu0 0.0
    %3423 = vmatpush.xpose.msra.mxu0 0.0
    %3424 = vmatpush.xpose.msra.mxu0 0.0
    %3425 = vmatpush.xpose.msra.mxu0 0.0
    %3426 = vmatpush.xpose.msra.mxu0 %v3409
    %3427 = vmatmul.f32.gmra.mxu0 %v2512
    %v3428 = vpop.f32.mrf.mxu0
    %v3429 = vadd.f32 %v3406, %v3428
    %3430 = vmatmul.f32.gmra.mxu0 %v2515
    %v3431 = vpop.f32.mrf.mxu0
    %v3432 = vadd.f32 %v3406, %v3431
    %3433 = vdwg.mxu0
    %s3434 = scalar_lea.vmem [#allocation8], 56
    %v3435 = vld [vmem:[%s3434] sm:$0xff]
    %v3437 = vsel %vm447, %v3363, 0
    %v3440 = vsel %vm447, %v3396, 0
    %3442 = vmatpush.xpose.msra.mxu0 0.0
    %3443 = vmatpush.xpose.msra.mxu0 0.0
    %3444 = vmatpush.xpose.msra.mxu0 0.0
    %3445 = vmatpush.xpose.msra.mxu0 0.0
    %3446 = vmatpush.xpose.msra.mxu0 0.0
    %3447 = vmatpush.xpose.msra.mxu0 0.0
    %3448 = vmatpush.xpose.msra.mxu0 0.0
    %3449 = vmatpush.xpose.msra.mxu0 0.0
    %3450 = vmatpush.xpose.msra.mxu0 0.0
    %3451 = vmatpush.xpose.msra.mxu0 0.0
    %3452 = vmatpush.xpose.msra.mxu0 0.0
    %3453 = vmatpush.xpose.msra.mxu0 0.0
    %3454 = vmatpush.xpose.msra.mxu0 0.0
    %3455 = vmatpush.xpose.msra.mxu0 0.0
    %3456 = vmatpush.xpose.msra.mxu0 0.0
    %3457 = vmatpush.xpose.msra.mxu0 %v3440
    %3458 = vmatmul.f32.gmra.mxu0 %v3437
    %v3459 = vpop.f32.mrf.mxu0
    %v3460 = vadd.f32 0.0, %v3459
    %3461 = vdwg.mxu0
    %v3462 = vmul.f32 %v3460, 0.35355338
    %v3463 = vsel %vm447, %v3462, -inf
    %3464 = vmax.xlane.f32.xlu0 %v3463
    %v3465 = vpop.xlane.xlu0 %3464
    %v3466 = vsub.f32 %v3462, %v3465
    %v3467 = vmul.f32 %v3466, 1.442695
    %v3468 = vpow.pop %v3467
    %v3469 = vsel %vm447, %v3468, 0.0
    %3470 = vadd.xlane.f32.xlu0 %v3469
    %v3471 = vpop.xlane.xlu0 %3470
    %v3472 = vrcp.pop %v3471
    %v3473 = vmul.f32 %v3468, %v3472
    %v3475 = vsel %vm447, %v3473, 0
    %3477 = vmatpush.msra.mxu0 0.0
    %3478 = vmatpush.msra.mxu0 0.0
    %3479 = vmatpush.msra.mxu0 0.0
    %3480 = vmatpush.msra.mxu0 0.0
    %3481 = vmatpush.msra.mxu0 0.0
    %3482 = vmatpush.msra.mxu0 0.0
    %3483 = vmatpush.msra.mxu0 0.0
    %3484 = vmatpush.msra.mxu0 0.0
    %3485 = vmatpush.msra.mxu0 0.0
    %3486 = vmatpush.msra.mxu0 0.0
    %3487 = vmatpush.msra.mxu0 0.0
    %3488 = vmatpush.msra.mxu0 0.0
    %3489 = vmatpush.msra.mxu0 0.0
    %3490 = vmatpush.msra.mxu0 0.0
    %3491 = vmatpush.msra.mxu0 0.0
    %3492 = vmatpush.msra.mxu0 %v3429
    %3493 = vmatmul.f32.gmra.mxu0 %v3475
    %v3494 = vpop.f32.mrf.mxu0
    %v3495 = vadd.f32 0.0, %v3494
    %3496 = vdwg.mxu0
    %v3497 = vld [vmem:[#allocation2] sm:$0xff]
    %v3499 = vsel %vm447, %v3495, 0
    %3501 = vmatpush.msra.mxu0 0.0
    %3502 = vmatpush.msra.mxu0 0.0
    %3503 = vmatpush.msra.mxu0 0.0
    %3504 = vmatpush.msra.mxu0 0.0
    %3505 = vmatpush.msra.mxu0 0.0
    %3506 = vmatpush.msra.mxu0 0.0
    %3507 = vmatpush.msra.mxu0 0.0
    %3508 = vmatpush.msra.mxu0 0.0
    %3509 = vmatpush.msra.mxu0 0.0
    %3510 = vmatpush.msra.mxu0 0.0
    %3511 = vmatpush.msra.mxu0 0.0
    %3512 = vmatpush.msra.mxu0 0.0
    %3513 = vmatpush.msra.mxu0 0.0
    %3514 = vmatpush.msra.mxu0 0.0
    %3515 = vmatpush.msra.mxu0 0.0
    %3516 = vmatpush.msra.mxu0 %v3435
    %3517 = vmatmul.f32.gmra.mxu0 %v3499
    %v3518 = vpop.f32.mrf.mxu0
    %v3519 = vadd.f32 0.0, %v3518
    %3520 = vdwg.mxu0
    %v3521 = vadd.f32 %v3497, %v3519
    %3522 = vst.msk [vmem:[#allocation2] sm:$0xff] %vm344, %v3521
    %v3524 = vsel %vm447, %v3366, 0
    %v3527 = vsel %vm447, %v3399, 0
    %3529 = vmatpush.xpose.msra.mxu0 0.0
    %3530 = vmatpush.xpose.msra.mxu0 0.0
    %3531 = vmatpush.xpose.msra.mxu0 0.0
    %3532 = vmatpush.xpose.msra.mxu0 0.0
    %3533 = vmatpush.xpose.msra.mxu0 0.0
    %3534 = vmatpush.xpose.msra.mxu0 0.0
    %3535 = vmatpush.xpose.msra.mxu0 0.0
    %3536 = vmatpush.xpose.msra.mxu0 0.0
    %3537 = vmatpush.xpose.msra.mxu0 0.0
    %3538 = vmatpush.xpose.msra.mxu0 0.0
    %3539 = vmatpush.xpose.msra.mxu0 0.0
    %3540 = vmatpush.xpose.msra.mxu0 0.0
    %3541 = vmatpush.xpose.msra.mxu0 0.0
    %3542 = vmatpush.xpose.msra.mxu0 0.0
    %3543 = vmatpush.xpose.msra.mxu0 0.0
    %3544 = vmatpush.xpose.msra.mxu0 %v3527
    %3545 = vmatmul.f32.gmra.mxu0 %v3524
    %v3546 = vpop.f32.mrf.mxu0
    %v3547 = vadd.f32 0.0, %v3546
    %3548 = vdwg.mxu0
    %v3549 = vmul.f32 %v3547, 0.35355338
    %v3550 = vsel %vm447, %v3549, -inf
    %3551 = vmax.xlane.f32.xlu0 %v3550
    %v3552 = vpop.xlane.xlu0 %3551
    %v3553 = vsub.f32 %v3549, %v3552
    %v3554 = vmul.f32 %v3553, 1.442695
    %v3555 = vpow.pop %v3554
    %v3556 = vsel %vm447, %v3555, 0.0
    %3557 = vadd.xlane.f32.xlu0 %v3556
    %v3558 = vpop.xlane.xlu0 %3557
    %v3559 = vrcp.pop %v3558
    %v3560 = vmul.f32 %v3555, %v3559
    %v3562 = vsel %vm447, %v3560, 0
    %3564 = vmatpush.msra.mxu0 0.0
    %3565 = vmatpush.msra.mxu0 0.0
    %3566 = vmatpush.msra.mxu0 0.0
    %3567 = vmatpush.msra.mxu0 0.0
    %3568 = vmatpush.msra.mxu0 0.0
    %3569 = vmatpush.msra.mxu0 0.0
    %3570 = vmatpush.msra.mxu0 0.0
    %3571 = vmatpush.msra.mxu0 0.0
    %3572 = vmatpush.msra.mxu0 0.0
    %3573 = vmatpush.msra.mxu0 0.0
    %3574 = vmatpush.msra.mxu0 0.0
    %3575 = vmatpush.msra.mxu0 0.0
    %3576 = vmatpush.msra.mxu0 0.0
    %3577 = vmatpush.msra.mxu0 0.0
    %3578 = vmatpush.msra.mxu0 0.0
    %3579 = vmatpush.msra.mxu0 %v3432
    %3580 = vmatmul.f32.gmra.mxu0 %v3562
    %v3581 = vpop.f32.mrf.mxu0
    %v3582 = vadd.f32 0.0, %v3581
    %3583 = vdwg.mxu0
    %v3584 = vld [vmem:[#allocation2 + $0x8] sm:$0xff]
    %v3586 = vsel %vm447, %v3582, 0
    %3588 = vmatpush.msra.mxu0 0.0
    %3589 = vmatpush.msra.mxu0 0.0
    %3590 = vmatpush.msra.mxu0 0.0
    %3591 = vmatpush.msra.mxu0 0.0
    %3592 = vmatpush.msra.mxu0 0.0
    %3593 = vmatpush.msra.mxu0 0.0
    %3594 = vmatpush.msra.mxu0 0.0
    %3595 = vmatpush.msra.mxu0 0.0
    %3596 = vmatpush.msra.mxu0 0.0
    %3597 = vmatpush.msra.mxu0 0.0
    %3598 = vmatpush.msra.mxu0 0.0
    %3599 = vmatpush.msra.mxu0 0.0
    %3600 = vmatpush.msra.mxu0 0.0
    %3601 = vmatpush.msra.mxu0 0.0
    %3602 = vmatpush.msra.mxu0 0.0
    %3603 = vmatpush.msra.mxu0 %v3435
    %3604 = vmatmul.f32.gmra.mxu0 %v3586
    %v3605 = vpop.f32.mrf.mxu0
    %v3606 = vadd.f32 0.0, %v3605
    %3607 = vdwg.mxu0
    %v3608 = vadd.f32 %v3584, %v3606
    %3609 = vst.msk [vmem:[#allocation2 + $0x8] sm:$0xff] %vm344, %v3608
    %v3610 = vld [vmem:[#allocation2] sm:$0xff]
    %v3611 = vld [vmem:[#allocation2 + $0x8] sm:$0xff]
    %s3612 = scalar_lea.vmem [#allocation10], 1
    %v3613 = vld [vmem:[%s3612] sm:$0x1]
    %v3615 = vperm.slane %v3613, 0
    %v3617 = vadd.f32 %v3610, %v3615
    %v3618 = vadd.f32 %v3611, %v3615
    %v3619 = vadd.f32 %v2500, %v3617
    %v3620 = vadd.f32 %v2501, %v3618
    %s3621 = scalar_lea.vmem [#allocation11], 1
    %v3622 = vld [vmem:[%s3621] sm:$0x1]
    %s3623 = scalar_lea.vmem [#allocation13], 1
    %v3624 = vld [vmem:[%s3623] sm:$0x1]
    %v3625 = vsel %vm344, %v3619, 0.0
    %3626 = vadd.xlane.f32.xlu0 %v3625
    %v3627 = vpop.xlane.xlu0 %3626
    %v3628 = vsel %vm344, %v3620, 0.0
    %3629 = vadd.xlane.f32.xlu0 %v3628
    %v3630 = vpop.xlane.xlu0 %3629
    %v3631 = vmul.f32 %v3627, %v1471
    %v3632 = vmul.f32 %v3630, %v1471
    %v3633 = vsub.f32 %v3619, %v3631
    %v3634 = vsub.f32 %v3620, %v3632
    %v3635 = vmul.f32 %v3633, %v3633
    %v3636 = vmul.f32 %v3634, %v3634
    %v3637 = vsel %vm344, %v3635, 0.0
    %3638 = vadd.xlane.f32.xlu0 %v3637
    %v3639 = vpop.xlane.xlu0 %3638
    %v3640 = vsel %vm344, %v3636, 0.0
    %3641 = vadd.xlane.f32.xlu0 %v3640
    %v3642 = vpop.xlane.xlu0 %3641
    %v3643 = vmul.f32 %v3639, %v1471
    %v3644 = vmul.f32 %v3642, %v1471
    %v3645 = vadd.f32 %v3643, 1e-05
    %v3646 = vadd.f32 %v3644, 1e-05
    %v3647 = vrsqrt.pop %v3645
    %v3648 = vmul.f32 %v3647, %v3645
    %v3649 = vmul.f32 %v3648, %v3647
    %v3650 = vmul.f32 0.5, %v3649
    %v3651 = vsub.f32 1.5, %v3650
    %v3652 = vmul.f32 %v3647, %v3651
    %vm3653 = vweird.f32 %v3645
    %vm3654 = vweird.f32 %v3647
    %vm3655 = vmor %vm3653, %vm3654
    %v3656 = vsel %vm3655, %v3647, %v3652
    %v3657 = vrsqrt.pop %v3646
    %v3658 = vmul.f32 %v3657, %v3646
    %v3659 = vmul.f32 %v3658, %v3657
    %v3660 = vmul.f32 0.5, %v3659
    %v3661 = vsub.f32 1.5, %v3660
    %v3662 = vmul.f32 %v3657, %v3661
    %vm3663 = vweird.f32 %v3646
    %vm3664 = vweird.f32 %v3657
    %vm3665 = vmor %vm3663, %vm3664
    %v3666 = vsel %vm3665, %v3657, %v3662
    %v3667 = vmul.f32 %v3633, %v3656
    %v3668 = vmul.f32 %v3634, %v3666
    %v3670 = vperm.slane %v3622, 0
    %v3672 = vmul.f32 %v3667, %v3670
    %v3673 = vmul.f32 %v3668, %v3670
    %v3675 = vperm.slane %v3624, 0
    %v3677 = vadd.f32 %v3672, %v3675
    %v3678 = vadd.f32 %v3673, %v3675
    %v3679 = vpack.c.bf16 %v3678, %v3677
    %s3680 = scalar_lea.vmem [#allocation14], 256
    %v3681 = vld [vmem:[%s3680] sm:$0xff]
    %v3682 = vld [vmem:[%s3680 + $0x8] sm:$0xff]
    %v3683 = vld [vmem:[%s3680 + $0x10] sm:$0xff]
    %v3684 = vld [vmem:[%s3680 + $0x18] sm:$0xff]
    %v3685 = vld [vmem:[%s3680 + $0x20] sm:$0xff]
    %v3686 = vld [vmem:[%s3680 + $0x28] sm:$0xff]
    %v3687 = vld [vmem:[%s3680 + $0x30] sm:$0xff]
    %v3688 = vld [vmem:[%s3680 + $0x38] sm:$0xff]
    %v3689 = vld [vmem:[%s3680 + $0x40] sm:$0xff]
    %v3690 = vld [vmem:[%s3680 + $0x48] sm:$0xff]
    %v3691 = vld [vmem:[%s3680 + $0x50] sm:$0xff]
    %v3692 = vld [vmem:[%s3680 + $0x58] sm:$0xff]
    %v3693 = vld [vmem:[%s3680 + $0x60] sm:$0xff]
    %v3694 = vld [vmem:[%s3680 + $0x68] sm:$0xff]
    %v3695 = vld [vmem:[%s3680 + $0x70] sm:$0xff]
    %v3696 = vld [vmem:[%s3680 + $0x78] sm:$0xff]
    %v3697 = vld [vmem:[%s3680 + $0x80] sm:$0xff]
    %v3698 = vld [vmem:[%s3680 + $0x88] sm:$0xff]
    %v3699 = vld [vmem:[%s3680 + $0x90] sm:$0xff]
    %v3700 = vld [vmem:[%s3680 + $0x98] sm:$0xff]
    %v3701 = vld [vmem:[%s3680 + $0xa0] sm:$0xff]
    %v3702 = vld [vmem:[%s3680 + $0xa8] sm:$0xff]
    %v3703 = vld [vmem:[%s3680 + $0xb0] sm:$0xff]
    %v3704 = vld [vmem:[%s3680 + $0xb8] sm:$0xff]
    %v3705 = vld [vmem:[%s3680 + $0xc0] sm:$0xff]
    %v3706 = vld [vmem:[%s3680 + $0xc8] sm:$0xff]
    %v3707 = vld [vmem:[%s3680 + $0xd0] sm:$0xff]
    %v3708 = vld [vmem:[%s3680 + $0xd8] sm:$0xff]
    %v3709 = vld [vmem:[%s3680 + $0xe0] sm:$0xff]
    %v3710 = vld [vmem:[%s3680 + $0xe8] sm:$0xff]
    %v3711 = vld [vmem:[%s3680 + $0xf0] sm:$0xff]
    %v3712 = vld [vmem:[%s3680 + $0xf8] sm:$0xff]
    %s3713 = scalar_lea.vmem [#allocation16], 16
    %v3714 = vld [vmem:[%s3713] sm:$0xff]
    %v3715 = vld [vmem:[%s3713 + $0x8] sm:$0xff]
    %v3718 = vperm.slane %v3714, 0
    %v3719 = vperm.slane %v3714, 1
    %v3720 = vperm.slane %v3714, 2
    %v3721 = vperm.slane %v3714, 3
    %v3722 = vperm.slane %v3714, 4
    %v3723 = vperm.slane %v3714, 5
    %v3724 = vperm.slane %v3714, 6
    %v3725 = vperm.slane %v3714, 7
    %v3726 = vperm.slane %v3715, 0
    %v3727 = vperm.slane %v3715, 1
    %v3728 = vperm.slane %v3715, 2
    %v3729 = vperm.slane %v3715, 3
    %v3730 = vperm.slane %v3715, 4
    %v3731 = vperm.slane %v3715, 5
    %v3732 = vperm.slane %v3715, 6
    %v3733 = vperm.slane %v3715, 7
    %v3782 = vunpack.c.l.b16 %v3681
    %v3783 = vunpack.c.h.b16 %v3681
    %v3784 = vunpack.c.l.b16 %v3682
    %v3785 = vunpack.c.h.b16 %v3682
    %v3786 = vunpack.c.l.b16 %v3683
    %v3787 = vunpack.c.h.b16 %v3683
    %v3788 = vunpack.c.l.b16 %v3684
    %v3789 = vunpack.c.h.b16 %v3684
    %v3790 = vunpack.c.l.b16 %v3685
    %v3791 = vunpack.c.h.b16 %v3685
    %v3792 = vunpack.c.l.b16 %v3686
    %v3793 = vunpack.c.h.b16 %v3686
    %v3794 = vunpack.c.l.b16 %v3687
    %v3795 = vunpack.c.h.b16 %v3687
    %v3796 = vunpack.c.l.b16 %v3688
    %v3797 = vunpack.c.h.b16 %v3688
    %v3798 = vunpack.c.l.b16 %v3689
    %v3799 = vunpack.c.h.b16 %v3689
    %v3800 = vunpack.c.l.b16 %v3690
    %v3801 = vunpack.c.h.b16 %v3690
    %v3802 = vunpack.c.l.b16 %v3691
    %v3803 = vunpack.c.h.b16 %v3691
    %v3804 = vunpack.c.l.b16 %v3692
    %v3805 = vunpack.c.h.b16 %v3692
    %v3806 = vunpack.c.l.b16 %v3693
    %v3807 = vunpack.c.h.b16 %v3693
    %v3808 = vunpack.c.l.b16 %v3694
    %v3809 = vunpack.c.h.b16 %v3694
    %v3810 = vunpack.c.l.b16 %v3695
    %v3811 = vunpack.c.h.b16 %v3695
    %v3812 = vunpack.c.l.b16 %v3696
    %v3813 = vunpack.c.h.b16 %v3696
    %v3814 = vunpack.c.l.b16 %v3697
    %v3815 = vunpack.c.h.b16 %v3697
    %v3816 = vunpack.c.l.b16 %v3698
    %v3817 = vunpack.c.h.b16 %v3698
    %v3818 = vunpack.c.l.b16 %v3699
    %v3819 = vunpack.c.h.b16 %v3699
    %v3820 = vunpack.c.l.b16 %v3700
    %v3821 = vunpack.c.h.b16 %v3700
    %v3822 = vunpack.c.l.b16 %v3701
    %v3823 = vunpack.c.h.b16 %v3701
    %v3824 = vunpack.c.l.b16 %v3702
    %v3825 = vunpack.c.h.b16 %v3702
    %v3826 = vunpack.c.l.b16 %v3703
    %v3827 = vunpack.c.h.b16 %v3703
    %v3828 = vunpack.c.l.b16 %v3704
    %v3829 = vunpack.c.h.b16 %v3704
    %v3830 = vunpack.c.l.b16 %v3705
    %v3831 = vunpack.c.h.b16 %v3705
    %v3832 = vunpack.c.l.b16 %v3706
    %v3833 = vunpack.c.h.b16 %v3706
    %v3834 = vunpack.c.l.b16 %v3707
    %v3835 = vunpack.c.h.b16 %v3707
    %v3836 = vunpack.c.l.b16 %v3708
    %v3837 = vunpack.c.h.b16 %v3708
    %v3838 = vunpack.c.l.b16 %v3709
    %v3839 = vunpack.c.h.b16 %v3709
    %v3840 = vunpack.c.l.b16 %v3710
    %v3841 = vunpack.c.h.b16 %v3710
    %v3842 = vunpack.c.l.b16 %v3711
    %v3843 = vunpack.c.h.b16 %v3711
    %v3844 = vunpack.c.l.b16 %v3712
    %v3845 = vunpack.c.h.b16 %v3712
    %v3846 = vpack.c.b16 %v3798, %v3782
    %v3847 = vpack.c.b16 %v3799, %v3783
    %v3848 = vpack.c.b16 %v3800, %v3784
    %v3849 = vpack.c.b16 %v3801, %v3785
    %v3850 = vpack.c.b16 %v3802, %v3786
    %v3851 = vpack.c.b16 %v3803, %v3787
    %v3852 = vpack.c.b16 %v3804, %v3788
    %v3853 = vpack.c.b16 %v3805, %v3789
    %v3854 = vpack.c.b16 %v3806, %v3790
    %v3855 = vpack.c.b16 %v3807, %v3791
    %v3856 = vpack.c.b16 %v3808, %v3792
    %v3857 = vpack.c.b16 %v3809, %v3793
    %v3858 = vpack.c.b16 %v3810, %v3794
    %v3859 = vpack.c.b16 %v3811, %v3795
    %v3860 = vpack.c.b16 %v3812, %v3796
    %v3861 = vpack.c.b16 %v3813, %v3797
    %v3862 = vpack.c.b16 %v3830, %v3814
    %v3863 = vpack.c.b16 %v3831, %v3815
    %v3864 = vpack.c.b16 %v3832, %v3816
    %v3865 = vpack.c.b16 %v3833, %v3817
    %v3866 = vpack.c.b16 %v3834, %v3818
    %v3867 = vpack.c.b16 %v3835, %v3819
    %v3868 = vpack.c.b16 %v3836, %v3820
    %v3869 = vpack.c.b16 %v3837, %v3821
    %v3870 = vpack.c.b16 %v3838, %v3822
    %v3871 = vpack.c.b16 %v3839, %v3823
    %v3872 = vpack.c.b16 %v3840, %v3824
    %v3873 = vpack.c.b16 %v3841, %v3825
    %v3874 = vpack.c.b16 %v3842, %v3826
    %v3875 = vpack.c.b16 %v3843, %v3827
    %v3876 = vpack.c.b16 %v3844, %v3828
    %v3877 = vpack.c.b16 %v3845, %v3829
    %v3911 = vsel %vm344, %v3679, 0
    %3913 = vmatpush.bf16.msra.mxu0 0
    %3914 = vmatpush.bf16.msra.mxu0 0
    %3915 = vmatpush.bf16.msra.mxu0 0
    %3916 = vmatpush.bf16.msra.mxu0 0
    %3917 = vmatpush.bf16.msra.mxu0 0
    %3918 = vmatpush.bf16.msra.mxu0 0
    %3919 = vmatpush.bf16.msra.mxu0 %v3862
    %3920 = vmatpush.bf16.msra.mxu0 %v3846
    %3921 = vmatmul.bf16.gmra.mxu0 %v3911
    %v3922 = vpop.f32.mrf.mxu0
    %v3923 = vadd.f32 %v3718, %v3922
    %v3924 = vpop.f32.mrf.mxu0
    %v3925 = vadd.f32 %v3718, %v3924
    %3926 = vdwg.mxu0
    %3927 = vmatpush.bf16.msra.mxu0 0
    %3928 = vmatpush.bf16.msra.mxu0 0
    %3929 = vmatpush.bf16.msra.mxu0 0
    %3930 = vmatpush.bf16.msra.mxu0 0
    %3931 = vmatpush.bf16.msra.mxu0 0
    %3932 = vmatpush.bf16.msra.mxu0 0
    %3933 = vmatpush.bf16.msra.mxu0 %v3863
    %3934 = vmatpush.bf16.msra.mxu0 %v3847
    %3935 = vmatmul.bf16.gmra.mxu0 %v3911
    %v3936 = vpop.f32.mrf.mxu0
    %v3937 = vadd.f32 %v3719, %v3936
    %v3938 = vpop.f32.mrf.mxu0
    %v3939 = vadd.f32 %v3719, %v3938
    %3940 = vdwg.mxu0
    %3941 = vmatpush.bf16.msra.mxu0 0
    %3942 = vmatpush.bf16.msra.mxu0 0
    %3943 = vmatpush.bf16.msra.mxu0 0
    %3944 = vmatpush.bf16.msra.mxu0 0
    %3945 = vmatpush.bf16.msra.mxu0 0
    %3946 = vmatpush.bf16.msra.mxu0 0
    %3947 = vmatpush.bf16.msra.mxu0 %v3864
    %3948 = vmatpush.bf16.msra.mxu0 %v3848
    %3949 = vmatmul.bf16.gmra.mxu0 %v3911
    %v3950 = vpop.f32.mrf.mxu0
    %v3951 = vadd.f32 %v3720, %v3950
    %v3952 = vpop.f32.mrf.mxu0
    %v3953 = vadd.f32 %v3720, %v3952
    %3954 = vdwg.mxu0
    %3955 = vmatpush.bf16.msra.mxu0 0
    %3956 = vmatpush.bf16.msra.mxu0 0
    %3957 = vmatpush.bf16.msra.mxu0 0
    %3958 = vmatpush.bf16.msra.mxu0 0
    %3959 = vmatpush.bf16.msra.mxu0 0
    %3960 = vmatpush.bf16.msra.mxu0 0
    %3961 = vmatpush.bf16.msra.mxu0 %v3865
    %3962 = vmatpush.bf16.msra.mxu0 %v3849
    %3963 = vmatmul.bf16.gmra.mxu0 %v3911
    %v3964 = vpop.f32.mrf.mxu0
    %v3965 = vadd.f32 %v3721, %v3964
    %v3966 = vpop.f32.mrf.mxu0
    %v3967 = vadd.f32 %v3721, %v3966
    %3968 = vdwg.mxu0
    %3969 = vmatpush.bf16.msra.mxu0 0
    %3970 = vmatpush.bf16.msra.mxu0 0
    %3971 = vmatpush.bf16.msra.mxu0 0
    %3972 = vmatpush.bf16.msra.mxu0 0
    %3973 = vmatpush.bf16.msra.mxu0 0
    %3974 = vmatpush.bf16.msra.mxu0 0
    %3975 = vmatpush.bf16.msra.mxu0 %v3866
    %3976 = vmatpush.bf16.msra.mxu0 %v3850
    %3977 = vmatmul.bf16.gmra.mxu0 %v3911
    %v3978 = vpop.f32.mrf.mxu0
    %v3979 = vadd.f32 %v3722, %v3978
    %v3980 = vpop.f32.mrf.mxu0
    %v3981 = vadd.f32 %v3722, %v3980
    %3982 = vdwg.mxu0
    %3983 = vmatpush.bf16.msra.mxu0 0
    %3984 = vmatpush.bf16.msra.mxu0 0
    %3985 = vmatpush.bf16.msra.mxu0 0
    %3986 = vmatpush.bf16.msra.mxu0 0
    %3987 = vmatpush.bf16.msra.mxu0 0
    %3988 = vmatpush.bf16.msra.mxu0 0
    %3989 = vmatpush.bf16.msra.mxu0 %v3867
    %3990 = vmatpush.bf16.msra.mxu0 %v3851
    %3991 = vmatmul.bf16.gmra.mxu0 %v3911
    %v3992 = vpop.f32.mrf.mxu0
    %v3993 = vadd.f32 %v3723, %v3992
    %v3994 = vpop.f32.mrf.mxu0
    %v3995 = vadd.f32 %v3723, %v3994
    %3996 = vdwg.mxu0
    %3997 = vmatpush.bf16.msra.mxu0 0
    %3998 = vmatpush.bf16.msra.mxu0 0
    %3999 = vmatpush.bf16.msra.mxu0 0
    %4000 = vmatpush.bf16.msra.mxu0 0
    %4001 = vmatpush.bf16.msra.mxu0 0
    %4002 = vmatpush.bf16.msra.mxu0 0
    %4003 = vmatpush.bf16.msra.mxu0 %v3868
    %4004 = vmatpush.bf16.msra.mxu0 %v3852
    %4005 = vmatmul.bf16.gmra.mxu0 %v3911
    %v4006 = vpop.f32.mrf.mxu0
    %v4007 = vadd.f32 %v3724, %v4006
    %v4008 = vpop.f32.mrf.mxu0
    %v4009 = vadd.f32 %v3724, %v4008
    %4010 = vdwg.mxu0
    %4011 = vmatpush.bf16.msra.mxu0 0
    %4012 = vmatpush.bf16.msra.mxu0 0
    %4013 = vmatpush.bf16.msra.mxu0 0
    %4014 = vmatpush.bf16.msra.mxu0 0
    %4015 = vmatpush.bf16.msra.mxu0 0
    %4016 = vmatpush.bf16.msra.mxu0 0
    %4017 = vmatpush.bf16.msra.mxu0 %v3869
    %4018 = vmatpush.bf16.msra.mxu0 %v3853
    %4019 = vmatmul.bf16.gmra.mxu0 %v3911
    %v4020 = vpop.f32.mrf.mxu0
    %v4021 = vadd.f32 %v3725, %v4020
    %v4022 = vpop.f32.mrf.mxu0
    %v4023 = vadd.f32 %v3725, %v4022
    %4024 = vdwg.mxu0
    %4025 = vmatpush.bf16.msra.mxu0 0
    %4026 = vmatpush.bf16.msra.mxu0 0
    %4027 = vmatpush.bf16.msra.mxu0 0
    %4028 = vmatpush.bf16.msra.mxu0 0
    %4029 = vmatpush.bf16.msra.mxu0 0
    %4030 = vmatpush.bf16.msra.mxu0 0
    %4031 = vmatpush.bf16.msra.mxu0 %v3870
    %4032 = vmatpush.bf16.msra.mxu0 %v3854
    %4033 = vmatmul.bf16.gmra.mxu0 %v3911
    %v4034 = vpop.f32.mrf.mxu0
    %v4035 = vadd.f32 %v3726, %v4034
    %v4036 = vpop.f32.mrf.mxu0
    %v4037 = vadd.f32 %v3726, %v4036
    %4038 = vdwg.mxu0
    %4039 = vmatpush.bf16.msra.mxu0 0
    %4040 = vmatpush.bf16.msra.mxu0 0
    %4041 = vmatpush.bf16.msra.mxu0 0
    %4042 = vmatpush.bf16.msra.mxu0 0
    %4043 = vmatpush.bf16.msra.mxu0 0
    %4044 = vmatpush.bf16.msra.mxu0 0
    %4045 = vmatpush.bf16.msra.mxu0 %v3871
    %4046 = vmatpush.bf16.msra.mxu0 %v3855
    %4047 = vmatmul.bf16.gmra.mxu0 %v3911
    %v4048 = vpop.f32.mrf.mxu0
    %v4049 = vadd.f32 %v3727, %v4048
    %v4050 = vpop.f32.mrf.mxu0
    %v4051 = vadd.f32 %v3727, %v4050
    %4052 = vdwg.mxu0
    %4053 = vmatpush.bf16.msra.mxu0 0
    %4054 = vmatpush.bf16.msra.mxu0 0
    %4055 = vmatpush.bf16.msra.mxu0 0
    %4056 = vmatpush.bf16.msra.mxu0 0
    %4057 = vmatpush.bf16.msra.mxu0 0
    %4058 = vmatpush.bf16.msra.mxu0 0
    %4059 = vmatpush.bf16.msra.mxu0 %v3872
    %4060 = vmatpush.bf16.msra.mxu0 %v3856
    %4061 = vmatmul.bf16.gmra.mxu0 %v3911
    %v4062 = vpop.f32.mrf.mxu0
    %v4063 = vadd.f32 %v3728, %v4062
    %v4064 = vpop.f32.mrf.mxu0
    %v4065 = vadd.f32 %v3728, %v4064
    %4066 = vdwg.mxu0
    %4067 = vmatpush.bf16.msra.mxu0 0
    %4068 = vmatpush.bf16.msra.mxu0 0
    %4069 = vmatpush.bf16.msra.mxu0 0
    %4070 = vmatpush.bf16.msra.mxu0 0
    %4071 = vmatpush.bf16.msra.mxu0 0
    %4072 = vmatpush.bf16.msra.mxu0 0
    %4073 = vmatpush.bf16.msra.mxu0 %v3873
    %4074 = vmatpush.bf16.msra.mxu0 %v3857
    %4075 = vmatmul.bf16.gmra.mxu0 %v3911
    %v4076 = vpop.f32.mrf.mxu0
    %v4077 = vadd.f32 %v3729, %v4076
    %v4078 = vpop.f32.mrf.mxu0
    %v4079 = vadd.f32 %v3729, %v4078
    %4080 = vdwg.mxu0
    %4081 = vmatpush.bf16.msra.mxu0 0
    %4082 = vmatpush.bf16.msra.mxu0 0
    %4083 = vmatpush.bf16.msra.mxu0 0
    %4084 = vmatpush.bf16.msra.mxu0 0
    %4085 = vmatpush.bf16.msra.mxu0 0
    %4086 = vmatpush.bf16.msra.mxu0 0
    %4087 = vmatpush.bf16.msra.mxu0 %v3874
    %4088 = vmatpush.bf16.msra.mxu0 %v3858
    %4089 = vmatmul.bf16.gmra.mxu0 %v3911
    %v4090 = vpop.f32.mrf.mxu0
    %v4091 = vadd.f32 %v3730, %v4090
    %v4092 = vpop.f32.mrf.mxu0
    %v4093 = vadd.f32 %v3730, %v4092
    %4094 = vdwg.mxu0
    %4095 = vmatpush.bf16.msra.mxu0 0
    %4096 = vmatpush.bf16.msra.mxu0 0
    %4097 = vmatpush.bf16.msra.mxu0 0
    %4098 = vmatpush.bf16.msra.mxu0 0
    %4099 = vmatpush.bf16.msra.mxu0 0
    %4100 = vmatpush.bf16.msra.mxu0 0
    %4101 = vmatpush.bf16.msra.mxu0 %v3875
    %4102 = vmatpush.bf16.msra.mxu0 %v3859
    %4103 = vmatmul.bf16.gmra.mxu0 %v3911
    %v4104 = vpop.f32.mrf.mxu0
    %v4105 = vadd.f32 %v3731, %v4104
    %v4106 = vpop.f32.mrf.mxu0
    %v4107 = vadd.f32 %v3731, %v4106
    %4108 = vdwg.mxu0
    %4109 = vmatpush.bf16.msra.mxu0 0
    %4110 = vmatpush.bf16.msra.mxu0 0
    %4111 = vmatpush.bf16.msra.mxu0 0
    %4112 = vmatpush.bf16.msra.mxu0 0
    %4113 = vmatpush.bf16.msra.mxu0 0
    %4114 = vmatpush.bf16.msra.mxu0 0
    %4115 = vmatpush.bf16.msra.mxu0 %v3876
    %4116 = vmatpush.bf16.msra.mxu0 %v3860
    %4117 = vmatmul.bf16.gmra.mxu0 %v3911
    %v4118 = vpop.f32.mrf.mxu0
    %v4119 = vadd.f32 %v3732, %v4118
    %v4120 = vpop.f32.mrf.mxu0
    %v4121 = vadd.f32 %v3732, %v4120
    %4122 = vdwg.mxu0
    %4123 = vmatpush.bf16.msra.mxu0 0
    %4124 = vmatpush.bf16.msra.mxu0 0
    %4125 = vmatpush.bf16.msra.mxu0 0
    %4126 = vmatpush.bf16.msra.mxu0 0
    %4127 = vmatpush.bf16.msra.mxu0 0
    %4128 = vmatpush.bf16.msra.mxu0 0
    %4129 = vmatpush.bf16.msra.mxu0 %v3877
    %4130 = vmatpush.bf16.msra.mxu0 %v3861
    %4131 = vmatmul.bf16.gmra.mxu0 %v3911
    %v4132 = vpop.f32.mrf.mxu0
    %v4133 = vadd.f32 %v3733, %v4132
    %v4134 = vpop.f32.mrf.mxu0
    %v4135 = vadd.f32 %v3733, %v4134
    %4136 = vdwg.mxu0
    %v4137 = vmax.f32 %v3923, 0.0
    %v4138 = vmax.f32 %v3937, 0.0
    %v4139 = vmax.f32 %v3951, 0.0
    %v4140 = vmax.f32 %v3965, 0.0
    %v4141 = vmax.f32 %v3979, 0.0
    %v4142 = vmax.f32 %v3993, 0.0
    %v4143 = vmax.f32 %v4007, 0.0
    %v4144 = vmax.f32 %v4021, 0.0
    %v4145 = vmax.f32 %v4035, 0.0
    %v4146 = vmax.f32 %v4049, 0.0
    %v4147 = vmax.f32 %v4063, 0.0
    %v4148 = vmax.f32 %v4077, 0.0
    %v4149 = vmax.f32 %v4091, 0.0
    %v4150 = vmax.f32 %v4105, 0.0
    %v4151 = vmax.f32 %v4119, 0.0
    %v4152 = vmax.f32 %v4133, 0.0
    %v4153 = vmax.f32 %v3925, 0.0
    %v4154 = vmax.f32 %v3939, 0.0
    %v4155 = vmax.f32 %v3953, 0.0
    %v4156 = vmax.f32 %v3967, 0.0
    %v4157 = vmax.f32 %v3981, 0.0
    %v4158 = vmax.f32 %v3995, 0.0
    %v4159 = vmax.f32 %v4009, 0.0
    %v4160 = vmax.f32 %v4023, 0.0
    %v4161 = vmax.f32 %v4037, 0.0
    %v4162 = vmax.f32 %v4051, 0.0
    %v4163 = vmax.f32 %v4065, 0.0
    %v4164 = vmax.f32 %v4079, 0.0
    %v4165 = vmax.f32 %v4093, 0.0
    %v4166 = vmax.f32 %v4107, 0.0
    %v4167 = vmax.f32 %v4121, 0.0
    %v4168 = vmax.f32 %v4135, 0.0
    %v4169 = vpack.c.bf16 %v4153, %v4137
    %v4170 = vpack.c.bf16 %v4154, %v4138
    %v4171 = vpack.c.bf16 %v4155, %v4139
    %v4172 = vpack.c.bf16 %v4156, %v4140
    %v4173 = vpack.c.bf16 %v4157, %v4141
    %v4174 = vpack.c.bf16 %v4158, %v4142
    %v4175 = vpack.c.bf16 %v4159, %v4143
    %v4176 = vpack.c.bf16 %v4160, %v4144
    %v4177 = vpack.c.bf16 %v4161, %v4145
    %v4178 = vpack.c.bf16 %v4162, %v4146
    %v4179 = vpack.c.bf16 %v4163, %v4147
    %v4180 = vpack.c.bf16 %v4164, %v4148
    %v4181 = vpack.c.bf16 %v4165, %v4149
    %v4182 = vpack.c.bf16 %v4166, %v4150
    %v4183 = vpack.c.bf16 %v4167, %v4151
    %v4184 = vpack.c.bf16 %v4168, %v4152
    %s4185 = scalar_lea.vmem [#allocation17], 256
    %v4186 = vld [vmem:[%s4185] sm:$0xff]
    %v4187 = vld [vmem:[%s4185 + $0x8] sm:$0xff]
    %v4188 = vld [vmem:[%s4185 + $0x10] sm:$0xff]
    %v4189 = vld [vmem:[%s4185 + $0x18] sm:$0xff]
    %v4190 = vld [vmem:[%s4185 + $0x20] sm:$0xff]
    %v4191 = vld [vmem:[%s4185 + $0x28] sm:$0xff]
    %v4192 = vld [vmem:[%s4185 + $0x30] sm:$0xff]
    %v4193 = vld [vmem:[%s4185 + $0x38] sm:$0xff]
    %v4194 = vld [vmem:[%s4185 + $0x40] sm:$0xff]
    %v4195 = vld [vmem:[%s4185 + $0x48] sm:$0xff]
    %v4196 = vld [vmem:[%s4185 + $0x50] sm:$0xff]
    %v4197 = vld [vmem:[%s4185 + $0x58] sm:$0xff]
    %v4198 = vld [vmem:[%s4185 + $0x60] sm:$0xff]
    %v4199 = vld [vmem:[%s4185 + $0x68] sm:$0xff]
    %v4200 = vld [vmem:[%s4185 + $0x70] sm:$0xff]
    %v4201 = vld [vmem:[%s4185 + $0x78] sm:$0xff]
    %v4202 = vld [vmem:[%s4185 + $0x80] sm:$0xff]
    %v4203 = vld [vmem:[%s4185 + $0x88] sm:$0xff]
    %v4204 = vld [vmem:[%s4185 + $0x90] sm:$0xff]
    %v4205 = vld [vmem:[%s4185 + $0x98] sm:$0xff]
    %v4206 = vld [vmem:[%s4185 + $0xa0] sm:$0xff]
    %v4207 = vld [vmem:[%s4185 + $0xa8] sm:$0xff]
    %v4208 = vld [vmem:[%s4185 + $0xb0] sm:$0xff]
    %v4209 = vld [vmem:[%s4185 + $0xb8] sm:$0xff]
    %v4210 = vld [vmem:[%s4185 + $0xc0] sm:$0xff]
    %v4211 = vld [vmem:[%s4185 + $0xc8] sm:$0xff]
    %v4212 = vld [vmem:[%s4185 + $0xd0] sm:$0xff]
    %v4213 = vld [vmem:[%s4185 + $0xd8] sm:$0xff]
    %v4214 = vld [vmem:[%s4185 + $0xe0] sm:$0xff]
    %v4215 = vld [vmem:[%s4185 + $0xe8] sm:$0xff]
    %v4216 = vld [vmem:[%s4185 + $0xf0] sm:$0xff]
    %v4217 = vld [vmem:[%s4185 + $0xf8] sm:$0xff]
    %s4218 = scalar_lea.vmem [#allocation19], 1
    %v4219 = vld [vmem:[%s4218] sm:$0x1]
    %v4221 = vperm.slane %v4219, 0
    %v4255 = vunpack.c.l.b16 %v4186
    %v4256 = vunpack.c.h.b16 %v4186
    %v4257 = vunpack.c.l.b16 %v4187
    %v4258 = vunpack.c.h.b16 %v4187
    %v4259 = vunpack.c.l.b16 %v4188
    %v4260 = vunpack.c.h.b16 %v4188
    %v4261 = vunpack.c.l.b16 %v4189
    %v4262 = vunpack.c.h.b16 %v4189
    %v4263 = vunpack.c.l.b16 %v4190
    %v4264 = vunpack.c.h.b16 %v4190
    %v4265 = vunpack.c.l.b16 %v4191
    %v4266 = vunpack.c.h.b16 %v4191
    %v4267 = vunpack.c.l.b16 %v4192
    %v4268 = vunpack.c.h.b16 %v4192
    %v4269 = vunpack.c.l.b16 %v4193
    %v4270 = vunpack.c.h.b16 %v4193
    %v4271 = vunpack.c.l.b16 %v4194
    %v4272 = vunpack.c.h.b16 %v4194
    %v4273 = vunpack.c.l.b16 %v4195
    %v4274 = vunpack.c.h.b16 %v4195
    %v4275 = vunpack.c.l.b16 %v4196
    %v4276 = vunpack.c.h.b16 %v4196
    %v4277 = vunpack.c.l.b16 %v4197
    %v4278 = vunpack.c.h.b16 %v4197
    %v4279 = vunpack.c.l.b16 %v4198
    %v4280 = vunpack.c.h.b16 %v4198
    %v4281 = vunpack.c.l.b16 %v4199
    %v4282 = vunpack.c.h.b16 %v4199
    %v4283 = vunpack.c.l.b16 %v4200
    %v4284 = vunpack.c.h.b16 %v4200
    %v4285 = vunpack.c.l.b16 %v4201
    %v4286 = vunpack.c.h.b16 %v4201
    %v4287 = vunpack.c.l.b16 %v4202
    %v4288 = vunpack.c.h.b16 %v4202
    %v4289 = vunpack.c.l.b16 %v4203
    %v4290 = vunpack.c.h.b16 %v4203
    %v4291 = vunpack.c.l.b16 %v4204
    %v4292 = vunpack.c.h.b16 %v4204
    %v4293 = vunpack.c.l.b16 %v4205
    %v4294 = vunpack.c.h.b16 %v4205
    %v4295 = vunpack.c.l.b16 %v4206
    %v4296 = vunpack.c.h.b16 %v4206
    %v4297 = vunpack.c.l.b16 %v4207
    %v4298 = vunpack.c.h.b16 %v4207
    %v4299 = vunpack.c.l.b16 %v4208
    %v4300 = vunpack.c.h.b16 %v4208
    %v4301 = vunpack.c.l.b16 %v4209
    %v4302 = vunpack.c.h.b16 %v4209
    %v4303 = vunpack.c.l.b16 %v4210
    %v4304 = vunpack.c.h.b16 %v4210
    %v4305 = vunpack.c.l.b16 %v4211
    %v4306 = vunpack.c.h.b16 %v4211
    %v4307 = vunpack.c.l.b16 %v4212
    %v4308 = vunpack.c.h.b16 %v4212
    %v4309 = vunpack.c.l.b16 %v4213
    %v4310 = vunpack.c.h.b16 %v4213
    %v4311 = vunpack.c.l.b16 %v4214
    %v4312 = vunpack.c.h.b16 %v4214
    %v4313 = vunpack.c.l.b16 %v4215
    %v4314 = vunpack.c.h.b16 %v4215
    %v4315 = vunpack.c.l.b16 %v4216
    %v4316 = vunpack.c.h.b16 %v4216
    %v4317 = vunpack.c.l.b16 %v4217
    %v4318 = vunpack.c.h.b16 %v4217
    %v4319 = vpack.c.b16 %v4271, %v4255
    %v4320 = vpack.c.b16 %v4272, %v4256
    %v4321 = vpack.c.b16 %v4273, %v4257
    %v4322 = vpack.c.b16 %v4274, %v4258
    %v4323 = vpack.c.b16 %v4275, %v4259
    %v4324 = vpack.c.b16 %v4276, %v4260
    %v4325 = vpack.c.b16 %v4277, %v4261
    %v4326 = vpack.c.b16 %v4278, %v4262
    %v4327 = vpack.c.b16 %v4279, %v4263
    %v4328 = vpack.c.b16 %v4280, %v4264
    %v4329 = vpack.c.b16 %v4281, %v4265
    %v4330 = vpack.c.b16 %v4282, %v4266
    %v4331 = vpack.c.b16 %v4283, %v4267
    %v4332 = vpack.c.b16 %v4284, %v4268
    %v4333 = vpack.c.b16 %v4285, %v4269
    %v4334 = vpack.c.b16 %v4286, %v4270
    %v4335 = vpack.c.b16 %v4303, %v4287
    %v4336 = vpack.c.b16 %v4304, %v4288
    %v4337 = vpack.c.b16 %v4305, %v4289
    %v4338 = vpack.c.b16 %v4306, %v4290
    %v4339 = vpack.c.b16 %v4307, %v4291
    %v4340 = vpack.c.b16 %v4308, %v4292
    %v4341 = vpack.c.b16 %v4309, %v4293
    %v4342 = vpack.c.b16 %v4310, %v4294
    %v4343 = vpack.c.b16 %v4311, %v4295
    %v4344 = vpack.c.b16 %v4312, %v4296
    %v4345 = vpack.c.b16 %v4313, %v4297
    %v4346 = vpack.c.b16 %v4314, %v4298
    %v4347 = vpack.c.b16 %v4315, %v4299
    %v4348 = vpack.c.b16 %v4316, %v4300
    %v4349 = vpack.c.b16 %v4317, %v4301
    %v4350 = vpack.c.b16 %v4318, %v4302
    %4383 = vmatpush.bf16.xpose.msra.mxu0 0
    %4384 = vmatpush.bf16.xpose.msra.mxu0 0
    %4385 = vmatpush.bf16.xpose.msra.mxu0 0
    %4386 = vmatpush.bf16.xpose.msra.mxu0 0
    %4387 = vmatpush.bf16.xpose.msra.mxu0 0
    %4388 = vmatpush.bf16.xpose.msra.mxu0 0
    %4389 = vmatpush.bf16.xpose.msra.mxu0 %v4335
    %4390 = vmatpush.bf16.xpose.msra.mxu0 %v4319
    %4391 = vmatmul.bf16.gmra.mxu0 %v4169
    %v4392 = vpop.f32.mrf.mxu0
    %v4393 = vadd.f32 %v4221, %v4392
    %v4394 = vpop.f32.mrf.mxu0
    %v4395 = vadd.f32 %v4221, %v4394
    %4396 = vdwg.mxu0
    %4397 = vmatpush.bf16.xpose.msra.mxu0 0
    %4398 = vmatpush.bf16.xpose.msra.mxu0 0
    %4399 = vmatpush.bf16.xpose.msra.mxu0 0
    %4400 = vmatpush.bf16.xpose.msra.mxu0 0
    %4401 = vmatpush.bf16.xpose.msra.mxu0 0
    %4402 = vmatpush.bf16.xpose.msra.mxu0 0
    %4403 = vmatpush.bf16.xpose.msra.mxu0 %v4336
    %4404 = vmatpush.bf16.xpose.msra.mxu0 %v4320
    %4405 = vmatmul.bf16.gmra.mxu0 %v4170
    %v4406 = vpop.f32.mrf.mxu0
    %v4407 = vadd.f32 %v4393, %v4406
    %v4408 = vpop.f32.mrf.mxu0
    %v4409 = vadd.f32 %v4395, %v4408
    %4410 = vdwg.mxu0
    %4411 = vmatpush.bf16.xpose.msra.mxu0 0
    %4412 = vmatpush.bf16.xpose.msra.mxu0 0
    %4413 = vmatpush.bf16.xpose.msra.mxu0 0
    %4414 = vmatpush.bf16.xpose.msra.mxu0 0
    %4415 = vmatpush.bf16.xpose.msra.mxu0 0
    %4416 = vmatpush.bf16.xpose.msra.mxu0 0
    %4417 = vmatpush.bf16.xpose.msra.mxu0 %v4337
    %4418 = vmatpush.bf16.xpose.msra.mxu0 %v4321
    %4419 = vmatmul.bf16.gmra.mxu0 %v4171
    %v4420 = vpop.f32.mrf.mxu0
    %v4421 = vadd.f32 %v4407, %v4420
    %v4422 = vpop.f32.mrf.mxu0
    %v4423 = vadd.f32 %v4409, %v4422
    %4424 = vdwg.mxu0
    %4425 = vmatpush.bf16.xpose.msra.mxu0 0
    %4426 = vmatpush.bf16.xpose.msra.mxu0 0
    %4427 = vmatpush.bf16.xpose.msra.mxu0 0
    %4428 = vmatpush.bf16.xpose.msra.mxu0 0
    %4429 = vmatpush.bf16.xpose.msra.mxu0 0
    %4430 = vmatpush.bf16.xpose.msra.mxu0 0
    %4431 = vmatpush.bf16.xpose.msra.mxu0 %v4338
    %4432 = vmatpush.bf16.xpose.msra.mxu0 %v4322
    %4433 = vmatmul.bf16.gmra.mxu0 %v4172
    %v4434 = vpop.f32.mrf.mxu0
    %v4435 = vadd.f32 %v4421, %v4434
    %v4436 = vpop.f32.mrf.mxu0
    %v4437 = vadd.f32 %v4423, %v4436
    %4438 = vdwg.mxu0
    %4439 = vmatpush.bf16.xpose.msra.mxu0 0
    %4440 = vmatpush.bf16.xpose.msra.mxu0 0
    %4441 = vmatpush.bf16.xpose.msra.mxu0 0
    %4442 = vmatpush.bf16.xpose.msra.mxu0 0
    %4443 = vmatpush.bf16.xpose.msra.mxu0 0
    %4444 = vmatpush.bf16.xpose.msra.mxu0 0
    %4445 = vmatpush.bf16.xpose.msra.mxu0 %v4339
    %4446 = vmatpush.bf16.xpose.msra.mxu0 %v4323
    %4447 = vmatmul.bf16.gmra.mxu0 %v4173
    %v4448 = vpop.f32.mrf.mxu0
    %v4449 = vadd.f32 %v4435, %v4448
    %v4450 = vpop.f32.mrf.mxu0
    %v4451 = vadd.f32 %v4437, %v4450
    %4452 = vdwg.mxu0
    %4453 = vmatpush.bf16.xpose.msra.mxu0 0
    %4454 = vmatpush.bf16.xpose.msra.mxu0 0
    %4455 = vmatpush.bf16.xpose.msra.mxu0 0
    %4456 = vmatpush.bf16.xpose.msra.mxu0 0
    %4457 = vmatpush.bf16.xpose.msra.mxu0 0
    %4458 = vmatpush.bf16.xpose.msra.mxu0 0
    %4459 = vmatpush.bf16.xpose.msra.mxu0 %v4340
    %4460 = vmatpush.bf16.xpose.msra.mxu0 %v4324
    %4461 = vmatmul.bf16.gmra.mxu0 %v4174
    %v4462 = vpop.f32.mrf.mxu0
    %v4463 = vadd.f32 %v4449, %v4462
    %v4464 = vpop.f32.mrf.mxu0
    %v4465 = vadd.f32 %v4451, %v4464
    %4466 = vdwg.mxu0
    %4467 = vmatpush.bf16.xpose.msra.mxu0 0
    %4468 = vmatpush.bf16.xpose.msra.mxu0 0
    %4469 = vmatpush.bf16.xpose.msra.mxu0 0
    %4470 = vmatpush.bf16.xpose.msra.mxu0 0
    %4471 = vmatpush.bf16.xpose.msra.mxu0 0
    %4472 = vmatpush.bf16.xpose.msra.mxu0 0
    %4473 = vmatpush.bf16.xpose.msra.mxu0 %v4341
    %4474 = vmatpush.bf16.xpose.msra.mxu0 %v4325
    %4475 = vmatmul.bf16.gmra.mxu0 %v4175
    %v4476 = vpop.f32.mrf.mxu0
    %v4477 = vadd.f32 %v4463, %v4476
    %v4478 = vpop.f32.mrf.mxu0
    %v4479 = vadd.f32 %v4465, %v4478
    %4480 = vdwg.mxu0
    %4481 = vmatpush.bf16.xpose.msra.mxu0 0
    %4482 = vmatpush.bf16.xpose.msra.mxu0 0
    %4483 = vmatpush.bf16.xpose.msra.mxu0 0
    %4484 = vmatpush.bf16.xpose.msra.mxu0 0
    %4485 = vmatpush.bf16.xpose.msra.mxu0 0
    %4486 = vmatpush.bf16.xpose.msra.mxu0 0
    %4487 = vmatpush.bf16.xpose.msra.mxu0 %v4342
    %4488 = vmatpush.bf16.xpose.msra.mxu0 %v4326
    %4489 = vmatmul.bf16.gmra.mxu0 %v4176
    %v4490 = vpop.f32.mrf.mxu0
    %v4491 = vadd.f32 %v4477, %v4490
    %v4492 = vpop.f32.mrf.mxu0
    %v4493 = vadd.f32 %v4479, %v4492
    %4494 = vdwg.mxu0
    %4495 = vmatpush.bf16.xpose.msra.mxu0 0
    %4496 = vmatpush.bf16.xpose.msra.mxu0 0
    %4497 = vmatpush.bf16.xpose.msra.mxu0 0
    %4498 = vmatpush.bf16.xpose.msra.mxu0 0
    %4499 = vmatpush.bf16.xpose.msra.mxu0 0
    %4500 = vmatpush.bf16.xpose.msra.mxu0 0
    %4501 = vmatpush.bf16.xpose.msra.mxu0 %v4343
    %4502 = vmatpush.bf16.xpose.msra.mxu0 %v4327
    %4503 = vmatmul.bf16.gmra.mxu0 %v4177
    %v4504 = vpop.f32.mrf.mxu0
    %v4505 = vadd.f32 %v4491, %v4504
    %v4506 = vpop.f32.mrf.mxu0
    %v4507 = vadd.f32 %v4493, %v4506
    %4508 = vdwg.mxu0
    %4509 = vmatpush.bf16.xpose.msra.mxu0 0
    %4510 = vmatpush.bf16.xpose.msra.mxu0 0
    %4511 = vmatpush.bf16.xpose.msra.mxu0 0
    %4512 = vmatpush.bf16.xpose.msra.mxu0 0
    %4513 = vmatpush.bf16.xpose.msra.mxu0 0
    %4514 = vmatpush.bf16.xpose.msra.mxu0 0
    %4515 = vmatpush.bf16.xpose.msra.mxu0 %v4344
    %4516 = vmatpush.bf16.xpose.msra.mxu0 %v4328
    %4517 = vmatmul.bf16.gmra.mxu0 %v4178
    %v4518 = vpop.f32.mrf.mxu0
    %v4519 = vadd.f32 %v4505, %v4518
    %v4520 = vpop.f32.mrf.mxu0
    %v4521 = vadd.f32 %v4507, %v4520
    %4522 = vdwg.mxu0
    %4523 = vmatpush.bf16.xpose.msra.mxu0 0
    %4524 = vmatpush.bf16.xpose.msra.mxu0 0
    %4525 = vmatpush.bf16.xpose.msra.mxu0 0
    %4526 = vmatpush.bf16.xpose.msra.mxu0 0
    %4527 = vmatpush.bf16.xpose.msra.mxu0 0
    %4528 = vmatpush.bf16.xpose.msra.mxu0 0
    %4529 = vmatpush.bf16.xpose.msra.mxu0 %v4345
    %4530 = vmatpush.bf16.xpose.msra.mxu0 %v4329
    %4531 = vmatmul.bf16.gmra.mxu0 %v4179
    %v4532 = vpop.f32.mrf.mxu0
    %v4533 = vadd.f32 %v4519, %v4532
    %v4534 = vpop.f32.mrf.mxu0
    %v4535 = vadd.f32 %v4521, %v4534
    %4536 = vdwg.mxu0
    %4537 = vmatpush.bf16.xpose.msra.mxu0 0
    %4538 = vmatpush.bf16.xpose.msra.mxu0 0
    %4539 = vmatpush.bf16.xpose.msra.mxu0 0
    %4540 = vmatpush.bf16.xpose.msra.mxu0 0
    %4541 = vmatpush.bf16.xpose.msra.mxu0 0
    %4542 = vmatpush.bf16.xpose.msra.mxu0 0
    %4543 = vmatpush.bf16.xpose.msra.mxu0 %v4346
    %4544 = vmatpush.bf16.xpose.msra.mxu0 %v4330
    %4545 = vmatmul.bf16.gmra.mxu0 %v4180
    %v4546 = vpop.f32.mrf.mxu0
    %v4547 = vadd.f32 %v4533, %v4546
    %v4548 = vpop.f32.mrf.mxu0
    %v4549 = vadd.f32 %v4535, %v4548
    %4550 = vdwg.mxu0
    %4551 = vmatpush.bf16.xpose.msra.mxu0 0
    %4552 = vmatpush.bf16.xpose.msra.mxu0 0
    %4553 = vmatpush.bf16.xpose.msra.mxu0 0
    %4554 = vmatpush.bf16.xpose.msra.mxu0 0
    %4555 = vmatpush.bf16.xpose.msra.mxu0 0
    %4556 = vmatpush.bf16.xpose.msra.mxu0 0
    %4557 = vmatpush.bf16.xpose.msra.mxu0 %v4347
    %4558 = vmatpush.bf16.xpose.msra.mxu0 %v4331
    %4559 = vmatmul.bf16.gmra.mxu0 %v4181
    %v4560 = vpop.f32.mrf.mxu0
    %v4561 = vadd.f32 %v4547, %v4560
    %v4562 = vpop.f32.mrf.mxu0
    %v4563 = vadd.f32 %v4549, %v4562
    %4564 = vdwg.mxu0
    %4565 = vmatpush.bf16.xpose.msra.mxu0 0
    %4566 = vmatpush.bf16.xpose.msra.mxu0 0
    %4567 = vmatpush.bf16.xpose.msra.mxu0 0
    %4568 = vmatpush.bf16.xpose.msra.mxu0 0
    %4569 = vmatpush.bf16.xpose.msra.mxu0 0
    %4570 = vmatpush.bf16.xpose.msra.mxu0 0
    %4571 = vmatpush.bf16.xpose.msra.mxu0 %v4348
    %4572 = vmatpush.bf16.xpose.msra.mxu0 %v4332
    %4573 = vmatmul.bf16.gmra.mxu0 %v4182
    %v4574 = vpop.f32.mrf.mxu0
    %v4575 = vadd.f32 %v4561, %v4574
    %v4576 = vpop.f32.mrf.mxu0
    %v4577 = vadd.f32 %v4563, %v4576
    %4578 = vdwg.mxu0
    %4579 = vmatpush.bf16.xpose.msra.mxu0 0
    %4580 = vmatpush.bf16.xpose.msra.mxu0 0
    %4581 = vmatpush.bf16.xpose.msra.mxu0 0
    %4582 = vmatpush.bf16.xpose.msra.mxu0 0
    %4583 = vmatpush.bf16.xpose.msra.mxu0 0
    %4584 = vmatpush.bf16.xpose.msra.mxu0 0
    %4585 = vmatpush.bf16.xpose.msra.mxu0 %v4349
    %4586 = vmatpush.bf16.xpose.msra.mxu0 %v4333
    %4587 = vmatmul.bf16.gmra.mxu0 %v4183
    %v4588 = vpop.f32.mrf.mxu0
    %v4589 = vadd.f32 %v4575, %v4588
    %v4590 = vpop.f32.mrf.mxu0
    %v4591 = vadd.f32 %v4577, %v4590
    %4592 = vdwg.mxu0
    %4593 = vmatpush.bf16.xpose.msra.mxu0 0
    %4594 = vmatpush.bf16.xpose.msra.mxu0 0
    %4595 = vmatpush.bf16.xpose.msra.mxu0 0
    %4596 = vmatpush.bf16.xpose.msra.mxu0 0
    %4597 = vmatpush.bf16.xpose.msra.mxu0 0
    %4598 = vmatpush.bf16.xpose.msra.mxu0 0
    %4599 = vmatpush.bf16.xpose.msra.mxu0 %v4350
    %4600 = vmatpush.bf16.xpose.msra.mxu0 %v4334
    %4601 = vmatmul.bf16.gmra.mxu0 %v4184
    %v4602 = vpop.f32.mrf.mxu0
    %v4603 = vadd.f32 %v4589, %v4602
    %v4604 = vpop.f32.mrf.mxu0
    %v4605 = vadd.f32 %v4591, %v4604
    %4606 = vdwg.mxu0
    %v4607 = vadd.f32 %v3677, %v4603
    %v4608 = vadd.f32 %v3678, %v4605
    %s4609 = scalar_lea.vmem [#allocation20], 1
    %v4610 = vld [vmem:[%s4609] sm:$0x1]
    %s4611 = scalar_lea.vmem [#allocation22], 1
    %v4612 = vld [vmem:[%s4611] sm:$0x1]
    %v4613 = vsel %vm344, %v4607, 0.0
    %4614 = vadd.xlane.f32.xlu0 %v4613
    %v4615 = vpop.xlane.xlu0 %4614
    %v4616 = vsel %vm344, %v4608, 0.0
    %4617 = vadd.xlane.f32.xlu0 %v4616
    %v4618 = vpop.xlane.xlu0 %4617
    %v4619 = vmul.f32 %v4615, %v1471
    %v4620 = vmul.f32 %v4618, %v1471
    %v4621 = vsub.f32 %v4607, %v4619
    %v4622 = vsub.f32 %v4608, %v4620
    %v4623 = vmul.f32 %v4621, %v4621
    %v4624 = vmul.f32 %v4622, %v4622
    %v4625 = vsel %vm344, %v4623, 0.0
    %4626 = vadd.xlane.f32.xlu0 %v4625
    %v4627 = vpop.xlane.xlu0 %4626
    %v4628 = vsel %vm344, %v4624, 0.0
    %4629 = vadd.xlane.f32.xlu0 %v4628
    %v4630 = vpop.xlane.xlu0 %4629
    %v4631 = vmul.f32 %v4627, %v1471
    %v4632 = vmul.f32 %v4630, %v1471
    %v4633 = vadd.f32 %v4631, 1e-05
    %v4634 = vadd.f32 %v4632, 1e-05
    %v4635 = vrsqrt.pop %v4633
    %v4636 = vmul.f32 %v4635, %v4633
    %v4637 = vmul.f32 %v4636, %v4635
    %v4638 = vmul.f32 0.5, %v4637
    %v4639 = vsub.f32 1.5, %v4638
    %v4640 = vmul.f32 %v4635, %v4639
    %vm4641 = vweird.f32 %v4633
    %vm4642 = vweird.f32 %v4635
    %vm4643 = vmor %vm4641, %vm4642
    %v4644 = vsel %vm4643, %v4635, %v4640
    %v4645 = vrsqrt.pop %v4634
    %v4646 = vmul.f32 %v4645, %v4634
    %v4647 = vmul.f32 %v4646, %v4645
    %v4648 = vmul.f32 0.5, %v4647
    %v4649 = vsub.f32 1.5, %v4648
    %v4650 = vmul.f32 %v4645, %v4649
    %vm4651 = vweird.f32 %v4634
    %vm4652 = vweird.f32 %v4645
    %vm4653 = vmor %vm4651, %vm4652
    %v4654 = vsel %vm4653, %v4645, %v4650
    %v4655 = vmul.f32 %v4621, %v4644
    %v4656 = vmul.f32 %v4622, %v4654
    %v4658 = vperm.slane %v4610, 0
    %v4660 = vmul.f32 %v4655, %v4658
    %v4661 = vmul.f32 %v4656, %v4658
    %v4663 = vperm.slane %v4612, 0
    %v4665 = vadd.f32 %v4660, %v4663
    %v4666 = vadd.f32 %v4661, %v4663
    %v4667 = vld [vmem:[#allocation23] sm:$0xf]
    %v4668 = vld [vmem:[#allocation25] sm:$0x1]
    %v4670 = vperm.slane %v4668, 0
    %v4673 = vsel %vm344, %v4665, 0
    %v4676 = vsel %vm344, %v4666, 0
    %v4679 = vsel %vm344, %v4667, 0
    %4681 = vmatpush.xpose.msra.mxu0 0.0
    %4682 = vmatpush.xpose.msra.mxu0 0.0
    %4683 = vmatpush.xpose.msra.mxu0 0.0
    %4684 = vmatpush.xpose.msra.mxu0 0.0
    %4685 = vmatpush.xpose.msra.mxu0 0.0
    %4686 = vmatpush.xpose.msra.mxu0 0.0
    %4687 = vmatpush.xpose.msra.mxu0 0.0
    %4688 = vmatpush.xpose.msra.mxu0 0.0
    %4689 = vmatpush.xpose.msra.mxu0 0.0
    %4690 = vmatpush.xpose.msra.mxu0 0.0
    %4691 = vmatpush.xpose.msra.mxu0 0.0
    %4692 = vmatpush.xpose.msra.mxu0 0.0
    %4693 = vmatpush.xpose.msra.mxu0 0.0
    %4694 = vmatpush.xpose.msra.mxu0 0.0
    %4695 = vmatpush.xpose.msra.mxu0 0.0
    %4696 = vmatpush.xpose.msra.mxu0 %v4679
    %4697 = vmatmul.f32.gmra.mxu0 %v4673
    %v4698 = vpop.f32.mrf.mxu0
    %v4699 = vadd.f32 %v4670, %v4698
    %4700 = vmatmul.f32.gmra.mxu0 %v4676
    %v4701 = vpop.f32.mrf.mxu0
    %v4702 = vadd.f32 %v4670, %v4701
    %4703 = vdwg.mxu0
    %4704 = vst.msk [vmem:[%s22] sm:$0xff] %vm306, %v4699
    %4705 = vst.msk [vmem:[%s22 + $0x8] sm:$0xff] %vm306, %v4702
    // Predicated region
    $region150: #{transformer_ais_forward.1} parent=1 // pred_check
      _
    $region151: #{transformer_ais_forward.1} parent=1 // pred_check_branch
      %4707 = sbr.rel (0) target = $region153
    $region152: #{transformer_ais_forward.1} parent=1 // pred_region
      _
    $region153: #{transformer_ais_forward.1} parent=1 // pred_fallthru
      _
    // Predicated region
    $region154: #{transformer_ais_forward.1} parent=1 // pred_check
      _
    $region155: #{transformer_ais_forward.1} parent=1 // pred_check_branch
      %4709 = sbr.rel (0) target = $region157
    $region156: #{transformer_ais_forward.1} parent=1 // pred_region
      _
    $region157: #{transformer_ais_forward.1} parent=1 // pred_fallthru
      _
    %4710 = vsyncpa [#allocation4], 1
    %4711 = vsyncpa [#allocation6], 1
    %4712 = vsyncpa [#allocation9], 1
    %4713 = vsyncpa [#allocation12], 1
    %4714 = vsyncpa [#allocation15], 1
    %4715 = vsyncpa [#allocation18], 1
    %4716 = vsyncpa [#allocation21], 1
    %4717 = vsyncpa [#allocation24], 1

</llo_original>
